<compile_context>
chip_gen: v6e
topology: v6e:2x2x1
jax: 0.10.0
libtpu: 0.0.40
codegen_flags: <defaults>
</compile_context>

<pallas_src>
import functools
import math

import jax
import jax.numpy as jnp
from jax.experimental import pallas as pl
from jax.experimental.pallas import tpu as pltpu

D_MODEL = 32
NHEAD = 4
DIM_FF = 64
HEAD_DIM = D_MODEL // NHEAD
EPS = 1e-5

# Rows of the packed `vec` array (each row is a length-D_MODEL vector).
_V_SA_BO, _V_CA_BO, _V_B2 = 0, 1, 2
_V_G1, _V_BE1, _V_G2, _V_BE2, _V_G3, _V_BE3 = 3, 4, 5, 6, 7, 8


def decoder_layer_kernel(
    tgt_ref, mem_ref, qpos_ref, pos_ref,
    w_qkv_ref, b_qkv_ref, w_out_ref, w1_ref, b1_ref, w2_ref, vec_ref,
    out_ref, *, batch):
    f32 = jnp.float32

    def same_batch_mask(nq, nk):
        rb = jax.lax.broadcasted_iota(jnp.int32, (nq, nk), 0) % batch
        cb = jax.lax.broadcasted_iota(jnp.int32, (nq, nk), 1) % batch
        return rb == cb

    def layer_norm(x, g_row, b_row):
        gamma = vec_ref[g_row:g_row + 1, :]
        beta = vec_ref[b_row:b_row + 1, :]
        mu = jnp.mean(x, axis=-1, keepdims=True)
        xc = x - mu
        var = jnp.mean(xc * xc, axis=-1, keepdims=True)
        return xc * jax.lax.rsqrt(var + EPS) * gamma + beta

    def attention(attn_idx, xq, xk, xv, mask):
        scale = 1.0 / math.sqrt(HEAD_DIM)
        acc = jnp.zeros((xq.shape[0], D_MODEL), f32)
        for h in range(NHEAD):  # static unroll; all head slicing is on weights
            iq = (attn_idx * 3 + 0) * NHEAD + h
            ik = (attn_idx * 3 + 1) * NHEAD + h
            iv = (attn_idx * 3 + 2) * NHEAD + h
            q = (jnp.dot(xq, w_qkv_ref[iq], preferred_element_type=f32)
                 + b_qkv_ref[iq:iq + 1, :])
            k = (jnp.dot(xk, w_qkv_ref[ik], preferred_element_type=f32)
                 + b_qkv_ref[ik:ik + 1, :])
            v = (jnp.dot(xv, w_qkv_ref[iv], preferred_element_type=f32)
                 + b_qkv_ref[iv:iv + 1, :])
            # scores: q @ k^T expressed directly as a dot_general (no transpose op)
            s = jax.lax.dot_general(q * scale, k, (((1,), (1,)), ((), ())),
                                    preferred_element_type=f32)
            s = jnp.where(mask, s, -1e30)          # keep same-batch pairs only
            s = s - jnp.max(s, axis=-1, keepdims=True)
            p = jnp.exp(s)
            inv = pl.reciprocal(jnp.sum(p, axis=-1, keepdims=True), approx=False)
            # normalize the small (N, HEAD_DIM) context instead of the (N, S*B) probs
            o = jnp.dot(p, v, preferred_element_type=f32) * inv
            # accumulate this head's slice of the output projection (no concat)
            acc = acc + jnp.dot(o, w_out_ref[attn_idx * NHEAD + h],
                                preferred_element_type=f32)
        return acc + vec_ref[attn_idx:attn_idx + 1, :]  # out-proj bias

    tgt = tgt_ref[...]
    mem = mem_ref[...]
    qpos = qpos_ref[...]
    pos = pos_ref[...]

    mask_tt = same_batch_mask(tgt.shape[0], tgt.shape[0])
    mask_tm = same_batch_mask(tgt.shape[0], mem.shape[0])

    # self-attention (q = k = tgt + query_pos, value = tgt) + residual + norm1
    qk = tgt + qpos
    x = layer_norm(tgt + attention(0, qk, qk, tgt, mask_tt), _V_G1, _V_BE1)
    # cross-attention (q = x + query_pos, k = memory + pos, v = memory) + norm2
    x = layer_norm(x + attention(1, x + qpos, mem + pos, mem, mask_tm),
                   _V_G2, _V_BE2)
    # feed-forward: linear2(relu(linear1(x))) + residual + norm3
    hidden = jnp.maximum(
        jnp.dot(x, w1_ref[...], preferred_element_type=f32) + b1_ref[...], 0.0)
    ff = (jnp.dot(hidden, w2_ref[...], preferred_element_type=f32)
          + vec_ref[_V_B2:_V_B2 + 1, :])
    x = layer_norm(x + ff, _V_G3, _V_BE3)

    out_ref[...] = x


@jax.jit
def transformer_decoder_layer(tgt, memory, query_pos, pos, packed):
    """tgt/query_pos: (T, B, D); memory/pos: (S, B, D) — PyTorch MHA layout."""
    T, B, D = tgt.shape
    S = memory.shape[0]

    # Layout-preserving flatten (row-major merge of (L, B) -> L*B): no transpose,
    # no extra HBM round trips.
    data = [tgt.reshape(T * B, D), memory.reshape(S * B, D),
            query_pos.reshape(T * B, D), pos.reshape(S * B, D)]
    weights = [packed["w_qkv"], packed["b_qkv"], packed["w_out"],
               packed["w1"], packed["b1"], packed["w2"], packed["vec"]]

    vmem = pl.BlockSpec(memory_space=pltpu.MemorySpace.VMEM)
    out = pl.pallas_call(
        functools.partial(decoder_layer_kernel, batch=B),
        out_shape=jax.ShapeDtypeStruct((T * B, D), jnp.float32),
        in_specs=[vmem] * (len(data) + len(weights)),
        out_specs=vmem,
    )(*data, *weights)
    return out.reshape(T, B, D)


def pack_params(p):
    """Pre-transpose to (in, out) layout, split per head, pack into few arrays."""
    D, H, Hd, FF = D_MODEL, NHEAD, HEAD_DIM, DIM_FF

    def qkv_w(w_in):                       # torch (3D, D) -> (3, H, D, Hd)
        w_io = w_in.T.reshape(D, 3, H, Hd)
        return jnp.transpose(w_io, (1, 2, 0, 3))

    def qkv_b(b_in):                       # (3D,) -> (3, H, Hd)
        return b_in.reshape(3, H, Hd)

    def out_w(w_out):                      # torch (D, D) -> (H, Hd, D)
        return w_out.T.reshape(H, Hd, D)

    w_qkv = jnp.stack([qkv_w(p["sa_w_in"]), qkv_w(p["ca_w_in"])]).reshape(2 * 3 * H, D, Hd)
    b_qkv = jnp.stack([qkv_b(p["sa_b_in"]), qkv_b(p["ca_b_in"])]).reshape(2 * 3 * H, Hd)
    w_out = jnp.stack([out_w(p["sa_w_out"]), out_w(p["ca_w_out"])]).reshape(2 * H, Hd, D)
    vec = jnp.stack([p["sa_b_out"], p["ca_b_out"], p["b2"],
                     p["g1"], p["be1"], p["g2"], p["be2"], p["g3"], p["be3"]])
    return {
        "w_qkv": w_qkv, "b_qkv": b_qkv, "w_out": w_out,
        "w1": p["w1"].T, "b1": p["b1"].reshape(1, FF), "w2": p["w2"].T,
        "vec": vec,
    }


def make_params(key):
    """Parameters in the native PyTorch layouts."""
    ks = jax.random.split(key, 12)
    s = 0.05
    D, FF = D_MODEL, DIM_FF
    return {
        "sa_w_in":  s * jax.random.normal(ks[0], (3 * D, D), jnp.float32),
        "sa_b_in":  s * jax.random.normal(ks[1], (3 * D,), jnp.float32),
        "sa_w_out": s * jax.random.normal(ks[2], (D, D), jnp.float32),
        "sa_b_out": s * jax.random.normal(ks[3], (D,), jnp.float32),
        "ca_w_in":  s * jax.random.normal(ks[4], (3 * D, D), jnp.float32),
        "ca_b_in":  s * jax.random.normal(ks[5], (3 * D,), jnp.float32),
        "ca_w_out": s * jax.random.normal(ks[6], (D, D), jnp.float32),
        "ca_b_out": s * jax.random.normal(ks[7], (D,), jnp.float32),
        "w1": s * jax.random.normal(ks[8], (FF, D), jnp.float32),
        "b1": s * jax.random.normal(ks[9], (FF,), jnp.float32),
        "w2": s * jax.random.normal(ks[10], (D, FF), jnp.float32),
        "b2": s * jax.random.normal(ks[11], (D,), jnp.float32),
        "g1": jnp.ones((D,), jnp.float32), "be1": jnp.zeros((D,), jnp.float32),
        "g2": jnp.ones((D,), jnp.float32), "be2": jnp.zeros((D,), jnp.float32),
        "g3": jnp.ones((D,), jnp.float32), "be3": jnp.zeros((D,), jnp.float32),
    }


def ref_layer(tgt, memory, query_pos, pos, p):
    """Pure-JAX reference mirroring the PyTorch module (validation only)."""
    def ln(x, g, b):
        mu = x.mean(-1, keepdims=True)
        var = ((x - mu) ** 2).mean(-1, keepdims=True)
        return (x - mu) / jnp.sqrt(var + EPS) * g + b

    def mha(xq, xk, xv, w_in, b_in, w_out, b_out):
        d = D_MODEL
        q = xq @ w_in[:d].T + b_in[:d]
        k = xk @ w_in[d:2 * d].T + b_in[d:2 * d]
        v = xv @ w_in[2 * d:].T + b_in[2 * d:]
        Lq, Bx, _ = q.shape
        Lk = k.shape[0]
        qh = q.reshape(Lq, Bx, NHEAD, HEAD_DIM) / math.sqrt(HEAD_DIM)
        kh = k.reshape(Lk, Bx, NHEAD, HEAD_DIM)
        vh = v.reshape(Lk, Bx, NHEAD, HEAD_DIM)
        s = jnp.einsum('qbhd,kbhd->bhqk', qh, kh)
        a = jax.nn.softmax(s, -1)
        o = jnp.einsum('bhqk,kbhd->qbhd', a, vh).reshape(Lq, Bx, d)
        return o @ w_out.T + b_out

    x = tgt
    qk = x + query_pos
    x = ln(x + mha(qk, qk, x, p['sa_w_in'], p['sa_b_in'], p['sa_w_out'], p['sa_b_out']),
           p['g1'], p['be1'])
    x = ln(x + mha(x + query_pos, memory + pos, memory,
                   p['ca_w_in'], p['ca_b_in'], p['ca_w_out'], p['ca_b_out']),
           p['g2'], p['be2'])
    h = jnp.maximum(x @ p['w1'].T + p['b1'], 0.0)
    x = ln(x + h @ p['w2'].T + p['b2'], p['g3'], p['be3'])
    return x


if __name__ == "__main__":
    key = jax.random.PRNGKey(0)
    k_p, k_t, k_m, k_qp, k_pp = jax.random.split(key, 5)

    T, S, B = 8, 8, 2
    tgt = jax.random.normal(k_t, (T, B, D_MODEL), jnp.float32)
    memory = jax.random.normal(k_m, (S, B, D_MODEL), jnp.float32)
    query_pos = jax.random.normal(k_qp, (T, B, D_MODEL), jnp.float32)
    pos = jax.random.normal(k_pp, (S, B, D_MODEL), jnp.float32)

    params = make_params(k_p)
    packed = pack_params(params)

    out = transformer_decoder_layer(tgt, memory, query_pos, pos, packed)
    out = jax.block_until_ready(out)

    ref = ref_layer(tgt, memory, query_pos, pos, params)
    assert out.shape == (T, B, D_MODEL)
    assert jnp.allclose(out, ref, atol=1e-4, rtol=1e-4), "kernel/reference mismatch"

    print("KERNEL_OK")
</pallas_src>

<mosaic_0001>
module attributes {stable_mosaic.version = 11 : i64} {
  func.func @decoder_layer_kernel(%arg0: memref<16x32xf32, #tpu.memory_space<vmem>>, %arg1: memref<16x32xf32, #tpu.memory_space<vmem>>, %arg2: memref<16x32xf32, #tpu.memory_space<vmem>>, %arg3: memref<16x32xf32, #tpu.memory_space<vmem>>, %arg4: memref<24x32x8xf32, #tpu.memory_space<vmem>>, %arg5: memref<24x8xf32, #tpu.memory_space<vmem>>, %arg6: memref<8x8x32xf32, #tpu.memory_space<vmem>>, %arg7: memref<32x64xf32, #tpu.memory_space<vmem>>, %arg8: memref<1x64xf32, #tpu.memory_space<vmem>>, %arg9: memref<64x32xf32, #tpu.memory_space<vmem>>, %arg10: memref<9x32xf32, #tpu.memory_space<vmem>>, %arg11: memref<16x32xf32, #tpu.memory_space<vmem>>) attributes {dimension_semantics = [], scalar_prefetch = 0 : i64, scratch_operands = 0 : i64, tpu.core_type = #tpu.core_type<tc>} {
    %c0 = arith.constant 0 : index
    %c0_0 = arith.constant 0 : index
    %0 = vector.load %arg0[%c0, %c0_0] : memref<16x32xf32, #tpu.memory_space<vmem>>, vector<16x32xf32>
    %c0_1 = arith.constant 0 : index
    %c0_2 = arith.constant 0 : index
    %1 = vector.load %arg1[%c0_1, %c0_2] : memref<16x32xf32, #tpu.memory_space<vmem>>, vector<16x32xf32>
    %c0_3 = arith.constant 0 : index
    %c0_4 = arith.constant 0 : index
    %2 = vector.load %arg2[%c0_3, %c0_4] : memref<16x32xf32, #tpu.memory_space<vmem>>, vector<16x32xf32>
    %c0_5 = arith.constant 0 : index
    %c0_6 = arith.constant 0 : index
    %3 = vector.load %arg3[%c0_5, %c0_6] : memref<16x32xf32, #tpu.memory_space<vmem>>, vector<16x32xf32>
    %4 = tpu.iota {dimensions = array<i32: 0>} : vector<16x16xi32>
    %c2_i32 = arith.constant 2 : i32
    %c0_i32 = arith.constant 0 : i32
    %5 = arith.cmpi eq, %c2_i32, %c0_i32 : i32
    %c1_i32 = arith.constant 1 : i32
    %6 = arith.select %5, %c1_i32, %c2_i32 : i32
    %7 = vector.broadcast %6 : i32 to vector<16x16xi32>
    %8 = arith.remsi %4, %7 : vector<16x16xi32>
    %c0_i32_7 = arith.constant 0 : i32
    %9 = vector.broadcast %c0_i32_7 : i32 to vector<16x16xi32>
    %10 = arith.cmpi ne, %8, %9 : vector<16x16xi32>
    %c0_i32_8 = arith.constant 0 : i32
    %11 = vector.broadcast %c0_i32_8 : i32 to vector<16x16xi32>
    %12 = arith.cmpi slt, %8, %11 : vector<16x16xi32>
    %c0_i32_9 = arith.constant 0 : i32
    %13 = arith.cmpi slt, %6, %c0_i32_9 : i32
    %14 = vector.broadcast %13 : i1 to vector<16x16xi1>
    %15 = vector.broadcast %14 : vector<16x16xi1> to vector<16x16xi1>
    %16 = arith.xori %12, %15 : vector<16x16xi1>
    %17 = arith.andi %16, %10 : vector<16x16xi1>
    %18 = vector.broadcast %6 : i32 to vector<16x16xi32>
    %19 = arith.addi %8, %18 : vector<16x16xi32>
    %20 = arith.select %17, %19, %8 : vector<16x16xi1>, vector<16x16xi32>
    %21 = tpu.iota {dimensions = array<i32: 1>} : vector<16x16xi32>
    %c2_i32_10 = arith.constant 2 : i32
    %c0_i32_11 = arith.constant 0 : i32
    %22 = arith.cmpi eq, %c2_i32_10, %c0_i32_11 : i32
    %c1_i32_12 = arith.constant 1 : i32
    %23 = arith.select %22, %c1_i32_12, %c2_i32_10 : i32
    %24 = vector.broadcast %23 : i32 to vector<16x16xi32>
    %25 = arith.remsi %21, %24 : vector<16x16xi32>
    %c0_i32_13 = arith.constant 0 : i32
    %26 = vector.broadcast %c0_i32_13 : i32 to vector<16x16xi32>
    %27 = arith.cmpi ne, %25, %26 : vector<16x16xi32>
    %c0_i32_14 = arith.constant 0 : i32
    %28 = vector.broadcast %c0_i32_14 : i32 to vector<16x16xi32>
    %29 = arith.cmpi slt, %25, %28 : vector<16x16xi32>
    %c0_i32_15 = arith.constant 0 : i32
    %30 = arith.cmpi slt, %23, %c0_i32_15 : i32
    %31 = vector.broadcast %30 : i1 to vector<16x16xi1>
    %32 = vector.broadcast %31 : vector<16x16xi1> to vector<16x16xi1>
    %33 = arith.xori %29, %32 : vector<16x16xi1>
    %34 = arith.andi %33, %27 : vector<16x16xi1>
    %35 = vector.broadcast %23 : i32 to vector<16x16xi32>
    %36 = arith.addi %25, %35 : vector<16x16xi32>
    %37 = arith.select %34, %36, %25 : vector<16x16xi1>, vector<16x16xi32>
    %38 = arith.cmpi eq, %20, %37 : vector<16x16xi32>
    %39 = tpu.iota {dimensions = array<i32: 0>} : vector<16x16xi32>
    %c2_i32_16 = arith.constant 2 : i32
    %c0_i32_17 = arith.constant 0 : i32
    %40 = arith.cmpi eq, %c2_i32_16, %c0_i32_17 : i32
    %c1_i32_18 = arith.constant 1 : i32
    %41 = arith.select %40, %c1_i32_18, %c2_i32_16 : i32
    %42 = vector.broadcast %41 : i32 to vector<16x16xi32>
    %43 = arith.remsi %39, %42 : vector<16x16xi32>
    %c0_i32_19 = arith.constant 0 : i32
    %44 = vector.broadcast %c0_i32_19 : i32 to vector<16x16xi32>
    %45 = arith.cmpi ne, %43, %44 : vector<16x16xi32>
    %c0_i32_20 = arith.constant 0 : i32
    %46 = vector.broadcast %c0_i32_20 : i32 to vector<16x16xi32>
    %47 = arith.cmpi slt, %43, %46 : vector<16x16xi32>
    %c0_i32_21 = arith.constant 0 : i32
    %48 = arith.cmpi slt, %41, %c0_i32_21 : i32
    %49 = vector.broadcast %48 : i1 to vector<16x16xi1>
    %50 = vector.broadcast %49 : vector<16x16xi1> to vector<16x16xi1>
    %51 = arith.xori %47, %50 : vector<16x16xi1>
    %52 = arith.andi %51, %45 : vector<16x16xi1>
    %53 = vector.broadcast %41 : i32 to vector<16x16xi32>
    %54 = arith.addi %43, %53 : vector<16x16xi32>
    %55 = arith.select %52, %54, %43 : vector<16x16xi1>, vector<16x16xi32>
    %56 = tpu.iota {dimensions = array<i32: 1>} : vector<16x16xi32>
    %c2_i32_22 = arith.constant 2 : i32
    %c0_i32_23 = arith.constant 0 : i32
    %57 = arith.cmpi eq, %c2_i32_22, %c0_i32_23 : i32
    %c1_i32_24 = arith.constant 1 : i32
    %58 = arith.select %57, %c1_i32_24, %c2_i32_22 : i32
    %59 = vector.broadcast %58 : i32 to vector<16x16xi32>
    %60 = arith.remsi %56, %59 : vector<16x16xi32>
    %c0_i32_25 = arith.constant 0 : i32
    %61 = vector.broadcast %c0_i32_25 : i32 to vector<16x16xi32>
    %62 = arith.cmpi ne, %60, %61 : vector<16x16xi32>
    %c0_i32_26 = arith.constant 0 : i32
    %63 = vector.broadcast %c0_i32_26 : i32 to vector<16x16xi32>
    %64 = arith.cmpi slt, %60, %63 : vector<16x16xi32>
    %c0_i32_27 = arith.constant 0 : i32
    %65 = arith.cmpi slt, %58, %c0_i32_27 : i32
    %66 = vector.broadcast %65 : i1 to vector<16x16xi1>
    %67 = vector.broadcast %66 : vector<16x16xi1> to vector<16x16xi1>
    %68 = arith.xori %64, %67 : vector<16x16xi1>
    %69 = arith.andi %68, %62 : vector<16x16xi1>
    %70 = vector.broadcast %58 : i32 to vector<16x16xi32>
    %71 = arith.addi %60, %70 : vector<16x16xi32>
    %72 = arith.select %69, %71, %60 : vector<16x16xi1>, vector<16x16xi32>
    %73 = arith.cmpi eq, %55, %72 : vector<16x16xi32>
    %74 = arith.addf %0, %2 : vector<16x32xf32>
    %cst = arith.constant 0.000000e+00 : f32
    %75 = vector.broadcast %cst : f32 to vector<16x32xf32>
    %c0_28 = arith.constant 0 : index
    %c0_29 = arith.constant 0 : index
    %c0_30 = arith.constant 0 : index
    %76 = vector.load %arg4[%c0_28, %c0_29, %c0_30] : memref<24x32x8xf32, #tpu.memory_space<vmem>>, vector<1x32x8xf32>
    %77 = vector.shape_cast %76 : vector<1x32x8xf32> to vector<32x8xf32>
    %cst_31 = arith.constant dense<0.000000e+00> : vector<16x8xf32>
    %78 = tpu.matmul %74, %77, %cst_31 {dimension_numbers = #tpu.dot_dimension_numbers<[1], [0], [0], [1], [0, 0, 1, 1], [], []>} : vector<16x32xf32>, vector<32x8xf32>, vector<16x8xf32> -> vector<16x8xf32>
    %c0_32 = arith.constant 0 : index
    %c0_33 = arith.constant 0 : index
    %79 = vector.load %arg5[%c0_32, %c0_33] : memref<24x8xf32, #tpu.memory_space<vmem>>, vector<1x8xf32>
    %80 = vector.broadcast %79 : vector<1x8xf32> to vector<16x8xf32>
    %81 = arith.addf %78, %80 : vector<16x8xf32>
    %c4 = arith.constant 4 : index
    %c0_34 = arith.constant 0 : index
    %c0_35 = arith.constant 0 : index
    %82 = vector.load %arg4[%c4, %c0_34, %c0_35] : memref<24x32x8xf32, #tpu.memory_space<vmem>>, vector<1x32x8xf32>
    %83 = vector.shape_cast %82 : vector<1x32x8xf32> to vector<32x8xf32>
    %cst_36 = arith.constant dense<0.000000e+00> : vector<16x8xf32>
    %84 = tpu.matmul %74, %83, %cst_36 {dimension_numbers = #tpu.dot_dimension_numbers<[1], [0], [0], [1], [0, 0, 1, 1], [], []>} : vector<16x32xf32>, vector<32x8xf32>, vector<16x8xf32> -> vector<16x8xf32>
    %c4_37 = arith.constant 4 : index
    %c0_38 = arith.constant 0 : index
    %85 = vector.load %arg5[%c4_37, %c0_38] : memref<24x8xf32, #tpu.memory_space<vmem>>, vector<1x8xf32>
    %86 = vector.broadcast %85 : vector<1x8xf32> to vector<16x8xf32>
    %87 = arith.addf %84, %86 : vector<16x8xf32>
    %c8 = arith.constant 8 : index
    %c0_39 = arith.constant 0 : index
    %c0_40 = arith.constant 0 : index
    %88 = vector.load %arg4[%c8, %c0_39, %c0_40] : memref<24x32x8xf32, #tpu.memory_space<vmem>>, vector<1x32x8xf32>
    %89 = vector.shape_cast %88 : vector<1x32x8xf32> to vector<32x8xf32>
    %cst_41 = arith.constant dense<0.000000e+00> : vector<16x8xf32>
    %90 = tpu.matmul %0, %89, %cst_41 {dimension_numbers = #tpu.dot_dimension_numbers<[1], [0], [0], [1], [0, 0, 1, 1], [], []>} : vector<16x32xf32>, vector<32x8xf32>, vector<16x8xf32> -> vector<16x8xf32>
    %c8_42 = arith.constant 8 : index
    %c0_43 = arith.constant 0 : index
    %91 = vector.load %arg5[%c8_42, %c0_43] : memref<24x8xf32, #tpu.memory_space<vmem>>, vector<1x8xf32>
    %92 = vector.broadcast %91 : vector<1x8xf32> to vector<16x8xf32>
    %93 = arith.addf %90, %92 : vector<16x8xf32>
    %cst_44 = arith.constant 0.353553385 : f32
    %94 = vector.broadcast %cst_44 : f32 to vector<16x8xf32>
    %95 = arith.mulf %81, %94 : vector<16x8xf32>
    %cst_45 = arith.constant dense<0.000000e+00> : vector<16x16xf32>
    %96 = tpu.matmul %95, %87, %cst_45 {dimension_numbers = #tpu.dot_dimension_numbers<[1], [1], [0], [0], [0, 0, 1, 0], [], []>} : vector<16x8xf32>, vector<16x8xf32>, vector<16x16xf32> -> vector<16x16xf32>
    %cst_46 = arith.constant -1.000000e+30 : f32
    %97 = vector.broadcast %cst_46 : f32 to vector<16x16xf32>
    %98 = arith.select %38, %96, %97 : vector<16x16xi1>, vector<16x16xf32>
    %cst_47 = arith.constant dense<0xFF800000> : vector<16xf32>
    %99 = vector.multi_reduction <maximumf>, %98, %cst_47 [1] : vector<16x16xf32> to vector<16xf32>
    %100 = vector.shape_cast %99 : vector<16xf32> to vector<16x1xf32>
    %101 = vector.broadcast %100 : vector<16x1xf32> to vector<16x16xf32>
    %102 = arith.subf %98, %101 : vector<16x16xf32>
    %103 = math.exp %102 : vector<16x16xf32>
    %cst_48 = arith.constant dense<0.000000e+00> : vector<16xf32>
    %104 = vector.multi_reduction <add>, %103, %cst_48 [1] : vector<16x16xf32> to vector<16xf32>
    %105 = vector.shape_cast %104 : vector<16xf32> to vector<16x1xf32>
    %106 = tpu.reciprocal %105 : vector<16x1xf32> -> vector<16x1xf32>
    %cst_49 = arith.constant dense<0.000000e+00> : vector<16x8xf32>
    %107 = tpu.matmul %103, %93, %cst_49 {dimension_numbers = #tpu.dot_dimension_numbers<[1], [0], [0], [1], [0, 0, 1, 1], [], []>} : vector<16x16xf32>, vector<16x8xf32>, vector<16x8xf32> -> vector<16x8xf32>
    %108 = vector.broadcast %106 : vector<16x1xf32> to vector<16x8xf32>
    %109 = arith.mulf %107, %108 : vector<16x8xf32>
    %c0_50 = arith.constant 0 : index
    %c0_51 = arith.constant 0 : index
    %c0_52 = arith.constant 0 : index
    %110 = vector.load %arg6[%c0_50, %c0_51, %c0_52] : memref<8x8x32xf32, #tpu.memory_space<vmem>>, vector<1x8x32xf32>
    %111 = vector.shape_cast %110 : vector<1x8x32xf32> to vector<8x32xf32>
    %cst_53 = arith.constant dense<0.000000e+00> : vector<16x32xf32>
    %112 = tpu.matmul %109, %111, %cst_53 {dimension_numbers = #tpu.dot_dimension_numbers<[1], [0], [0], [1], [0, 0, 1, 1], [], []>} : vector<16x8xf32>, vector<8x32xf32>, vector<16x32xf32> -> vector<16x32xf32>
    %113 = arith.addf %75, %112 : vector<16x32xf32>
    %c1 = arith.constant 1 : index
    %c0_54 = arith.constant 0 : index
    %c0_55 = arith.constant 0 : index
    %114 = vector.load %arg4[%c1, %c0_54, %c0_55] : memref<24x32x8xf32, #tpu.memory_space<vmem>>, vector<1x32x8xf32>
    %115 = vector.shape_cast %114 : vector<1x32x8xf32> to vector<32x8xf32>
    %cst_56 = arith.constant dense<0.000000e+00> : vector<16x8xf32>
    %116 = tpu.matmul %74, %115, %cst_56 {dimension_numbers = #tpu.dot_dimension_numbers<[1], [0], [0], [1], [0, 0, 1, 1], [], []>} : vector<16x32xf32>, vector<32x8xf32>, vector<16x8xf32> -> vector<16x8xf32>
    %c1_57 = arith.constant 1 : index
    %c0_58 = arith.constant 0 : index
    %117 = vector.load %arg5[%c1_57, %c0_58] : memref<24x8xf32, #tpu.memory_space<vmem>>, vector<1x8xf32>
    %118 = vector.broadcast %117 : vector<1x8xf32> to vector<16x8xf32>
    %119 = arith.addf %116, %118 : vector<16x8xf32>
    %c5 = arith.constant 5 : index
    %c0_59 = arith.constant 0 : index
    %c0_60 = arith.constant 0 : index
    %120 = vector.load %arg4[%c5, %c0_59, %c0_60] : memref<24x32x8xf32, #tpu.memory_space<vmem>>, vector<1x32x8xf32>
    %121 = vector.shape_cast %120 : vector<1x32x8xf32> to vector<32x8xf32>
    %cst_61 = arith.constant dense<0.000000e+00> : vector<16x8xf32>
    %122 = tpu.matmul %74, %121, %cst_61 {dimension_numbers = #tpu.dot_dimension_numbers<[1], [0], [0], [1], [0, 0, 1, 1], [], []>} : vector<16x32xf32>, vector<32x8xf32>, vector<16x8xf32> -> vector<16x8xf32>
    %c5_62 = arith.constant 5 : index
    %c0_63 = arith.constant 0 : index
    %123 = vector.load %arg5[%c5_62, %c0_63] : memref<24x8xf32, #tpu.memory_space<vmem>>, vector<1x8xf32>
    %124 = vector.broadcast %123 : vector<1x8xf32> to vector<16x8xf32>
    %125 = arith.addf %122, %124 : vector<16x8xf32>
    %c9 = arith.constant 9 : index
    %c0_64 = arith.constant 0 : index
    %c0_65 = arith.constant 0 : index
    %126 = vector.load %arg4[%c9, %c0_64, %c0_65] : memref<24x32x8xf32, #tpu.memory_space<vmem>>, vector<1x32x8xf32>
    %127 = vector.shape_cast %126 : vector<1x32x8xf32> to vector<32x8xf32>
    %cst_66 = arith.constant dense<0.000000e+00> : vector<16x8xf32>
    %128 = tpu.matmul %0, %127, %cst_66 {dimension_numbers = #tpu.dot_dimension_numbers<[1], [0], [0], [1], [0, 0, 1, 1], [], []>} : vector<16x32xf32>, vector<32x8xf32>, vector<16x8xf32> -> vector<16x8xf32>
    %c9_67 = arith.constant 9 : index
    %c0_68 = arith.constant 0 : index
    %129 = vector.load %arg5[%c9_67, %c0_68] : memref<24x8xf32, #tpu.memory_space<vmem>>, vector<1x8xf32>
    %130 = vector.broadcast %129 : vector<1x8xf32> to vector<16x8xf32>
    %131 = arith.addf %128, %130 : vector<16x8xf32>
    %cst_69 = arith.constant 0.353553385 : f32
    %132 = vector.broadcast %cst_69 : f32 to vector<16x8xf32>
    %133 = arith.mulf %119, %132 : vector<16x8xf32>
    %cst_70 = arith.constant dense<0.000000e+00> : vector<16x16xf32>
    %134 = tpu.matmul %133, %125, %cst_70 {dimension_numbers = #tpu.dot_dimension_numbers<[1], [1], [0], [0], [0, 0, 1, 0], [], []>} : vector<16x8xf32>, vector<16x8xf32>, vector<16x16xf32> -> vector<16x16xf32>
    %cst_71 = arith.constant -1.000000e+30 : f32
    %135 = vector.broadcast %cst_71 : f32 to vector<16x16xf32>
    %136 = arith.select %38, %134, %135 : vector<16x16xi1>, vector<16x16xf32>
    %cst_72 = arith.constant dense<0xFF800000> : vector<16xf32>
    %137 = vector.multi_reduction <maximumf>, %136, %cst_72 [1] : vector<16x16xf32> to vector<16xf32>
    %138 = vector.shape_cast %137 : vector<16xf32> to vector<16x1xf32>
    %139 = vector.broadcast %138 : vector<16x1xf32> to vector<16x16xf32>
    %140 = arith.subf %136, %139 : vector<16x16xf32>
    %141 = math.exp %140 : vector<16x16xf32>
    %cst_73 = arith.constant dense<0.000000e+00> : vector<16xf32>
    %142 = vector.multi_reduction <add>, %141, %cst_73 [1] : vector<16x16xf32> to vector<16xf32>
    %143 = vector.shape_cast %142 : vector<16xf32> to vector<16x1xf32>
    %144 = tpu.reciprocal %143 : vector<16x1xf32> -> vector<16x1xf32>
    %cst_74 = arith.constant dense<0.000000e+00> : vector<16x8xf32>
    %145 = tpu.matmul %141, %131, %cst_74 {dimension_numbers = #tpu.dot_dimension_numbers<[1], [0], [0], [1], [0, 0, 1, 1], [], []>} : vector<16x16xf32>, vector<16x8xf32>, vector<16x8xf32> -> vector<16x8xf32>
    %146 = vector.broadcast %144 : vector<16x1xf32> to vector<16x8xf32>
    %147 = arith.mulf %145, %146 : vector<16x8xf32>
    %c1_75 = arith.constant 1 : index
    %c0_76 = arith.constant 0 : index
    %c0_77 = arith.constant 0 : index
    %148 = vector.load %arg6[%c1_75, %c0_76, %c0_77] : memref<8x8x32xf32, #tpu.memory_space<vmem>>, vector<1x8x32xf32>
    %149 = vector.shape_cast %148 : vector<1x8x32xf32> to vector<8x32xf32>
    %cst_78 = arith.constant dense<0.000000e+00> : vector<16x32xf32>
    %150 = tpu.matmul %147, %149, %cst_78 {dimension_numbers = #tpu.dot_dimension_numbers<[1], [0], [0], [1], [0, 0, 1, 1], [], []>} : vector<16x8xf32>, vector<8x32xf32>, vector<16x32xf32> -> vector<16x32xf32>
    %151 = arith.addf %113, %150 : vector<16x32xf32>
    %c2 = arith.constant 2 : index
    %c0_79 = arith.constant 0 : index
    %c0_80 = arith.constant 0 : index
    %152 = vector.load %arg4[%c2, %c0_79, %c0_80] : memref<24x32x8xf32, #tpu.memory_space<vmem>>, vector<1x32x8xf32>
    %153 = vector.shape_cast %152 : vector<1x32x8xf32> to vector<32x8xf32>
    %cst_81 = arith.constant dense<0.000000e+00> : vector<16x8xf32>
    %154 = tpu.matmul %74, %153, %cst_81 {dimension_numbers = #tpu.dot_dimension_numbers<[1], [0], [0], [1], [0, 0, 1, 1], [], []>} : vector<16x32xf32>, vector<32x8xf32>, vector<16x8xf32> -> vector<16x8xf32>
    %c2_82 = arith.constant 2 : index
    %c0_83 = arith.constant 0 : index
    %155 = vector.load %arg5[%c2_82, %c0_83] : memref<24x8xf32, #tpu.memory_space<vmem>>, vector<1x8xf32>
    %156 = vector.broadcast %155 : vector<1x8xf32> to vector<16x8xf32>
    %157 = arith.addf %154, %156 : vector<16x8xf32>
    %c6 = arith.constant 6 : index
    %c0_84 = arith.constant 0 : index
    %c0_85 = arith.constant 0 : index
    %158 = vector.load %arg4[%c6, %c0_84, %c0_85] : memref<24x32x8xf32, #tpu.memory_space<vmem>>, vector<1x32x8xf32>
    %159 = vector.shape_cast %158 : vector<1x32x8xf32> to vector<32x8xf32>
    %cst_86 = arith.constant dense<0.000000e+00> : vector<16x8xf32>
    %160 = tpu.matmul %74, %159, %cst_86 {dimension_numbers = #tpu.dot_dimension_numbers<[1], [0], [0], [1], [0, 0, 1, 1], [], []>} : vector<16x32xf32>, vector<32x8xf32>, vector<16x8xf32> -> vector<16x8xf32>
    %c6_87 = arith.constant 6 : index
    %c0_88 = arith.constant 0 : index
    %161 = vector.load %arg5[%c6_87, %c0_88] : memref<24x8xf32, #tpu.memory_space<vmem>>, vector<1x8xf32>
    %162 = vector.broadcast %161 : vector<1x8xf32> to vector<16x8xf32>
    %163 = arith.addf %160, %162 : vector<16x8xf32>
    %c10 = arith.constant 10 : index
    %c0_89 = arith.constant 0 : index
    %c0_90 = arith.constant 0 : index
    %164 = vector.load %arg4[%c10, %c0_89, %c0_90] : memref<24x32x8xf32, #tpu.memory_space<vmem>>, vector<1x32x8xf32>
    %165 = vector.shape_cast %164 : vector<1x32x8xf32> to vector<32x8xf32>
    %cst_91 = arith.constant dense<0.000000e+00> : vector<16x8xf32>
    %166 = tpu.matmul %0, %165, %cst_91 {dimension_numbers = #tpu.dot_dimension_numbers<[1], [0], [0], [1], [0, 0, 1, 1], [], []>} : vector<16x32xf32>, vector<32x8xf32>, vector<16x8xf32> -> vector<16x8xf32>
    %c10_92 = arith.constant 10 : index
    %c0_93 = arith.constant 0 : index
    %167 = vector.load %arg5[%c10_92, %c0_93] : memref<24x8xf32, #tpu.memory_space<vmem>>, vector<1x8xf32>
    %168 = vector.broadcast %167 : vector<1x8xf32> to vector<16x8xf32>
    %169 = arith.addf %166, %168 : vector<16x8xf32>
    %cst_94 = arith.constant 0.353553385 : f32
    %170 = vector.broadcast %cst_94 : f32 to vector<16x8xf32>
    %171 = arith.mulf %157, %170 : vector<16x8xf32>
    %cst_95 = arith.constant dense<0.000000e+00> : vector<16x16xf32>
    %172 = tpu.matmul %171, %163, %cst_95 {dimension_numbers = #tpu.dot_dimension_numbers<[1], [1], [0], [0], [0, 0, 1, 0], [], []>} : vector<16x8xf32>, vector<16x8xf32>, vector<16x16xf32> -> vector<16x16xf32>
    %cst_96 = arith.constant -1.000000e+30 : f32
    %173 = vector.broadcast %cst_96 : f32 to vector<16x16xf32>
    %174 = arith.select %38, %172, %173 : vector<16x16xi1>, vector<16x16xf32>
    %cst_97 = arith.constant dense<0xFF800000> : vector<16xf32>
    %175 = vector.multi_reduction <maximumf>, %174, %cst_97 [1] : vector<16x16xf32> to vector<16xf32>
    %176 = vector.shape_cast %175 : vector<16xf32> to vector<16x1xf32>
    %177 = vector.broadcast %176 : vector<16x1xf32> to vector<16x16xf32>
    %178 = arith.subf %174, %177 : vector<16x16xf32>
    %179 = math.exp %178 : vector<16x16xf32>
    %cst_98 = arith.constant dense<0.000000e+00> : vector<16xf32>
    %180 = vector.multi_reduction <add>, %179, %cst_98 [1] : vector<16x16xf32> to vector<16xf32>
    %181 = vector.shape_cast %180 : vector<16xf32> to vector<16x1xf32>
    %182 = tpu.reciprocal %181 : vector<16x1xf32> -> vector<16x1xf32>
    %cst_99 = arith.constant dense<0.000000e+00> : vector<16x8xf32>
    %183 = tpu.matmul %179, %169, %cst_99 {dimension_numbers = #tpu.dot_dimension_numbers<[1], [0], [0], [1], [0, 0, 1, 1], [], []>} : vector<16x16xf32>, vector<16x8xf32>, vector<16x8xf32> -> vector<16x8xf32>
    %184 = vector.broadcast %182 : vector<16x1xf32> to vector<16x8xf32>
    %185 = arith.mulf %183, %184 : vector<16x8xf32>
    %c2_100 = arith.constant 2 : index
    %c0_101 = arith.constant 0 : index
    %c0_102 = arith.constant 0 : index
    %186 = vector.load %arg6[%c2_100, %c0_101, %c0_102] : memref<8x8x32xf32, #tpu.memory_space<vmem>>, vector<1x8x32xf32>
    %187 = vector.shape_cast %186 : vector<1x8x32xf32> to vector<8x32xf32>
    %cst_103 = arith.constant dense<0.000000e+00> : vector<16x32xf32>
    %188 = tpu.matmul %185, %187, %cst_103 {dimension_numbers = #tpu.dot_dimension_numbers<[1], [0], [0], [1], [0, 0, 1, 1], [], []>} : vector<16x8xf32>, vector<8x32xf32>, vector<16x32xf32> -> vector<16x32xf32>
    %189 = arith.addf %151, %188 : vector<16x32xf32>
    %c3 = arith.constant 3 : index
    %c0_104 = arith.constant 0 : index
    %c0_105 = arith.constant 0 : index
    %190 = vector.load %arg4[%c3, %c0_104, %c0_105] : memref<24x32x8xf32, #tpu.memory_space<vmem>>, vector<1x32x8xf32>
    %191 = vector.shape_cast %190 : vector<1x32x8xf32> to vector<32x8xf32>
    %cst_106 = arith.constant dense<0.000000e+00> : vector<16x8xf32>
    %192 = tpu.matmul %74, %191, %cst_106 {dimension_numbers = #tpu.dot_dimension_numbers<[1], [0], [0], [1], [0, 0, 1, 1], [], []>} : vector<16x32xf32>, vector<32x8xf32>, vector<16x8xf32> -> vector<16x8xf32>
    %c3_107 = arith.constant 3 : index
    %c0_108 = arith.constant 0 : index
    %193 = vector.load %arg5[%c3_107, %c0_108] : memref<24x8xf32, #tpu.memory_space<vmem>>, vector<1x8xf32>
    %194 = vector.broadcast %193 : vector<1x8xf32> to vector<16x8xf32>
    %195 = arith.addf %192, %194 : vector<16x8xf32>
    %c7 = arith.constant 7 : index
    %c0_109 = arith.constant 0 : index
    %c0_110 = arith.constant 0 : index
    %196 = vector.load %arg4[%c7, %c0_109, %c0_110] : memref<24x32x8xf32, #tpu.memory_space<vmem>>, vector<1x32x8xf32>
    %197 = vector.shape_cast %196 : vector<1x32x8xf32> to vector<32x8xf32>
    %cst_111 = arith.constant dense<0.000000e+00> : vector<16x8xf32>
    %198 = tpu.matmul %74, %197, %cst_111 {dimension_numbers = #tpu.dot_dimension_numbers<[1], [0], [0], [1], [0, 0, 1, 1], [], []>} : vector<16x32xf32>, vector<32x8xf32>, vector<16x8xf32> -> vector<16x8xf32>
    %c7_112 = arith.constant 7 : index
    %c0_113 = arith.constant 0 : index
    %199 = vector.load %arg5[%c7_112, %c0_113] : memref<24x8xf32, #tpu.memory_space<vmem>>, vector<1x8xf32>
    %200 = vector.broadcast %199 : vector<1x8xf32> to vector<16x8xf32>
    %201 = arith.addf %198, %200 : vector<16x8xf32>
    %c11 = arith.constant 11 : index
    %c0_114 = arith.constant 0 : index
    %c0_115 = arith.constant 0 : index
    %202 = vector.load %arg4[%c11, %c0_114, %c0_115] : memref<24x32x8xf32, #tpu.memory_space<vmem>>, vector<1x32x8xf32>
    %203 = vector.shape_cast %202 : vector<1x32x8xf32> to vector<32x8xf32>
    %cst_116 = arith.constant dense<0.000000e+00> : vector<16x8xf32>
    %204 = tpu.matmul %0, %203, %cst_116 {dimension_numbers = #tpu.dot_dimension_numbers<[1], [0], [0], [1], [0, 0, 1, 1], [], []>} : vector<16x32xf32>, vector<32x8xf32>, vector<16x8xf32> -> vector<16x8xf32>
    %c11_117 = arith.constant 11 : index
    %c0_118 = arith.constant 0 : index
    %205 = vector.load %arg5[%c11_117, %c0_118] : memref<24x8xf32, #tpu.memory_space<vmem>>, vector<1x8xf32>
    %206 = vector.broadcast %205 : vector<1x8xf32> to vector<16x8xf32>
    %207 = arith.addf %204, %206 : vector<16x8xf32>
    %cst_119 = arith.constant 0.353553385 : f32
    %208 = vector.broadcast %cst_119 : f32 to vector<16x8xf32>
    %209 = arith.mulf %195, %208 : vector<16x8xf32>
    %cst_120 = arith.constant dense<0.000000e+00> : vector<16x16xf32>
    %210 = tpu.matmul %209, %201, %cst_120 {dimension_numbers = #tpu.dot_dimension_numbers<[1], [1], [0], [0], [0, 0, 1, 0], [], []>} : vector<16x8xf32>, vector<16x8xf32>, vector<16x16xf32> -> vector<16x16xf32>
    %cst_121 = arith.constant -1.000000e+30 : f32
    %211 = vector.broadcast %cst_121 : f32 to vector<16x16xf32>
    %212 = arith.select %38, %210, %211 : vector<16x16xi1>, vector<16x16xf32>
    %cst_122 = arith.constant dense<0xFF800000> : vector<16xf32>
    %213 = vector.multi_reduction <maximumf>, %212, %cst_122 [1] : vector<16x16xf32> to vector<16xf32>
    %214 = vector.shape_cast %213 : vector<16xf32> to vector<16x1xf32>
    %215 = vector.broadcast %214 : vector<16x1xf32> to vector<16x16xf32>
    %216 = arith.subf %212, %215 : vector<16x16xf32>
    %217 = math.exp %216 : vector<16x16xf32>
    %cst_123 = arith.constant dense<0.000000e+00> : vector<16xf32>
    %218 = vector.multi_reduction <add>, %217, %cst_123 [1] : vector<16x16xf32> to vector<16xf32>
    %219 = vector.shape_cast %218 : vector<16xf32> to vector<16x1xf32>
    %220 = tpu.reciprocal %219 : vector<16x1xf32> -> vector<16x1xf32>
    %cst_124 = arith.constant dense<0.000000e+00> : vector<16x8xf32>
    %221 = tpu.matmul %217, %207, %cst_124 {dimension_numbers = #tpu.dot_dimension_numbers<[1], [0], [0], [1], [0, 0, 1, 1], [], []>} : vector<16x16xf32>, vector<16x8xf32>, vector<16x8xf32> -> vector<16x8xf32>
    %222 = vector.broadcast %220 : vector<16x1xf32> to vector<16x8xf32>
    %223 = arith.mulf %221, %222 : vector<16x8xf32>
    %c3_125 = arith.constant 3 : index
    %c0_126 = arith.constant 0 : index
    %c0_127 = arith.constant 0 : index
    %224 = vector.load %arg6[%c3_125, %c0_126, %c0_127] : memref<8x8x32xf32, #tpu.memory_space<vmem>>, vector<1x8x32xf32>
    %225 = vector.shape_cast %224 : vector<1x8x32xf32> to vector<8x32xf32>
    %cst_128 = arith.constant dense<0.000000e+00> : vector<16x32xf32>
    %226 = tpu.matmul %223, %225, %cst_128 {dimension_numbers = #tpu.dot_dimension_numbers<[1], [0], [0], [1], [0, 0, 1, 1], [], []>} : vector<16x8xf32>, vector<8x32xf32>, vector<16x32xf32> -> vector<16x32xf32>
    %227 = arith.addf %189, %226 : vector<16x32xf32>
    %c0_129 = arith.constant 0 : index
    %c0_130 = arith.constant 0 : index
    %228 = vector.load %arg10[%c0_129, %c0_130] : memref<9x32xf32, #tpu.memory_space<vmem>>, vector<1x32xf32>
    %229 = vector.broadcast %228 : vector<1x32xf32> to vector<16x32xf32>
    %230 = arith.addf %227, %229 : vector<16x32xf32>
    %231 = arith.addf %0, %230 : vector<16x32xf32>
    %c3_131 = arith.constant 3 : index
    %c0_132 = arith.constant 0 : index
    %232 = vector.load %arg10[%c3_131, %c0_132] : memref<9x32xf32, #tpu.memory_space<vmem>>, vector<1x32xf32>
    %c4_133 = arith.constant 4 : index
    %c0_134 = arith.constant 0 : index
    %233 = vector.load %arg10[%c4_133, %c0_134] : memref<9x32xf32, #tpu.memory_space<vmem>>, vector<1x32xf32>
    %cst_135 = arith.constant dense<0.000000e+00> : vector<16xf32>
    %234 = vector.multi_reduction <add>, %231, %cst_135 [1] : vector<16x32xf32> to vector<16xf32>
    %235 = vector.shape_cast %234 : vector<16xf32> to vector<16x1xf32>
    %cst_136 = arith.constant 3.200000e+01 : f32
    %236 = vector.broadcast %cst_136 : f32 to vector<16x1xf32>
    %237 = arith.divf %235, %236 : vector<16x1xf32>
    %238 = vector.broadcast %237 : vector<16x1xf32> to vector<16x32xf32>
    %239 = arith.subf %231, %238 : vector<16x32xf32>
    %240 = arith.mulf %239, %239 : vector<16x32xf32>
    %cst_137 = arith.constant dense<0.000000e+00> : vector<16xf32>
    %241 = vector.multi_reduction <add>, %240, %cst_137 [1] : vector<16x32xf32> to vector<16xf32>
    %242 = vector.shape_cast %241 : vector<16xf32> to vector<16x1xf32>
    %cst_138 = arith.constant 3.200000e+01 : f32
    %243 = vector.broadcast %cst_138 : f32 to vector<16x1xf32>
    %244 = arith.divf %242, %243 : vector<16x1xf32>
    %cst_139 = arith.constant 9.99999974E-6 : f32
    %245 = vector.broadcast %cst_139 : f32 to vector<16x1xf32>
    %246 = arith.addf %244, %245 : vector<16x1xf32>
    %247 = math.rsqrt %246 : vector<16x1xf32>
    %248 = vector.broadcast %247 : vector<16x1xf32> to vector<16x32xf32>
    %249 = arith.mulf %239, %248 : vector<16x32xf32>
    %250 = vector.broadcast %232 : vector<1x32xf32> to vector<16x32xf32>
    %251 = arith.mulf %249, %250 : vector<16x32xf32>
    %252 = vector.broadcast %233 : vector<1x32xf32> to vector<16x32xf32>
    %253 = arith.addf %251, %252 : vector<16x32xf32>
    %254 = arith.addf %253, %2 : vector<16x32xf32>
    %255 = arith.addf %1, %3 : vector<16x32xf32>
    %cst_140 = arith.constant 0.000000e+00 : f32
    %256 = vector.broadcast %cst_140 : f32 to vector<16x32xf32>
    %c12 = arith.constant 12 : index
    %c0_141 = arith.constant 0 : index
    %c0_142 = arith.constant 0 : index
    %257 = vector.load %arg4[%c12, %c0_141, %c0_142] : memref<24x32x8xf32, #tpu.memory_space<vmem>>, vector<1x32x8xf32>
    %258 = vector.shape_cast %257 : vector<1x32x8xf32> to vector<32x8xf32>
    %cst_143 = arith.constant dense<0.000000e+00> : vector<16x8xf32>
    %259 = tpu.matmul %254, %258, %cst_143 {dimension_numbers = #tpu.dot_dimension_numbers<[1], [0], [0], [1], [0, 0, 1, 1], [], []>} : vector<16x32xf32>, vector<32x8xf32>, vector<16x8xf32> -> vector<16x8xf32>
    %c12_144 = arith.constant 12 : index
    %c0_145 = arith.constant 0 : index
    %260 = vector.load %arg5[%c12_144, %c0_145] : memref<24x8xf32, #tpu.memory_space<vmem>>, vector<1x8xf32>
    %261 = vector.broadcast %260 : vector<1x8xf32> to vector<16x8xf32>
    %262 = arith.addf %259, %261 : vector<16x8xf32>
    %c16 = arith.constant 16 : index
    %c0_146 = arith.constant 0 : index
    %c0_147 = arith.constant 0 : index
    %263 = vector.load %arg4[%c16, %c0_146, %c0_147] : memref<24x32x8xf32, #tpu.memory_space<vmem>>, vector<1x32x8xf32>
    %264 = vector.shape_cast %263 : vector<1x32x8xf32> to vector<32x8xf32>
    %cst_148 = arith.constant dense<0.000000e+00> : vector<16x8xf32>
    %265 = tpu.matmul %255, %264, %cst_148 {dimension_numbers = #tpu.dot_dimension_numbers<[1], [0], [0], [1], [0, 0, 1, 1], [], []>} : vector<16x32xf32>, vector<32x8xf32>, vector<16x8xf32> -> vector<16x8xf32>
    %c16_149 = arith.constant 16 : index
    %c0_150 = arith.constant 0 : index
    %266 = vector.load %arg5[%c16_149, %c0_150] : memref<24x8xf32, #tpu.memory_space<vmem>>, vector<1x8xf32>
    %267 = vector.broadcast %266 : vector<1x8xf32> to vector<16x8xf32>
    %268 = arith.addf %265, %267 : vector<16x8xf32>
    %c20 = arith.constant 20 : index
    %c0_151 = arith.constant 0 : index
    %c0_152 = arith.constant 0 : index
    %269 = vector.load %arg4[%c20, %c0_151, %c0_152] : memref<24x32x8xf32, #tpu.memory_space<vmem>>, vector<1x32x8xf32>
    %270 = vector.shape_cast %269 : vector<1x32x8xf32> to vector<32x8xf32>
    %cst_153 = arith.constant dense<0.000000e+00> : vector<16x8xf32>
    %271 = tpu.matmul %1, %270, %cst_153 {dimension_numbers = #tpu.dot_dimension_numbers<[1], [0], [0], [1], [0, 0, 1, 1], [], []>} : vector<16x32xf32>, vector<32x8xf32>, vector<16x8xf32> -> vector<16x8xf32>
    %c20_154 = arith.constant 20 : index
    %c0_155 = arith.constant 0 : index
    %272 = vector.load %arg5[%c20_154, %c0_155] : memref<24x8xf32, #tpu.memory_space<vmem>>, vector<1x8xf32>
    %273 = vector.broadcast %272 : vector<1x8xf32> to vector<16x8xf32>
    %274 = arith.addf %271, %273 : vector<16x8xf32>
    %cst_156 = arith.constant 0.353553385 : f32
    %275 = vector.broadcast %cst_156 : f32 to vector<16x8xf32>
    %276 = arith.mulf %262, %275 : vector<16x8xf32>
    %cst_157 = arith.constant dense<0.000000e+00> : vector<16x16xf32>
    %277 = tpu.matmul %276, %268, %cst_157 {dimension_numbers = #tpu.dot_dimension_numbers<[1], [1], [0], [0], [0, 0, 1, 0], [], []>} : vector<16x8xf32>, vector<16x8xf32>, vector<16x16xf32> -> vector<16x16xf32>
    %cst_158 = arith.constant -1.000000e+30 : f32
    %278 = vector.broadcast %cst_158 : f32 to vector<16x16xf32>
    %279 = arith.select %73, %277, %278 : vector<16x16xi1>, vector<16x16xf32>
    %cst_159 = arith.constant dense<0xFF800000> : vector<16xf32>
    %280 = vector.multi_reduction <maximumf>, %279, %cst_159 [1] : vector<16x16xf32> to vector<16xf32>
    %281 = vector.shape_cast %280 : vector<16xf32> to vector<16x1xf32>
    %282 = vector.broadcast %281 : vector<16x1xf32> to vector<16x16xf32>
    %283 = arith.subf %279, %282 : vector<16x16xf32>
    %284 = math.exp %283 : vector<16x16xf32>
    %cst_160 = arith.constant dense<0.000000e+00> : vector<16xf32>
    %285 = vector.multi_reduction <add>, %284, %cst_160 [1] : vector<16x16xf32> to vector<16xf32>
    %286 = vector.shape_cast %285 : vector<16xf32> to vector<16x1xf32>
    %287 = tpu.reciprocal %286 : vector<16x1xf32> -> vector<16x1xf32>
    %cst_161 = arith.constant dense<0.000000e+00> : vector<16x8xf32>
    %288 = tpu.matmul %284, %274, %cst_161 {dimension_numbers = #tpu.dot_dimension_numbers<[1], [0], [0], [1], [0, 0, 1, 1], [], []>} : vector<16x16xf32>, vector<16x8xf32>, vector<16x8xf32> -> vector<16x8xf32>
    %289 = vector.broadcast %287 : vector<16x1xf32> to vector<16x8xf32>
    %290 = arith.mulf %288, %289 : vector<16x8xf32>
    %c4_162 = arith.constant 4 : index
    %c0_163 = arith.constant 0 : index
    %c0_164 = arith.constant 0 : index
    %291 = vector.load %arg6[%c4_162, %c0_163, %c0_164] : memref<8x8x32xf32, #tpu.memory_space<vmem>>, vector<1x8x32xf32>
    %292 = vector.shape_cast %291 : vector<1x8x32xf32> to vector<8x32xf32>
    %cst_165 = arith.constant dense<0.000000e+00> : vector<16x32xf32>
    %293 = tpu.matmul %290, %292, %cst_165 {dimension_numbers = #tpu.dot_dimension_numbers<[1], [0], [0], [1], [0, 0, 1, 1], [], []>} : vector<16x8xf32>, vector<8x32xf32>, vector<16x32xf32> -> vector<16x32xf32>
    %294 = arith.addf %256, %293 : vector<16x32xf32>
    %c13 = arith.constant 13 : index
    %c0_166 = arith.constant 0 : index
    %c0_167 = arith.constant 0 : index
    %295 = vector.load %arg4[%c13, %c0_166, %c0_167] : memref<24x32x8xf32, #tpu.memory_space<vmem>>, vector<1x32x8xf32>
    %296 = vector.shape_cast %295 : vector<1x32x8xf32> to vector<32x8xf32>
    %cst_168 = arith.constant dense<0.000000e+00> : vector<16x8xf32>
    %297 = tpu.matmul %254, %296, %cst_168 {dimension_numbers = #tpu.dot_dimension_numbers<[1], [0], [0], [1], [0, 0, 1, 1], [], []>} : vector<16x32xf32>, vector<32x8xf32>, vector<16x8xf32> -> vector<16x8xf32>
    %c13_169 = arith.constant 13 : index
    %c0_170 = arith.constant 0 : index
    %298 = vector.load %arg5[%c13_169, %c0_170] : memref<24x8xf32, #tpu.memory_space<vmem>>, vector<1x8xf32>
    %299 = vector.broadcast %298 : vector<1x8xf32> to vector<16x8xf32>
    %300 = arith.addf %297, %299 : vector<16x8xf32>
    %c17 = arith.constant 17 : index
    %c0_171 = arith.constant 0 : index
    %c0_172 = arith.constant 0 : index
    %301 = vector.load %arg4[%c17, %c0_171, %c0_172] : memref<24x32x8xf32, #tpu.memory_space<vmem>>, vector<1x32x8xf32>
    %302 = vector.shape_cast %301 : vector<1x32x8xf32> to vector<32x8xf32>
    %cst_173 = arith.constant dense<0.000000e+00> : vector<16x8xf32>
    %303 = tpu.matmul %255, %302, %cst_173 {dimension_numbers = #tpu.dot_dimension_numbers<[1], [0], [0], [1], [0, 0, 1, 1], [], []>} : vector<16x32xf32>, vector<32x8xf32>, vector<16x8xf32> -> vector<16x8xf32>
    %c17_174 = arith.constant 17 : index
    %c0_175 = arith.constant 0 : index
    %304 = vector.load %arg5[%c17_174, %c0_175] : memref<24x8xf32, #tpu.memory_space<vmem>>, vector<1x8xf32>
    %305 = vector.broadcast %304 : vector<1x8xf32> to vector<16x8xf32>
    %306 = arith.addf %303, %305 : vector<16x8xf32>
    %c21 = arith.constant 21 : index
    %c0_176 = arith.constant 0 : index
    %c0_177 = arith.constant 0 : index
    %307 = vector.load %arg4[%c21, %c0_176, %c0_177] : memref<24x32x8xf32, #tpu.memory_space<vmem>>, vector<1x32x8xf32>
    %308 = vector.shape_cast %307 : vector<1x32x8xf32> to vector<32x8xf32>
    %cst_178 = arith.constant dense<0.000000e+00> : vector<16x8xf32>
    %309 = tpu.matmul %1, %308, %cst_178 {dimension_numbers = #tpu.dot_dimension_numbers<[1], [0], [0], [1], [0, 0, 1, 1], [], []>} : vector<16x32xf32>, vector<32x8xf32>, vector<16x8xf32> -> vector<16x8xf32>
    %c21_179 = arith.constant 21 : index
    %c0_180 = arith.constant 0 : index
    %310 = vector.load %arg5[%c21_179, %c0_180] : memref<24x8xf32, #tpu.memory_space<vmem>>, vector<1x8xf32>
    %311 = vector.broadcast %310 : vector<1x8xf32> to vector<16x8xf32>
    %312 = arith.addf %309, %311 : vector<16x8xf32>
    %cst_181 = arith.constant 0.353553385 : f32
    %313 = vector.broadcast %cst_181 : f32 to vector<16x8xf32>
    %314 = arith.mulf %300, %313 : vector<16x8xf32>
    %cst_182 = arith.constant dense<0.000000e+00> : vector<16x16xf32>
    %315 = tpu.matmul %314, %306, %cst_182 {dimension_numbers = #tpu.dot_dimension_numbers<[1], [1], [0], [0], [0, 0, 1, 0], [], []>} : vector<16x8xf32>, vector<16x8xf32>, vector<16x16xf32> -> vector<16x16xf32>
    %cst_183 = arith.constant -1.000000e+30 : f32
    %316 = vector.broadcast %cst_183 : f32 to vector<16x16xf32>
    %317 = arith.select %73, %315, %316 : vector<16x16xi1>, vector<16x16xf32>
    %cst_184 = arith.constant dense<0xFF800000> : vector<16xf32>
    %318 = vector.multi_reduction <maximumf>, %317, %cst_184 [1] : vector<16x16xf32> to vector<16xf32>
    %319 = vector.shape_cast %318 : vector<16xf32> to vector<16x1xf32>
    %320 = vector.broadcast %319 : vector<16x1xf32> to vector<16x16xf32>
    %321 = arith.subf %317, %320 : vector<16x16xf32>
    %322 = math.exp %321 : vector<16x16xf32>
    %cst_185 = arith.constant dense<0.000000e+00> : vector<16xf32>
    %323 = vector.multi_reduction <add>, %322, %cst_185 [1] : vector<16x16xf32> to vector<16xf32>
    %324 = vector.shape_cast %323 : vector<16xf32> to vector<16x1xf32>
    %325 = tpu.reciprocal %324 : vector<16x1xf32> -> vector<16x1xf32>
    %cst_186 = arith.constant dense<0.000000e+00> : vector<16x8xf32>
    %326 = tpu.matmul %322, %312, %cst_186 {dimension_numbers = #tpu.dot_dimension_numbers<[1], [0], [0], [1], [0, 0, 1, 1], [], []>} : vector<16x16xf32>, vector<16x8xf32>, vector<16x8xf32> -> vector<16x8xf32>
    %327 = vector.broadcast %325 : vector<16x1xf32> to vector<16x8xf32>
    %328 = arith.mulf %326, %327 : vector<16x8xf32>
    %c5_187 = arith.constant 5 : index
    %c0_188 = arith.constant 0 : index
    %c0_189 = arith.constant 0 : index
    %329 = vector.load %arg6[%c5_187, %c0_188, %c0_189] : memref<8x8x32xf32, #tpu.memory_space<vmem>>, vector<1x8x32xf32>
    %330 = vector.shape_cast %329 : vector<1x8x32xf32> to vector<8x32xf32>
    %cst_190 = arith.constant dense<0.000000e+00> : vector<16x32xf32>
    %331 = tpu.matmul %328, %330, %cst_190 {dimension_numbers = #tpu.dot_dimension_numbers<[1], [0], [0], [1], [0, 0, 1, 1], [], []>} : vector<16x8xf32>, vector<8x32xf32>, vector<16x32xf32> -> vector<16x32xf32>
    %332 = arith.addf %294, %331 : vector<16x32xf32>
    %c14 = arith.constant 14 : index
    %c0_191 = arith.constant 0 : index
    %c0_192 = arith.constant 0 : index
    %333 = vector.load %arg4[%c14, %c0_191, %c0_192] : memref<24x32x8xf32, #tpu.memory_space<vmem>>, vector<1x32x8xf32>
    %334 = vector.shape_cast %333 : vector<1x32x8xf32> to vector<32x8xf32>
    %cst_193 = arith.constant dense<0.000000e+00> : vector<16x8xf32>
    %335 = tpu.matmul %254, %334, %cst_193 {dimension_numbers = #tpu.dot_dimension_numbers<[1], [0], [0], [1], [0, 0, 1, 1], [], []>} : vector<16x32xf32>, vector<32x8xf32>, vector<16x8xf32> -> vector<16x8xf32>
    %c14_194 = arith.constant 14 : index
    %c0_195 = arith.constant 0 : index
    %336 = vector.load %arg5[%c14_194, %c0_195] : memref<24x8xf32, #tpu.memory_space<vmem>>, vector<1x8xf32>
    %337 = vector.broadcast %336 : vector<1x8xf32> to vector<16x8xf32>
    %338 = arith.addf %335, %337 : vector<16x8xf32>
    %c18 = arith.constant 18 : index
    %c0_196 = arith.constant 0 : index
    %c0_197 = arith.constant 0 : index
    %339 = vector.load %arg4[%c18, %c0_196, %c0_197] : memref<24x32x8xf32, #tpu.memory_space<vmem>>, vector<1x32x8xf32>
    %340 = vector.shape_cast %339 : vector<1x32x8xf32> to vector<32x8xf32>
    %cst_198 = arith.constant dense<0.000000e+00> : vector<16x8xf32>
    %341 = tpu.matmul %255, %340, %cst_198 {dimension_numbers = #tpu.dot_dimension_numbers<[1], [0], [0], [1], [0, 0, 1, 1], [], []>} : vector<16x32xf32>, vector<32x8xf32>, vector<16x8xf32> -> vector<16x8xf32>
    %c18_199 = arith.constant 18 : index
    %c0_200 = arith.constant 0 : index
    %342 = vector.load %arg5[%c18_199, %c0_200] : memref<24x8xf32, #tpu.memory_space<vmem>>, vector<1x8xf32>
    %343 = vector.broadcast %342 : vector<1x8xf32> to vector<16x8xf32>
    %344 = arith.addf %341, %343 : vector<16x8xf32>
    %c22 = arith.constant 22 : index
    %c0_201 = arith.constant 0 : index
    %c0_202 = arith.constant 0 : index
    %345 = vector.load %arg4[%c22, %c0_201, %c0_202] : memref<24x32x8xf32, #tpu.memory_space<vmem>>, vector<1x32x8xf32>
    %346 = vector.shape_cast %345 : vector<1x32x8xf32> to vector<32x8xf32>
    %cst_203 = arith.constant dense<0.000000e+00> : vector<16x8xf32>
    %347 = tpu.matmul %1, %346, %cst_203 {dimension_numbers = #tpu.dot_dimension_numbers<[1], [0], [0], [1], [0, 0, 1, 1], [], []>} : vector<16x32xf32>, vector<32x8xf32>, vector<16x8xf32> -> vector<16x8xf32>
    %c22_204 = arith.constant 22 : index
    %c0_205 = arith.constant 0 : index
    %348 = vector.load %arg5[%c22_204, %c0_205] : memref<24x8xf32, #tpu.memory_space<vmem>>, vector<1x8xf32>
    %349 = vector.broadcast %348 : vector<1x8xf32> to vector<16x8xf32>
    %350 = arith.addf %347, %349 : vector<16x8xf32>
    %cst_206 = arith.constant 0.353553385 : f32
    %351 = vector.broadcast %cst_206 : f32 to vector<16x8xf32>
    %352 = arith.mulf %338, %351 : vector<16x8xf32>
    %cst_207 = arith.constant dense<0.000000e+00> : vector<16x16xf32>
    %353 = tpu.matmul %352, %344, %cst_207 {dimension_numbers = #tpu.dot_dimension_numbers<[1], [1], [0], [0], [0, 0, 1, 0], [], []>} : vector<16x8xf32>, vector<16x8xf32>, vector<16x16xf32> -> vector<16x16xf32>
    %cst_208 = arith.constant -1.000000e+30 : f32
    %354 = vector.broadcast %cst_208 : f32 to vector<16x16xf32>
    %355 = arith.select %73, %353, %354 : vector<16x16xi1>, vector<16x16xf32>
    %cst_209 = arith.constant dense<0xFF800000> : vector<16xf32>
    %356 = vector.multi_reduction <maximumf>, %355, %cst_209 [1] : vector<16x16xf32> to vector<16xf32>
    %357 = vector.shape_cast %356 : vector<16xf32> to vector<16x1xf32>
    %358 = vector.broadcast %357 : vector<16x1xf32> to vector<16x16xf32>
    %359 = arith.subf %355, %358 : vector<16x16xf32>
    %360 = math.exp %359 : vector<16x16xf32>
    %cst_210 = arith.constant dense<0.000000e+00> : vector<16xf32>
    %361 = vector.multi_reduction <add>, %360, %cst_210 [1] : vector<16x16xf32> to vector<16xf32>
    %362 = vector.shape_cast %361 : vector<16xf32> to vector<16x1xf32>
    %363 = tpu.reciprocal %362 : vector<16x1xf32> -> vector<16x1xf32>
    %cst_211 = arith.constant dense<0.000000e+00> : vector<16x8xf32>
    %364 = tpu.matmul %360, %350, %cst_211 {dimension_numbers = #tpu.dot_dimension_numbers<[1], [0], [0], [1], [0, 0, 1, 1], [], []>} : vector<16x16xf32>, vector<16x8xf32>, vector<16x8xf32> -> vector<16x8xf32>
    %365 = vector.broadcast %363 : vector<16x1xf32> to vector<16x8xf32>
    %366 = arith.mulf %364, %365 : vector<16x8xf32>
    %c6_212 = arith.constant 6 : index
    %c0_213 = arith.constant 0 : index
    %c0_214 = arith.constant 0 : index
    %367 = vector.load %arg6[%c6_212, %c0_213, %c0_214] : memref<8x8x32xf32, #tpu.memory_space<vmem>>, vector<1x8x32xf32>
    %368 = vector.shape_cast %367 : vector<1x8x32xf32> to vector<8x32xf32>
    %cst_215 = arith.constant dense<0.000000e+00> : vector<16x32xf32>
    %369 = tpu.matmul %366, %368, %cst_215 {dimension_numbers = #tpu.dot_dimension_numbers<[1], [0], [0], [1], [0, 0, 1, 1], [], []>} : vector<16x8xf32>, vector<8x32xf32>, vector<16x32xf32> -> vector<16x32xf32>
    %370 = arith.addf %332, %369 : vector<16x32xf32>
    %c15 = arith.constant 15 : index
    %c0_216 = arith.constant 0 : index
    %c0_217 = arith.constant 0 : index
    %371 = vector.load %arg4[%c15, %c0_216, %c0_217] : memref<24x32x8xf32, #tpu.memory_space<vmem>>, vector<1x32x8xf32>
    %372 = vector.shape_cast %371 : vector<1x32x8xf32> to vector<32x8xf32>
    %cst_218 = arith.constant dense<0.000000e+00> : vector<16x8xf32>
    %373 = tpu.matmul %254, %372, %cst_218 {dimension_numbers = #tpu.dot_dimension_numbers<[1], [0], [0], [1], [0, 0, 1, 1], [], []>} : vector<16x32xf32>, vector<32x8xf32>, vector<16x8xf32> -> vector<16x8xf32>
    %c15_219 = arith.constant 15 : index
    %c0_220 = arith.constant 0 : index
    %374 = vector.load %arg5[%c15_219, %c0_220] : memref<24x8xf32, #tpu.memory_space<vmem>>, vector<1x8xf32>
    %375 = vector.broadcast %374 : vector<1x8xf32> to vector<16x8xf32>
    %376 = arith.addf %373, %375 : vector<16x8xf32>
    %c19 = arith.constant 19 : index
    %c0_221 = arith.constant 0 : index
    %c0_222 = arith.constant 0 : index
    %377 = vector.load %arg4[%c19, %c0_221, %c0_222] : memref<24x32x8xf32, #tpu.memory_space<vmem>>, vector<1x32x8xf32>
    %378 = vector.shape_cast %377 : vector<1x32x8xf32> to vector<32x8xf32>
    %cst_223 = arith.constant dense<0.000000e+00> : vector<16x8xf32>
    %379 = tpu.matmul %255, %378, %cst_223 {dimension_numbers = #tpu.dot_dimension_numbers<[1], [0], [0], [1], [0, 0, 1, 1], [], []>} : vector<16x32xf32>, vector<32x8xf32>, vector<16x8xf32> -> vector<16x8xf32>
    %c19_224 = arith.constant 19 : index
    %c0_225 = arith.constant 0 : index
    %380 = vector.load %arg5[%c19_224, %c0_225] : memref<24x8xf32, #tpu.memory_space<vmem>>, vector<1x8xf32>
    %381 = vector.broadcast %380 : vector<1x8xf32> to vector<16x8xf32>
    %382 = arith.addf %379, %381 : vector<16x8xf32>
    %c23 = arith.constant 23 : index
    %c0_226 = arith.constant 0 : index
    %c0_227 = arith.constant 0 : index
    %383 = vector.load %arg4[%c23, %c0_226, %c0_227] : memref<24x32x8xf32, #tpu.memory_space<vmem>>, vector<1x32x8xf32>
    %384 = vector.shape_cast %383 : vector<1x32x8xf32> to vector<32x8xf32>
    %cst_228 = arith.constant dense<0.000000e+00> : vector<16x8xf32>
    %385 = tpu.matmul %1, %384, %cst_228 {dimension_numbers = #tpu.dot_dimension_numbers<[1], [0], [0], [1], [0, 0, 1, 1], [], []>} : vector<16x32xf32>, vector<32x8xf32>, vector<16x8xf32> -> vector<16x8xf32>
    %c23_229 = arith.constant 23 : index
    %c0_230 = arith.constant 0 : index
    %386 = vector.load %arg5[%c23_229, %c0_230] : memref<24x8xf32, #tpu.memory_space<vmem>>, vector<1x8xf32>
    %387 = vector.broadcast %386 : vector<1x8xf32> to vector<16x8xf32>
    %388 = arith.addf %385, %387 : vector<16x8xf32>
    %cst_231 = arith.constant 0.353553385 : f32
    %389 = vector.broadcast %cst_231 : f32 to vector<16x8xf32>
    %390 = arith.mulf %376, %389 : vector<16x8xf32>
    %cst_232 = arith.constant dense<0.000000e+00> : vector<16x16xf32>
    %391 = tpu.matmul %390, %382, %cst_232 {dimension_numbers = #tpu.dot_dimension_numbers<[1], [1], [0], [0], [0, 0, 1, 0], [], []>} : vector<16x8xf32>, vector<16x8xf32>, vector<16x16xf32> -> vector<16x16xf32>
    %cst_233 = arith.constant -1.000000e+30 : f32
    %392 = vector.broadcast %cst_233 : f32 to vector<16x16xf32>
    %393 = arith.select %73, %391, %392 : vector<16x16xi1>, vector<16x16xf32>
    %cst_234 = arith.constant dense<0xFF800000> : vector<16xf32>
    %394 = vector.multi_reduction <maximumf>, %393, %cst_234 [1] : vector<16x16xf32> to vector<16xf32>
    %395 = vector.shape_cast %394 : vector<16xf32> to vector<16x1xf32>
    %396 = vector.broadcast %395 : vector<16x1xf32> to vector<16x16xf32>
    %397 = arith.subf %393, %396 : vector<16x16xf32>
    %398 = math.exp %397 : vector<16x16xf32>
    %cst_235 = arith.constant dense<0.000000e+00> : vector<16xf32>
    %399 = vector.multi_reduction <add>, %398, %cst_235 [1] : vector<16x16xf32> to vector<16xf32>
    %400 = vector.shape_cast %399 : vector<16xf32> to vector<16x1xf32>
    %401 = tpu.reciprocal %400 : vector<16x1xf32> -> vector<16x1xf32>
    %cst_236 = arith.constant dense<0.000000e+00> : vector<16x8xf32>
    %402 = tpu.matmul %398, %388, %cst_236 {dimension_numbers = #tpu.dot_dimension_numbers<[1], [0], [0], [1], [0, 0, 1, 1], [], []>} : vector<16x16xf32>, vector<16x8xf32>, vector<16x8xf32> -> vector<16x8xf32>
    %403 = vector.broadcast %401 : vector<16x1xf32> to vector<16x8xf32>
    %404 = arith.mulf %402, %403 : vector<16x8xf32>
    %c7_237 = arith.constant 7 : index
    %c0_238 = arith.constant 0 : index
    %c0_239 = arith.constant 0 : index
    %405 = vector.load %arg6[%c7_237, %c0_238, %c0_239] : memref<8x8x32xf32, #tpu.memory_space<vmem>>, vector<1x8x32xf32>
    %406 = vector.shape_cast %405 : vector<1x8x32xf32> to vector<8x32xf32>
    %cst_240 = arith.constant dense<0.000000e+00> : vector<16x32xf32>
    %407 = tpu.matmul %404, %406, %cst_240 {dimension_numbers = #tpu.dot_dimension_numbers<[1], [0], [0], [1], [0, 0, 1, 1], [], []>} : vector<16x8xf32>, vector<8x32xf32>, vector<16x32xf32> -> vector<16x32xf32>
    %408 = arith.addf %370, %407 : vector<16x32xf32>
    %c1_241 = arith.constant 1 : index
    %c0_242 = arith.constant 0 : index
    %409 = vector.load %arg10[%c1_241, %c0_242] : memref<9x32xf32, #tpu.memory_space<vmem>>, vector<1x32xf32>
    %410 = vector.broadcast %409 : vector<1x32xf32> to vector<16x32xf32>
    %411 = arith.addf %408, %410 : vector<16x32xf32>
    %412 = arith.addf %253, %411 : vector<16x32xf32>
    %c5_243 = arith.constant 5 : index
    %c0_244 = arith.constant 0 : index
    %413 = vector.load %arg10[%c5_243, %c0_244] : memref<9x32xf32, #tpu.memory_space<vmem>>, vector<1x32xf32>
    %c6_245 = arith.constant 6 : index
    %c0_246 = arith.constant 0 : index
    %414 = vector.load %arg10[%c6_245, %c0_246] : memref<9x32xf32, #tpu.memory_space<vmem>>, vector<1x32xf32>
    %cst_247 = arith.constant dense<0.000000e+00> : vector<16xf32>
    %415 = vector.multi_reduction <add>, %412, %cst_247 [1] : vector<16x32xf32> to vector<16xf32>
    %416 = vector.shape_cast %415 : vector<16xf32> to vector<16x1xf32>
    %cst_248 = arith.constant 3.200000e+01 : f32
    %417 = vector.broadcast %cst_248 : f32 to vector<16x1xf32>
    %418 = arith.divf %416, %417 : vector<16x1xf32>
    %419 = vector.broadcast %418 : vector<16x1xf32> to vector<16x32xf32>
    %420 = arith.subf %412, %419 : vector<16x32xf32>
    %421 = arith.mulf %420, %420 : vector<16x32xf32>
    %cst_249 = arith.constant dense<0.000000e+00> : vector<16xf32>
    %422 = vector.multi_reduction <add>, %421, %cst_249 [1] : vector<16x32xf32> to vector<16xf32>
    %423 = vector.shape_cast %422 : vector<16xf32> to vector<16x1xf32>
    %cst_250 = arith.constant 3.200000e+01 : f32
    %424 = vector.broadcast %cst_250 : f32 to vector<16x1xf32>
    %425 = arith.divf %423, %424 : vector<16x1xf32>
    %cst_251 = arith.constant 9.99999974E-6 : f32
    %426 = vector.broadcast %cst_251 : f32 to vector<16x1xf32>
    %427 = arith.addf %425, %426 : vector<16x1xf32>
    %428 = math.rsqrt %427 : vector<16x1xf32>
    %429 = vector.broadcast %428 : vector<16x1xf32> to vector<16x32xf32>
    %430 = arith.mulf %420, %429 : vector<16x32xf32>
    %431 = vector.broadcast %413 : vector<1x32xf32> to vector<16x32xf32>
    %432 = arith.mulf %430, %431 : vector<16x32xf32>
    %433 = vector.broadcast %414 : vector<1x32xf32> to vector<16x32xf32>
    %434 = arith.addf %432, %433 : vector<16x32xf32>
    %c0_252 = arith.constant 0 : index
    %c0_253 = arith.constant 0 : index
    %435 = vector.load %arg7[%c0_252, %c0_253] : memref<32x64xf32, #tpu.memory_space<vmem>>, vector<32x64xf32>
    %cst_254 = arith.constant dense<0.000000e+00> : vector<16x64xf32>
    %436 = tpu.matmul %434, %435, %cst_254 {dimension_numbers = #tpu.dot_dimension_numbers<[1], [0], [0], [1], [0, 0, 1, 1], [], []>} : vector<16x32xf32>, vector<32x64xf32>, vector<16x64xf32> -> vector<16x64xf32>
    %c0_255 = arith.constant 0 : index
    %c0_256 = arith.constant 0 : index
    %437 = vector.load %arg8[%c0_255, %c0_256] : memref<1x64xf32, #tpu.memory_space<vmem>>, vector<1x64xf32>
    %438 = vector.broadcast %437 : vector<1x64xf32> to vector<16x64xf32>
    %439 = arith.addf %436, %438 : vector<16x64xf32>
    %cst_257 = arith.constant 0.000000e+00 : f32
    %440 = vector.broadcast %cst_257 : f32 to vector<16x64xf32>
    %441 = arith.maximumf %439, %440 : vector<16x64xf32>
    %c0_258 = arith.constant 0 : index
    %c0_259 = arith.constant 0 : index
    %442 = vector.load %arg9[%c0_258, %c0_259] : memref<64x32xf32, #tpu.memory_space<vmem>>, vector<64x32xf32>
    %cst_260 = arith.constant dense<0.000000e+00> : vector<16x32xf32>
    %443 = tpu.matmul %441, %442, %cst_260 {dimension_numbers = #tpu.dot_dimension_numbers<[1], [0], [0], [1], [0, 0, 1, 1], [], []>} : vector<16x64xf32>, vector<64x32xf32>, vector<16x32xf32> -> vector<16x32xf32>
    %c2_261 = arith.constant 2 : index
    %c0_262 = arith.constant 0 : index
    %444 = vector.load %arg10[%c2_261, %c0_262] : memref<9x32xf32, #tpu.memory_space<vmem>>, vector<1x32xf32>
    %445 = vector.broadcast %444 : vector<1x32xf32> to vector<16x32xf32>
    %446 = arith.addf %443, %445 : vector<16x32xf32>
    %447 = arith.addf %434, %446 : vector<16x32xf32>
    %c7_263 = arith.constant 7 : index
    %c0_264 = arith.constant 0 : index
    %448 = vector.load %arg10[%c7_263, %c0_264] : memref<9x32xf32, #tpu.memory_space<vmem>>, vector<1x32xf32>
    %c8_265 = arith.constant 8 : index
    %c0_266 = arith.constant 0 : index
    %449 = vector.load %arg10[%c8_265, %c0_266] : memref<9x32xf32, #tpu.memory_space<vmem>>, vector<1x32xf32>
    %cst_267 = arith.constant dense<0.000000e+00> : vector<16xf32>
    %450 = vector.multi_reduction <add>, %447, %cst_267 [1] : vector<16x32xf32> to vector<16xf32>
    %451 = vector.shape_cast %450 : vector<16xf32> to vector<16x1xf32>
    %cst_268 = arith.constant 3.200000e+01 : f32
    %452 = vector.broadcast %cst_268 : f32 to vector<16x1xf32>
    %453 = arith.divf %451, %452 : vector<16x1xf32>
    %454 = vector.broadcast %453 : vector<16x1xf32> to vector<16x32xf32>
    %455 = arith.subf %447, %454 : vector<16x32xf32>
    %456 = arith.mulf %455, %455 : vector<16x32xf32>
    %cst_269 = arith.constant dense<0.000000e+00> : vector<16xf32>
    %457 = vector.multi_reduction <add>, %456, %cst_269 [1] : vector<16x32xf32> to vector<16xf32>
    %458 = vector.shape_cast %457 : vector<16xf32> to vector<16x1xf32>
    %cst_270 = arith.constant 3.200000e+01 : f32
    %459 = vector.broadcast %cst_270 : f32 to vector<16x1xf32>
    %460 = arith.divf %458, %459 : vector<16x1xf32>
    %cst_271 = arith.constant 9.99999974E-6 : f32
    %461 = vector.broadcast %cst_271 : f32 to vector<16x1xf32>
    %462 = arith.addf %460, %461 : vector<16x1xf32>
    %463 = math.rsqrt %462 : vector<16x1xf32>
    %464 = vector.broadcast %463 : vector<16x1xf32> to vector<16x32xf32>
    %465 = arith.mulf %455, %464 : vector<16x32xf32>
    %466 = vector.broadcast %448 : vector<1x32xf32> to vector<16x32xf32>
    %467 = arith.mulf %465, %466 : vector<16x32xf32>
    %468 = vector.broadcast %449 : vector<1x32xf32> to vector<16x32xf32>
    %469 = arith.addf %467, %468 : vector<16x32xf32>
    %c0_272 = arith.constant 0 : index
    %c0_273 = arith.constant 0 : index
    %470 = vector.load %arg11[%c0_272, %c0_273] : memref<16x32xf32, #tpu.memory_space<vmem>>, vector<16x32xf32>
    tpu.vector_store %arg11[%c0_272, %c0_273], %469 {strides = array<i32>} : memref<16x32xf32, #tpu.memory_space<vmem>>, vector<16x32xf32>,
    return
  }
}

</mosaic_0001>

<llo_original>
// kernel: transformer_decoder_layer.1
$region0: #{transformer_decoder_layer.1}
  #allocation0 [shape = 'u32[]', space=smem, size = 0x4, offset = 0x4, fixed_abs, tag = 'smem constant byte address 0x4 - core index']
  #allocation1 [shape = 'u32[144,128]{1,0:T(1,128)}', space=vmem, size = 0x12000, scoped, tag = 'internal scratch']
  %s0 = inlined_call_operand.vmem [shape: f32[16,32], index: 0, kind: input, shape index: {}]
  %s1 = inlined_call_operand.vmem [shape: f32[16,32], index: 1, kind: input, shape index: {}]
  %s2 = inlined_call_operand.vmem [shape: f32[16,32], index: 2, kind: input, shape index: {}]
  %s3 = inlined_call_operand.vmem [shape: f32[16,32], index: 3, kind: input, shape index: {}]
  %s4 = inlined_call_operand.vmem [shape: f32[24,32,8], index: 4, kind: input, shape index: {}]
  %s5 = inlined_call_operand.vmem [shape: f32[24,8], index: 5, kind: input, shape index: {}]
  %s6 = inlined_call_operand.vmem [shape: f32[8,8,32], index: 6, kind: input, shape index: {}]
  %s7 = inlined_call_operand.vmem [shape: f32[32,64], index: 7, kind: input, shape index: {}]
  %s8 = inlined_call_operand.vmem [shape: f32[1,64], index: 8, kind: input, shape index: {}]
  %s9 = inlined_call_operand.vmem [shape: f32[64,32], index: 9, kind: input, shape index: {}]
  %s10 = inlined_call_operand.vmem [shape: f32[9,32], index: 10, kind: input, shape index: {}]
  %s11 = inlined_call_operand.hbm [shape: f32[16,32], index: 11, kind: output, shape index: {}]
  %s12 = sld [smem:[#allocation0]]
  $region54: #{transformer_decoder_layer.1} parent=0
    _
  %s14 = ssub.s32 1, %s12
  %s15 = scalar_select 0, %s14, %s12
  $region1: #{transformer_decoder_layer.1} parent=0
    #allocation2 [shape = 'u8[8192]{0}', space=vmem, size = 0x2000, scoped, tag = 'output window, operand 0, single buffered']
    #allocation3 [shape = 's32[1]{0}', space=sflag, size = 0x4, scoped, tag = 'scoped memory for transformer_decoder_layer.1']
    %16 = vsyncpa [#allocation3], 0
    // Predicated region
    $region2: #{transformer_decoder_layer.1} parent=1 // pred_check
      _
    $region3: #{transformer_decoder_layer.1} parent=1 // pred_check_branch
      %18 = sbr.rel (0) target = $region5
    $region4: #{transformer_decoder_layer.1} parent=1 // pred_region
      _
    $region5: #{transformer_decoder_layer.1} parent=1 // pred_fallthru
      _
    // Predicated region
    $region6: #{transformer_decoder_layer.1} parent=1 // pred_check
      _
    $region7: #{transformer_decoder_layer.1} parent=1 // pred_check_branch
      %20 = sbr.rel (0) target = $region9
    $region8: #{transformer_decoder_layer.1} parent=1 // pred_region
      _
    $region9: #{transformer_decoder_layer.1} parent=1 // pred_fallthru
      _
    // Predicated region
    $region10: #{transformer_decoder_layer.1} parent=1 // pred_check
      _
    $region11: #{transformer_decoder_layer.1} parent=1 // pred_check_branch
      %22 = sbr.rel (0) target = $region13
    $region12: #{transformer_decoder_layer.1} parent=1 // pred_region
      _
    $region13: #{transformer_decoder_layer.1} parent=1 // pred_fallthru
      _
    // Predicated region
    $region14: #{transformer_decoder_layer.1} parent=1 // pred_check
      _
    $region15: #{transformer_decoder_layer.1} parent=1 // pred_check_branch
      %24 = sbr.rel (0) target = $region17
    $region16: #{transformer_decoder_layer.1} parent=1 // pred_region
      _
    $region17: #{transformer_decoder_layer.1} parent=1 // pred_fallthru
      _
    // Predicated region
    $region18: #{transformer_decoder_layer.1} parent=1 // pred_check
      _
    $region19: #{transformer_decoder_layer.1} parent=1 // pred_check_branch
      %26 = sbr.rel (0) target = $region21
    $region20: #{transformer_decoder_layer.1} parent=1 // pred_region
      _
    $region21: #{transformer_decoder_layer.1} parent=1 // pred_fallthru
      _
    // Predicated region
    $region22: #{transformer_decoder_layer.1} parent=1 // pred_check
      _
    $region23: #{transformer_decoder_layer.1} parent=1 // pred_check_branch
      %28 = sbr.rel (0) target = $region25
    $region24: #{transformer_decoder_layer.1} parent=1 // pred_region
      _
    $region25: #{transformer_decoder_layer.1} parent=1 // pred_fallthru
      _
    // Predicated region
    $region26: #{transformer_decoder_layer.1} parent=1 // pred_check
      _
    $region27: #{transformer_decoder_layer.1} parent=1 // pred_check_branch
      %30 = sbr.rel (0) target = $region29
    $region28: #{transformer_decoder_layer.1} parent=1 // pred_region
      _
    $region29: #{transformer_decoder_layer.1} parent=1 // pred_fallthru
      _
    // Predicated region
    $region30: #{transformer_decoder_layer.1} parent=1 // pred_check
      _
    $region31: #{transformer_decoder_layer.1} parent=1 // pred_check_branch
      %32 = sbr.rel (0) target = $region33
    $region32: #{transformer_decoder_layer.1} parent=1 // pred_region
      _
    $region33: #{transformer_decoder_layer.1} parent=1 // pred_fallthru
      _
    // Predicated region
    $region34: #{transformer_decoder_layer.1} parent=1 // pred_check
      _
    $region35: #{transformer_decoder_layer.1} parent=1 // pred_check_branch
      %34 = sbr.rel (0) target = $region37
    $region36: #{transformer_decoder_layer.1} parent=1 // pred_region
      _
    $region37: #{transformer_decoder_layer.1} parent=1 // pred_fallthru
      _
    // Predicated region
    $region38: #{transformer_decoder_layer.1} parent=1 // pred_check
      _
    $region39: #{transformer_decoder_layer.1} parent=1 // pred_check_branch
      %36 = sbr.rel (0) target = $region41
    $region40: #{transformer_decoder_layer.1} parent=1 // pred_region
      _
    $region41: #{transformer_decoder_layer.1} parent=1 // pred_fallthru
      _
    // Predicated region
    $region42: #{transformer_decoder_layer.1} parent=1 // pred_check
      _
    $region43: #{transformer_decoder_layer.1} parent=1 // pred_check_branch
      %38 = sbr.rel (0) target = $region45
    $region44: #{transformer_decoder_layer.1} parent=1 // pred_region
      _
    $region45: #{transformer_decoder_layer.1} parent=1 // pred_fallthru
      _
    %v39 = vld [vmem:[%s0] sm:$0xff]
    %v40 = vld [vmem:[%s0 + $0x8] sm:$0xff]
    %v41 = vld [vmem:[%s1] sm:$0xff]
    %v42 = vld [vmem:[%s1 + $0x8] sm:$0xff]
    %v43 = vld [vmem:[%s2] sm:$0xff]
    %v44 = vld [vmem:[%s2 + $0x8] sm:$0xff]
    %v45 = vld [vmem:[%s3] sm:$0xff]
    %v46 = vld [vmem:[%s3 + $0x8] sm:$0xff]
    %v47 = vlaneseq
    %v48 = vshrl.u32 %v47, 7
    %v49 = vadd.s32 %v48, 8
    %vm50 = vcmp.lt.s32.totalorder %v48, 0
    %v51 = vsub.s32 0, %v48
    %v52 = vsel %vm50, %v51, %v48
    %v53 = vshrl.u32 %v52, 1
    %v54 = vand.u32 %v52, 1
    %v55 = vsub.s32 0, %v54
    %v56 = vsel %vm50, %v55, %v54
    %vm57 = vcmp.lt.s32.totalorder %v49, 0
    %v58 = vsub.s32 0, %v49
    %v59 = vsel %vm57, %v58, %v49
    %v60 = vshrl.u32 %v59, 1
    %v61 = vand.u32 %v59, 1
    %v62 = vsub.s32 0, %v61
    %v63 = vsel %vm57, %v62, %v61
    %vm64 = vcmp.ne.s32.totalorder %v56, 0
    %vm65 = vcmp.ne.s32.totalorder %v63, 0
    %vm66 = vcmp.lt.s32.totalorder %v56, 0
    %vm67 = vcmp.lt.s32.totalorder %v63, 0
    %vm68 = vmand %vm66, %vm64
    %vm69 = vmand %vm67, %vm65
    %v70 = vadd.s32 %v56, 2
    %v71 = vadd.s32 %v63, 2
    %v72 = vsel %vm68, %v70, %v56
    %v73 = vsel %vm69, %v71, %v63
    %v74 = vlaneseq
    %v75 = vand.u32 %v74, 127
    %vm76 = vcmp.lt.s32.totalorder %v75, 0
    %v77 = vsub.s32 0, %v75
    %v78 = vsel %vm76, %v77, %v75
    %v79 = vshrl.u32 %v78, 1
    %v80 = vand.u32 %v78, 1
    %v81 = vsub.s32 0, %v80
    %v82 = vsel %vm76, %v81, %v80
    %vm83 = vcmp.ne.s32.totalorder %v82, 0
    %vm84 = vcmp.lt.s32.totalorder %v82, 0
    %vm85 = vmand %vm84, %vm83
    %v86 = vadd.s32 %v82, 2
    %v87 = vsel %vm85, %v86, %v82
    %vm88 = vcmp.eq.s32.totalorder %v72, %v87
    %vm89 = vcmp.eq.s32.totalorder %v73, %v87
    %v90 = vadd.f32 %v39, %v43
    %v91 = vadd.f32 %v40, %v44
    %v92 = vld [vmem:[%s4] sm:$0xff]
    %v93 = vld [vmem:[%s4 + $0x8] sm:$0xff]
    %v94 = vld [vmem:[%s4 + $0x10] sm:$0xff]
    %v95 = vld [vmem:[%s4 + $0x18] sm:$0xff]
    %v96 = vld [vmem:[%s5] sm:$0x1]
    %v97 = vlaneseq
    %v98 = vshrl.u32 %v97, 7
    %v99 = vsub.s32 0, %v98
    %v100 = vrot.slane %v96, %v99
    %vm101 = vcmask 261120
    %v103 = vsel %vm101, %v90, 0
    %v106 = vsel %vm101, %v91, 0
    %108 = vmatprep.subr.mxu0 0.0
    %109 = vmatpush1.msra.mxu0 0.0
    %110 = vmatprep.subr.mxu0 0.0
    %111 = vmatpush1.msra.mxu0 0.0
    %112 = vmatprep.subr.mxu0 0.0
    %113 = vmatpush1.msra.mxu0 0.0
    %114 = vmatprep.subr.mxu0 0.0
    %115 = vmatpush1.msra.mxu0 0.0
    %116 = vmatprep.subr.mxu0 0.0
    %117 = vmatpush1.msra.mxu0 0.0
    %118 = vmatprep.subr.mxu0 0.0
    %119 = vmatpush1.msra.mxu0 0.0
    %120 = vmatprep.subr.mxu0 0.0
    %121 = vmatpush1.msra.mxu0 0.0
    %122 = vmatprep.subr.mxu0 0.0
    %123 = vmatpush1.msra.mxu0 0.0
    %124 = vmatprep.subr.mxu0 0.0
    %125 = vmatpush1.msra.mxu0 0.0
    %126 = vmatprep.subr.mxu0 0.0
    %127 = vmatpush1.msra.mxu0 0.0
    %128 = vmatprep.subr.mxu0 0.0
    %129 = vmatpush1.msra.mxu0 0.0
    %130 = vmatprep.subr.mxu0 0.0
    %131 = vmatpush1.msra.mxu0 0.0
    %132 = vmatprep.subr.mxu0 0.0
    %133 = vmatpush1.msra.mxu0 %v95
    %134 = vmatprep.subr.mxu0 0.0
    %135 = vmatpush1.msra.mxu0 %v94
    %136 = vmatprep.subr.mxu0 0.0
    %137 = vmatpush1.msra.mxu0 %v93
    %138 = vmatprep.subr.mxu0 0.0
    %139 = vmatpush1.msra.mxu0 %v92
    %140 = vmatprep.subr.mxu0 0.0
    %141 = vmatpush2.msra.mxu0 0.0
    %142 = vmatprep.subr.mxu0 0.0
    %143 = vmatpush2.msra.mxu0 0.0
    %144 = vmatprep.subr.mxu0 0.0
    %145 = vmatpush2.msra.mxu0 0.0
    %146 = vmatprep.subr.mxu0 0.0
    %147 = vmatpush2.msra.mxu0 0.0
    %148 = vmatprep.subr.mxu0 0.0
    %149 = vmatpush2.msra.mxu0 0.0
    %150 = vmatprep.subr.mxu0 0.0
    %151 = vmatpush2.msra.mxu0 0.0
    %152 = vmatprep.subr.mxu0 0.0
    %153 = vmatpush2.msra.mxu0 0.0
    %154 = vmatprep.subr.mxu0 0.0
    %155 = vmatpush2.msra.mxu0 0.0
    %156 = vmatprep.subr.mxu0 0.0
    %157 = vmatpush2.msra.mxu0 0.0
    %158 = vmatprep.subr.mxu0 0.0
    %159 = vmatpush2.msra.mxu0 0.0
    %160 = vmatprep.subr.mxu0 0.0
    %161 = vmatpush2.msra.mxu0 0.0
    %162 = vmatprep.subr.mxu0 0.0
    %163 = vmatpush2.msra.mxu0 0.0
    %164 = vmatprep.subr.mxu0 0.0
    %165 = vmatpush2.msra.mxu0 0.0
    %166 = vmatprep.subr.mxu0 0.0
    %167 = vmatpush2.msra.mxu0 0.0
    %168 = vmatprep.subr.mxu0 0.0
    %169 = vmatpush2.msra.mxu0 0.0
    %170 = vmatprep.subr.mxu0 0.0
    %171 = vmatpush2.msra.mxu0 0.0
    %172 = vmatprep.mubr.f32.mxu0 0.0
    %173 = vmatmul.mubr.f32.gmra.mxu0 %v103
    %v174 = vpop.f32.mrf.mxu0
    %v175 = vadd.f32 %v100, %v174
    %v176 = vpop.f32.mrf.mxu0
    %177 = vmatprep.mubr.f32.mxu0 0.0
    %178 = vmatmul.mubr.f32.gmra.mxu0 %v106
    %v179 = vpop.f32.mrf.mxu0
    %v180 = vadd.f32 %v100, %v179
    %v181 = vpop.f32.mrf.mxu0
    %182 = vdwg.mxu0
    %s183 = scalar_lea.vmem %s4, 128
    %v184 = vld [vmem:[%s183] sm:$0xff]
    %v185 = vld [vmem:[%s183 + $0x8] sm:$0xff]
    %v186 = vld [vmem:[%s183 + $0x10] sm:$0xff]
    %v187 = vld [vmem:[%s183 + $0x18] sm:$0xff]
    %v188 = vld [vmem:[%s5 + $0x4] sm:$0x1]
    %v189 = vlaneseq
    %v190 = vshrl.u32 %v189, 7
    %v191 = vsub.s32 0, %v190
    %v192 = vrot.slane %v188, %v191
    %193 = vmatprep.subr.mxu0 0.0
    %194 = vmatpush1.msra.mxu0 0.0
    %195 = vmatprep.subr.mxu0 0.0
    %196 = vmatpush1.msra.mxu0 0.0
    %197 = vmatprep.subr.mxu0 0.0
    %198 = vmatpush1.msra.mxu0 0.0
    %199 = vmatprep.subr.mxu0 0.0
    %200 = vmatpush1.msra.mxu0 0.0
    %201 = vmatprep.subr.mxu0 0.0
    %202 = vmatpush1.msra.mxu0 0.0
    %203 = vmatprep.subr.mxu0 0.0
    %204 = vmatpush1.msra.mxu0 0.0
    %205 = vmatprep.subr.mxu0 0.0
    %206 = vmatpush1.msra.mxu0 0.0
    %207 = vmatprep.subr.mxu0 0.0
    %208 = vmatpush1.msra.mxu0 0.0
    %209 = vmatprep.subr.mxu0 0.0
    %210 = vmatpush1.msra.mxu0 0.0
    %211 = vmatprep.subr.mxu0 0.0
    %212 = vmatpush1.msra.mxu0 0.0
    %213 = vmatprep.subr.mxu0 0.0
    %214 = vmatpush1.msra.mxu0 0.0
    %215 = vmatprep.subr.mxu0 0.0
    %216 = vmatpush1.msra.mxu0 0.0
    %217 = vmatprep.subr.mxu0 0.0
    %218 = vmatpush1.msra.mxu0 %v187
    %219 = vmatprep.subr.mxu0 0.0
    %220 = vmatpush1.msra.mxu0 %v186
    %221 = vmatprep.subr.mxu0 0.0
    %222 = vmatpush1.msra.mxu0 %v185
    %223 = vmatprep.subr.mxu0 0.0
    %224 = vmatpush1.msra.mxu0 %v184
    %225 = vmatprep.subr.mxu0 0.0
    %226 = vmatpush2.msra.mxu0 0.0
    %227 = vmatprep.subr.mxu0 0.0
    %228 = vmatpush2.msra.mxu0 0.0
    %229 = vmatprep.subr.mxu0 0.0
    %230 = vmatpush2.msra.mxu0 0.0
    %231 = vmatprep.subr.mxu0 0.0
    %232 = vmatpush2.msra.mxu0 0.0
    %233 = vmatprep.subr.mxu0 0.0
    %234 = vmatpush2.msra.mxu0 0.0
    %235 = vmatprep.subr.mxu0 0.0
    %236 = vmatpush2.msra.mxu0 0.0
    %237 = vmatprep.subr.mxu0 0.0
    %238 = vmatpush2.msra.mxu0 0.0
    %239 = vmatprep.subr.mxu0 0.0
    %240 = vmatpush2.msra.mxu0 0.0
    %241 = vmatprep.subr.mxu0 0.0
    %242 = vmatpush2.msra.mxu0 0.0
    %243 = vmatprep.subr.mxu0 0.0
    %244 = vmatpush2.msra.mxu0 0.0
    %245 = vmatprep.subr.mxu0 0.0
    %246 = vmatpush2.msra.mxu0 0.0
    %247 = vmatprep.subr.mxu0 0.0
    %248 = vmatpush2.msra.mxu0 0.0
    %249 = vmatprep.subr.mxu0 0.0
    %250 = vmatpush2.msra.mxu0 0.0
    %251 = vmatprep.subr.mxu0 0.0
    %252 = vmatpush2.msra.mxu0 0.0
    %253 = vmatprep.subr.mxu0 0.0
    %254 = vmatpush2.msra.mxu0 0.0
    %255 = vmatprep.subr.mxu0 0.0
    %256 = vmatpush2.msra.mxu0 0.0
    %257 = vmatprep.mubr.f32.mxu0 0.0
    %258 = vmatmul.mubr.f32.gmra.mxu0 %v103
    %v259 = vpop.f32.mrf.mxu0
    %v260 = vadd.f32 %v192, %v259
    %v261 = vpop.f32.mrf.mxu0
    %262 = vmatprep.mubr.f32.mxu0 0.0
    %263 = vmatmul.mubr.f32.gmra.mxu0 %v106
    %v264 = vpop.f32.mrf.mxu0
    %v265 = vadd.f32 %v192, %v264
    %v266 = vpop.f32.mrf.mxu0
    %267 = vdwg.mxu0
    %s268 = scalar_lea.vmem %s4, 256
    %v269 = vld [vmem:[%s268] sm:$0xff]
    %v270 = vld [vmem:[%s268 + $0x8] sm:$0xff]
    %v271 = vld [vmem:[%s268 + $0x10] sm:$0xff]
    %v272 = vld [vmem:[%s268 + $0x18] sm:$0xff]
    %v273 = vld [vmem:[%s5 + $0x8] sm:$0x1]
    %v274 = vlaneseq
    %v275 = vshrl.u32 %v274, 7
    %v276 = vsub.s32 0, %v275
    %v277 = vrot.slane %v273, %v276
    %v279 = vsel %vm101, %v39, 0
    %v282 = vsel %vm101, %v40, 0
    %284 = vmatprep.subr.mxu0 0.0
    %285 = vmatpush1.msra.mxu0 0.0
    %286 = vmatprep.subr.mxu0 0.0
    %287 = vmatpush1.msra.mxu0 0.0
    %288 = vmatprep.subr.mxu0 0.0
    %289 = vmatpush1.msra.mxu0 0.0
    %290 = vmatprep.subr.mxu0 0.0
    %291 = vmatpush1.msra.mxu0 0.0
    %292 = vmatprep.subr.mxu0 0.0
    %293 = vmatpush1.msra.mxu0 0.0
    %294 = vmatprep.subr.mxu0 0.0
    %295 = vmatpush1.msra.mxu0 0.0
    %296 = vmatprep.subr.mxu0 0.0
    %297 = vmatpush1.msra.mxu0 0.0
    %298 = vmatprep.subr.mxu0 0.0
    %299 = vmatpush1.msra.mxu0 0.0
    %300 = vmatprep.subr.mxu0 0.0
    %301 = vmatpush1.msra.mxu0 0.0
    %302 = vmatprep.subr.mxu0 0.0
    %303 = vmatpush1.msra.mxu0 0.0
    %304 = vmatprep.subr.mxu0 0.0
    %305 = vmatpush1.msra.mxu0 0.0
    %306 = vmatprep.subr.mxu0 0.0
    %307 = vmatpush1.msra.mxu0 0.0
    %308 = vmatprep.subr.mxu0 0.0
    %309 = vmatpush1.msra.mxu0 %v272
    %310 = vmatprep.subr.mxu0 0.0
    %311 = vmatpush1.msra.mxu0 %v271
    %312 = vmatprep.subr.mxu0 0.0
    %313 = vmatpush1.msra.mxu0 %v270
    %314 = vmatprep.subr.mxu0 0.0
    %315 = vmatpush1.msra.mxu0 %v269
    %316 = vmatprep.subr.mxu0 0.0
    %317 = vmatpush2.msra.mxu0 0.0
    %318 = vmatprep.subr.mxu0 0.0
    %319 = vmatpush2.msra.mxu0 0.0
    %320 = vmatprep.subr.mxu0 0.0
    %321 = vmatpush2.msra.mxu0 0.0
    %322 = vmatprep.subr.mxu0 0.0
    %323 = vmatpush2.msra.mxu0 0.0
    %324 = vmatprep.subr.mxu0 0.0
    %325 = vmatpush2.msra.mxu0 0.0
    %326 = vmatprep.subr.mxu0 0.0
    %327 = vmatpush2.msra.mxu0 0.0
    %328 = vmatprep.subr.mxu0 0.0
    %329 = vmatpush2.msra.mxu0 0.0
    %330 = vmatprep.subr.mxu0 0.0
    %331 = vmatpush2.msra.mxu0 0.0
    %332 = vmatprep.subr.mxu0 0.0
    %333 = vmatpush2.msra.mxu0 0.0
    %334 = vmatprep.subr.mxu0 0.0
    %335 = vmatpush2.msra.mxu0 0.0
    %336 = vmatprep.subr.mxu0 0.0
    %337 = vmatpush2.msra.mxu0 0.0
    %338 = vmatprep.subr.mxu0 0.0
    %339 = vmatpush2.msra.mxu0 0.0
    %340 = vmatprep.subr.mxu0 0.0
    %341 = vmatpush2.msra.mxu0 0.0
    %342 = vmatprep.subr.mxu0 0.0
    %343 = vmatpush2.msra.mxu0 0.0
    %344 = vmatprep.subr.mxu0 0.0
    %345 = vmatpush2.msra.mxu0 0.0
    %346 = vmatprep.subr.mxu0 0.0
    %347 = vmatpush2.msra.mxu0 0.0
    %348 = vmatprep.mubr.f32.mxu0 0.0
    %349 = vmatmul.mubr.f32.gmra.mxu0 %v279
    %v350 = vpop.f32.mrf.mxu0
    %v351 = vadd.f32 %v277, %v350
    %v352 = vpop.f32.mrf.mxu0
    %353 = vmatprep.mubr.f32.mxu0 0.0
    %354 = vmatmul.mubr.f32.gmra.mxu0 %v282
    %v355 = vpop.f32.mrf.mxu0
    %v356 = vadd.f32 %v277, %v355
    %v357 = vpop.f32.mrf.mxu0
    %358 = vdwg.mxu0
    %v359 = vmul.f32 %v175, 0.35355338
    %v360 = vmul.f32 %v180, 0.35355338
    %vm361 = vcmask 64512
    %v363 = vsel %vm361, %v359, 0
    %v366 = vsel %vm361, %v360, 0
    %v369 = vsel %vm361, %v260, 0
    %v372 = vsel %vm361, %v265, 0
    %374 = vmatprep.subr.mxu0 0.0
    %375 = vmatpush1.xpose.msra.mxu0 0.0
    %376 = vmatprep.subr.mxu0 0.0
    %377 = vmatpush1.xpose.msra.mxu0 0.0
    %378 = vmatprep.subr.mxu0 0.0
    %379 = vmatpush1.xpose.msra.mxu0 0.0
    %380 = vmatprep.subr.mxu0 0.0
    %381 = vmatpush1.xpose.msra.mxu0 0.0
    %382 = vmatprep.subr.mxu0 0.0
    %383 = vmatpush1.xpose.msra.mxu0 0.0
    %384 = vmatprep.subr.mxu0 0.0
    %385 = vmatpush1.xpose.msra.mxu0 0.0
    %386 = vmatprep.subr.mxu0 0.0
    %387 = vmatpush1.xpose.msra.mxu0 0.0
    %388 = vmatprep.subr.mxu0 0.0
    %389 = vmatpush1.xpose.msra.mxu0 0.0
    %390 = vmatprep.subr.mxu0 0.0
    %391 = vmatpush1.xpose.msra.mxu0 0.0
    %392 = vmatprep.subr.mxu0 0.0
    %393 = vmatpush1.xpose.msra.mxu0 0.0
    %394 = vmatprep.subr.mxu0 0.0
    %395 = vmatpush1.xpose.msra.mxu0 0.0
    %396 = vmatprep.subr.mxu0 0.0
    %397 = vmatpush1.xpose.msra.mxu0 0.0
    %398 = vmatprep.subr.mxu0 0.0
    %399 = vmatpush1.xpose.msra.mxu0 0.0
    %400 = vmatprep.subr.mxu0 0.0
    %401 = vmatpush1.xpose.msra.mxu0 0.0
    %402 = vmatprep.subr.mxu0 0.0
    %403 = vmatpush1.xpose.msra.mxu0 %v372
    %404 = vmatprep.subr.mxu0 0.0
    %405 = vmatpush1.xpose.msra.mxu0 %v369
    %406 = vmatprep.subr.mxu0 0.0
    %407 = vmatpush2.xpose.msra.mxu0 0.0
    %408 = vmatprep.subr.mxu0 0.0
    %409 = vmatpush2.xpose.msra.mxu0 0.0
    %410 = vmatprep.subr.mxu0 0.0
    %411 = vmatpush2.xpose.msra.mxu0 0.0
    %412 = vmatprep.subr.mxu0 0.0
    %413 = vmatpush2.xpose.msra.mxu0 0.0
    %414 = vmatprep.subr.mxu0 0.0
    %415 = vmatpush2.xpose.msra.mxu0 0.0
    %416 = vmatprep.subr.mxu0 0.0
    %417 = vmatpush2.xpose.msra.mxu0 0.0
    %418 = vmatprep.subr.mxu0 0.0
    %419 = vmatpush2.xpose.msra.mxu0 0.0
    %420 = vmatprep.subr.mxu0 0.0
    %421 = vmatpush2.xpose.msra.mxu0 0.0
    %422 = vmatprep.subr.mxu0 0.0
    %423 = vmatpush2.xpose.msra.mxu0 0.0
    %424 = vmatprep.subr.mxu0 0.0
    %425 = vmatpush2.xpose.msra.mxu0 0.0
    %426 = vmatprep.subr.mxu0 0.0
    %427 = vmatpush2.xpose.msra.mxu0 0.0
    %428 = vmatprep.subr.mxu0 0.0
    %429 = vmatpush2.xpose.msra.mxu0 0.0
    %430 = vmatprep.subr.mxu0 0.0
    %431 = vmatpush2.xpose.msra.mxu0 0.0
    %432 = vmatprep.subr.mxu0 0.0
    %433 = vmatpush2.xpose.msra.mxu0 0.0
    %434 = vmatprep.subr.mxu0 0.0
    %435 = vmatpush2.xpose.msra.mxu0 0.0
    %436 = vmatprep.subr.mxu0 0.0
    %437 = vmatpush2.xpose.msra.mxu0 0.0
    %438 = vmatprep.mubr.f32.mxu0 0.0
    %439 = vmatmul.mubr.f32.gmra.mxu0 %v363
    %v440 = vpop.f32.mrf.mxu0
    %v441 = vadd.f32 0.0, %v440
    %v442 = vpop.f32.mrf.mxu0
    %443 = vmatprep.mubr.f32.mxu0 0.0
    %444 = vmatmul.mubr.f32.gmra.mxu0 %v366
    %v445 = vpop.f32.mrf.mxu0
    %v446 = vadd.f32 0.0, %v445
    %v447 = vpop.f32.mrf.mxu0
    %448 = vdwg.mxu0
    %v449 = vsel %vm88, %v441, -1e+30
    %v450 = vsel %vm89, %v446, -1e+30
    %vm451 = vcmask 130048
    %v452 = vsel %vm451, %v449, -inf
    %453 = vmax.xlane.f32.xlu0 %v452
    %v454 = vpop.xlane.xlu0 %453
    %v455 = vsel %vm451, %v450, -inf
    %456 = vmax.xlane.f32.xlu0 %v455
    %v457 = vpop.xlane.xlu0 %456
    %v458 = vsub.f32 %v449, %v454
    %v459 = vsub.f32 %v450, %v457
    %v460 = vmul.f32 %v458, 1.442695
    %v461 = vpow.pop %v460
    %v462 = vmul.f32 %v459, 1.442695
    %v463 = vpow.pop %v462
    %v464 = vsel %vm451, %v461, 0.0
    %465 = vadd.xlane.f32.xlu0 %v464
    %v466 = vpop.xlane.xlu0 %465
    %v467 = vsel %vm451, %v463, 0.0
    %468 = vadd.xlane.f32.xlu0 %v467
    %v469 = vpop.xlane.xlu0 %468
    %v470 = vrcp.pop %v466
    %v471 = vrcp.pop %v469
    %v473 = vsel %vm451, %v461, 0
    %v476 = vsel %vm451, %v463, 0
    %478 = vmatprep.subr.mxu0 0.0
    %479 = vmatpush1.msra.mxu0 0.0
    %480 = vmatprep.subr.mxu0 0.0
    %481 = vmatpush1.msra.mxu0 0.0
    %482 = vmatprep.subr.mxu0 0.0
    %483 = vmatpush1.msra.mxu0 0.0
    %484 = vmatprep.subr.mxu0 0.0
    %485 = vmatpush1.msra.mxu0 0.0
    %486 = vmatprep.subr.mxu0 0.0
    %487 = vmatpush1.msra.mxu0 0.0
    %488 = vmatprep.subr.mxu0 0.0
    %489 = vmatpush1.msra.mxu0 0.0
    %490 = vmatprep.subr.mxu0 0.0
    %491 = vmatpush1.msra.mxu0 0.0
    %492 = vmatprep.subr.mxu0 0.0
    %493 = vmatpush1.msra.mxu0 0.0
    %494 = vmatprep.subr.mxu0 0.0
    %495 = vmatpush1.msra.mxu0 0.0
    %496 = vmatprep.subr.mxu0 0.0
    %497 = vmatpush1.msra.mxu0 0.0
    %498 = vmatprep.subr.mxu0 0.0
    %499 = vmatpush1.msra.mxu0 0.0
    %500 = vmatprep.subr.mxu0 0.0
    %501 = vmatpush1.msra.mxu0 0.0
    %502 = vmatprep.subr.mxu0 0.0
    %503 = vmatpush1.msra.mxu0 0.0
    %504 = vmatprep.subr.mxu0 0.0
    %505 = vmatpush1.msra.mxu0 0.0
    %506 = vmatprep.subr.mxu0 0.0
    %507 = vmatpush1.msra.mxu0 %v356
    %508 = vmatprep.subr.mxu0 0.0
    %509 = vmatpush1.msra.mxu0 %v351
    %510 = vmatprep.subr.mxu0 0.0
    %511 = vmatpush2.msra.mxu0 0.0
    %512 = vmatprep.subr.mxu0 0.0
    %513 = vmatpush2.msra.mxu0 0.0
    %514 = vmatprep.subr.mxu0 0.0
    %515 = vmatpush2.msra.mxu0 0.0
    %516 = vmatprep.subr.mxu0 0.0
    %517 = vmatpush2.msra.mxu0 0.0
    %518 = vmatprep.subr.mxu0 0.0
    %519 = vmatpush2.msra.mxu0 0.0
    %520 = vmatprep.subr.mxu0 0.0
    %521 = vmatpush2.msra.mxu0 0.0
    %522 = vmatprep.subr.mxu0 0.0
    %523 = vmatpush2.msra.mxu0 0.0
    %524 = vmatprep.subr.mxu0 0.0
    %525 = vmatpush2.msra.mxu0 0.0
    %526 = vmatprep.subr.mxu0 0.0
    %527 = vmatpush2.msra.mxu0 0.0
    %528 = vmatprep.subr.mxu0 0.0
    %529 = vmatpush2.msra.mxu0 0.0
    %530 = vmatprep.subr.mxu0 0.0
    %531 = vmatpush2.msra.mxu0 0.0
    %532 = vmatprep.subr.mxu0 0.0
    %533 = vmatpush2.msra.mxu0 0.0
    %534 = vmatprep.subr.mxu0 0.0
    %535 = vmatpush2.msra.mxu0 0.0
    %536 = vmatprep.subr.mxu0 0.0
    %537 = vmatpush2.msra.mxu0 0.0
    %538 = vmatprep.subr.mxu0 0.0
    %539 = vmatpush2.msra.mxu0 0.0
    %540 = vmatprep.subr.mxu0 0.0
    %541 = vmatpush2.msra.mxu0 0.0
    %542 = vmatprep.mubr.f32.mxu0 0.0
    %543 = vmatmul.mubr.f32.gmra.mxu0 %v473
    %v544 = vpop.f32.mrf.mxu0
    %v545 = vadd.f32 0.0, %v544
    %v546 = vpop.f32.mrf.mxu0
    %547 = vmatprep.mubr.f32.mxu0 0.0
    %548 = vmatmul.mubr.f32.gmra.mxu0 %v476
    %v549 = vpop.f32.mrf.mxu0
    %v550 = vadd.f32 0.0, %v549
    %v551 = vpop.f32.mrf.mxu0
    %552 = vdwg.mxu0
    %v553 = vmul.f32 %v545, %v470
    %v554 = vmul.f32 %v550, %v471
    %v555 = vld [vmem:[%s6] sm:$0xff]
    %s556 = scalar_lea.vmem %s4, 32
    %v557 = vld [vmem:[%s556] sm:$0xff]
    %v558 = vld [vmem:[%s556 + $0x8] sm:$0xff]
    %v559 = vld [vmem:[%s556 + $0x10] sm:$0xff]
    %v560 = vld [vmem:[%s556 + $0x18] sm:$0xff]
    %v561 = vld [vmem:[%s5 + $0x1] sm:$0x1]
    %v562 = vlaneseq
    %v563 = vshrl.u32 %v562, 7
    %v564 = vsub.s32 0, %v563
    %v565 = vrot.slane %v561, %v564
    %566 = vmatprep.subr.mxu0 0.0
    %567 = vmatpush1.msra.mxu0 0.0
    %568 = vmatprep.subr.mxu0 0.0
    %569 = vmatpush1.msra.mxu0 0.0
    %570 = vmatprep.subr.mxu0 0.0
    %571 = vmatpush1.msra.mxu0 0.0
    %572 = vmatprep.subr.mxu0 0.0
    %573 = vmatpush1.msra.mxu0 0.0
    %574 = vmatprep.subr.mxu0 0.0
    %575 = vmatpush1.msra.mxu0 0.0
    %576 = vmatprep.subr.mxu0 0.0
    %577 = vmatpush1.msra.mxu0 0.0
    %578 = vmatprep.subr.mxu0 0.0
    %579 = vmatpush1.msra.mxu0 0.0
    %580 = vmatprep.subr.mxu0 0.0
    %581 = vmatpush1.msra.mxu0 0.0
    %582 = vmatprep.subr.mxu0 0.0
    %583 = vmatpush1.msra.mxu0 0.0
    %584 = vmatprep.subr.mxu0 0.0
    %585 = vmatpush1.msra.mxu0 0.0
    %586 = vmatprep.subr.mxu0 0.0
    %587 = vmatpush1.msra.mxu0 0.0
    %588 = vmatprep.subr.mxu0 0.0
    %589 = vmatpush1.msra.mxu0 0.0
    %590 = vmatprep.subr.mxu0 0.0
    %591 = vmatpush1.msra.mxu0 %v560
    %592 = vmatprep.subr.mxu0 0.0
    %593 = vmatpush1.msra.mxu0 %v559
    %594 = vmatprep.subr.mxu0 0.0
    %595 = vmatpush1.msra.mxu0 %v558
    %596 = vmatprep.subr.mxu0 0.0
    %597 = vmatpush1.msra.mxu0 %v557
    %598 = vmatprep.subr.mxu0 0.0
    %599 = vmatpush2.msra.mxu0 0.0
    %600 = vmatprep.subr.mxu0 0.0
    %601 = vmatpush2.msra.mxu0 0.0
    %602 = vmatprep.subr.mxu0 0.0
    %603 = vmatpush2.msra.mxu0 0.0
    %604 = vmatprep.subr.mxu0 0.0
    %605 = vmatpush2.msra.mxu0 0.0
    %606 = vmatprep.subr.mxu0 0.0
    %607 = vmatpush2.msra.mxu0 0.0
    %608 = vmatprep.subr.mxu0 0.0
    %609 = vmatpush2.msra.mxu0 0.0
    %610 = vmatprep.subr.mxu0 0.0
    %611 = vmatpush2.msra.mxu0 0.0
    %612 = vmatprep.subr.mxu0 0.0
    %613 = vmatpush2.msra.mxu0 0.0
    %614 = vmatprep.subr.mxu0 0.0
    %615 = vmatpush2.msra.mxu0 0.0
    %616 = vmatprep.subr.mxu0 0.0
    %617 = vmatpush2.msra.mxu0 0.0
    %618 = vmatprep.subr.mxu0 0.0
    %619 = vmatpush2.msra.mxu0 0.0
    %620 = vmatprep.subr.mxu0 0.0
    %621 = vmatpush2.msra.mxu0 0.0
    %622 = vmatprep.subr.mxu0 0.0
    %623 = vmatpush2.msra.mxu0 0.0
    %624 = vmatprep.subr.mxu0 0.0
    %625 = vmatpush2.msra.mxu0 0.0
    %626 = vmatprep.subr.mxu0 0.0
    %627 = vmatpush2.msra.mxu0 0.0
    %628 = vmatprep.subr.mxu0 0.0
    %629 = vmatpush2.msra.mxu0 0.0
    %630 = vmatprep.mubr.f32.mxu0 0.0
    %631 = vmatmul.mubr.f32.gmra.mxu0 %v103
    %v632 = vpop.f32.mrf.mxu0
    %v633 = vadd.f32 %v565, %v632
    %v634 = vpop.f32.mrf.mxu0
    %635 = vmatprep.mubr.f32.mxu0 0.0
    %636 = vmatmul.mubr.f32.gmra.mxu0 %v106
    %v637 = vpop.f32.mrf.mxu0
    %v638 = vadd.f32 %v565, %v637
    %v639 = vpop.f32.mrf.mxu0
    %640 = vdwg.mxu0
    %s641 = scalar_lea.vmem %s4, 160
    %v642 = vld [vmem:[%s641] sm:$0xff]
    %v643 = vld [vmem:[%s641 + $0x8] sm:$0xff]
    %v644 = vld [vmem:[%s641 + $0x10] sm:$0xff]
    %v645 = vld [vmem:[%s641 + $0x18] sm:$0xff]
    %v646 = vld [vmem:[%s5 + $0x5] sm:$0x1]
    %v647 = vlaneseq
    %v648 = vshrl.u32 %v647, 7
    %v649 = vsub.s32 0, %v648
    %v650 = vrot.slane %v646, %v649
    %651 = vmatprep.subr.mxu0 0.0
    %652 = vmatpush1.msra.mxu0 0.0
    %653 = vmatprep.subr.mxu0 0.0
    %654 = vmatpush1.msra.mxu0 0.0
    %655 = vmatprep.subr.mxu0 0.0
    %656 = vmatpush1.msra.mxu0 0.0
    %657 = vmatprep.subr.mxu0 0.0
    %658 = vmatpush1.msra.mxu0 0.0
    %659 = vmatprep.subr.mxu0 0.0
    %660 = vmatpush1.msra.mxu0 0.0
    %661 = vmatprep.subr.mxu0 0.0
    %662 = vmatpush1.msra.mxu0 0.0
    %663 = vmatprep.subr.mxu0 0.0
    %664 = vmatpush1.msra.mxu0 0.0
    %665 = vmatprep.subr.mxu0 0.0
    %666 = vmatpush1.msra.mxu0 0.0
    %667 = vmatprep.subr.mxu0 0.0
    %668 = vmatpush1.msra.mxu0 0.0
    %669 = vmatprep.subr.mxu0 0.0
    %670 = vmatpush1.msra.mxu0 0.0
    %671 = vmatprep.subr.mxu0 0.0
    %672 = vmatpush1.msra.mxu0 0.0
    %673 = vmatprep.subr.mxu0 0.0
    %674 = vmatpush1.msra.mxu0 0.0
    %675 = vmatprep.subr.mxu0 0.0
    %676 = vmatpush1.msra.mxu0 %v645
    %677 = vmatprep.subr.mxu0 0.0
    %678 = vmatpush1.msra.mxu0 %v644
    %679 = vmatprep.subr.mxu0 0.0
    %680 = vmatpush1.msra.mxu0 %v643
    %681 = vmatprep.subr.mxu0 0.0
    %682 = vmatpush1.msra.mxu0 %v642
    %683 = vmatprep.subr.mxu0 0.0
    %684 = vmatpush2.msra.mxu0 0.0
    %685 = vmatprep.subr.mxu0 0.0
    %686 = vmatpush2.msra.mxu0 0.0
    %687 = vmatprep.subr.mxu0 0.0
    %688 = vmatpush2.msra.mxu0 0.0
    %689 = vmatprep.subr.mxu0 0.0
    %690 = vmatpush2.msra.mxu0 0.0
    %691 = vmatprep.subr.mxu0 0.0
    %692 = vmatpush2.msra.mxu0 0.0
    %693 = vmatprep.subr.mxu0 0.0
    %694 = vmatpush2.msra.mxu0 0.0
    %695 = vmatprep.subr.mxu0 0.0
    %696 = vmatpush2.msra.mxu0 0.0
    %697 = vmatprep.subr.mxu0 0.0
    %698 = vmatpush2.msra.mxu0 0.0
    %699 = vmatprep.subr.mxu0 0.0
    %700 = vmatpush2.msra.mxu0 0.0
    %701 = vmatprep.subr.mxu0 0.0
    %702 = vmatpush2.msra.mxu0 0.0
    %703 = vmatprep.subr.mxu0 0.0
    %704 = vmatpush2.msra.mxu0 0.0
    %705 = vmatprep.subr.mxu0 0.0
    %706 = vmatpush2.msra.mxu0 0.0
    %707 = vmatprep.subr.mxu0 0.0
    %708 = vmatpush2.msra.mxu0 0.0
    %709 = vmatprep.subr.mxu0 0.0
    %710 = vmatpush2.msra.mxu0 0.0
    %711 = vmatprep.subr.mxu0 0.0
    %712 = vmatpush2.msra.mxu0 0.0
    %713 = vmatprep.subr.mxu0 0.0
    %714 = vmatpush2.msra.mxu0 0.0
    %715 = vmatprep.mubr.f32.mxu0 0.0
    %716 = vmatmul.mubr.f32.gmra.mxu0 %v103
    %v717 = vpop.f32.mrf.mxu0
    %v718 = vadd.f32 %v650, %v717
    %v719 = vpop.f32.mrf.mxu0
    %720 = vmatprep.mubr.f32.mxu0 0.0
    %721 = vmatmul.mubr.f32.gmra.mxu0 %v106
    %v722 = vpop.f32.mrf.mxu0
    %v723 = vadd.f32 %v650, %v722
    %v724 = vpop.f32.mrf.mxu0
    %725 = vdwg.mxu0
    %s726 = scalar_lea.vmem %s4, 288
    %v727 = vld [vmem:[%s726] sm:$0xff]
    %v728 = vld [vmem:[%s726 + $0x8] sm:$0xff]
    %v729 = vld [vmem:[%s726 + $0x10] sm:$0xff]
    %v730 = vld [vmem:[%s726 + $0x18] sm:$0xff]
    %v731 = vld [vmem:[%s5 + $0x9] sm:$0x1]
    %v732 = vlaneseq
    %v733 = vshrl.u32 %v732, 7
    %v734 = vsub.s32 0, %v733
    %v735 = vrot.slane %v731, %v734
    %736 = vmatprep.subr.mxu0 0.0
    %737 = vmatpush1.msra.mxu0 0.0
    %738 = vmatprep.subr.mxu0 0.0
    %739 = vmatpush1.msra.mxu0 0.0
    %740 = vmatprep.subr.mxu0 0.0
    %741 = vmatpush1.msra.mxu0 0.0
    %742 = vmatprep.subr.mxu0 0.0
    %743 = vmatpush1.msra.mxu0 0.0
    %744 = vmatprep.subr.mxu0 0.0
    %745 = vmatpush1.msra.mxu0 0.0
    %746 = vmatprep.subr.mxu0 0.0
    %747 = vmatpush1.msra.mxu0 0.0
    %748 = vmatprep.subr.mxu0 0.0
    %749 = vmatpush1.msra.mxu0 0.0
    %750 = vmatprep.subr.mxu0 0.0
    %751 = vmatpush1.msra.mxu0 0.0
    %752 = vmatprep.subr.mxu0 0.0
    %753 = vmatpush1.msra.mxu0 0.0
    %754 = vmatprep.subr.mxu0 0.0
    %755 = vmatpush1.msra.mxu0 0.0
    %756 = vmatprep.subr.mxu0 0.0
    %757 = vmatpush1.msra.mxu0 0.0
    %758 = vmatprep.subr.mxu0 0.0
    %759 = vmatpush1.msra.mxu0 0.0
    %760 = vmatprep.subr.mxu0 0.0
    %761 = vmatpush1.msra.mxu0 %v730
    %762 = vmatprep.subr.mxu0 0.0
    %763 = vmatpush1.msra.mxu0 %v729
    %764 = vmatprep.subr.mxu0 0.0
    %765 = vmatpush1.msra.mxu0 %v728
    %766 = vmatprep.subr.mxu0 0.0
    %767 = vmatpush1.msra.mxu0 %v727
    %768 = vmatprep.subr.mxu0 0.0
    %769 = vmatpush2.msra.mxu0 0.0
    %770 = vmatprep.subr.mxu0 0.0
    %771 = vmatpush2.msra.mxu0 0.0
    %772 = vmatprep.subr.mxu0 0.0
    %773 = vmatpush2.msra.mxu0 0.0
    %774 = vmatprep.subr.mxu0 0.0
    %775 = vmatpush2.msra.mxu0 0.0
    %776 = vmatprep.subr.mxu0 0.0
    %777 = vmatpush2.msra.mxu0 0.0
    %778 = vmatprep.subr.mxu0 0.0
    %779 = vmatpush2.msra.mxu0 0.0
    %780 = vmatprep.subr.mxu0 0.0
    %781 = vmatpush2.msra.mxu0 0.0
    %782 = vmatprep.subr.mxu0 0.0
    %783 = vmatpush2.msra.mxu0 0.0
    %784 = vmatprep.subr.mxu0 0.0
    %785 = vmatpush2.msra.mxu0 0.0
    %786 = vmatprep.subr.mxu0 0.0
    %787 = vmatpush2.msra.mxu0 0.0
    %788 = vmatprep.subr.mxu0 0.0
    %789 = vmatpush2.msra.mxu0 0.0
    %790 = vmatprep.subr.mxu0 0.0
    %791 = vmatpush2.msra.mxu0 0.0
    %792 = vmatprep.subr.mxu0 0.0
    %793 = vmatpush2.msra.mxu0 0.0
    %794 = vmatprep.subr.mxu0 0.0
    %795 = vmatpush2.msra.mxu0 0.0
    %796 = vmatprep.subr.mxu0 0.0
    %797 = vmatpush2.msra.mxu0 0.0
    %798 = vmatprep.subr.mxu0 0.0
    %799 = vmatpush2.msra.mxu0 0.0
    %800 = vmatprep.mubr.f32.mxu0 0.0
    %801 = vmatmul.mubr.f32.gmra.mxu0 %v279
    %v802 = vpop.f32.mrf.mxu0
    %v803 = vadd.f32 %v735, %v802
    %v804 = vpop.f32.mrf.mxu0
    %805 = vmatprep.mubr.f32.mxu0 0.0
    %806 = vmatmul.mubr.f32.gmra.mxu0 %v282
    %v807 = vpop.f32.mrf.mxu0
    %v808 = vadd.f32 %v735, %v807
    %v809 = vpop.f32.mrf.mxu0
    %810 = vdwg.mxu0
    %v811 = vmul.f32 %v633, 0.35355338
    %v812 = vmul.f32 %v638, 0.35355338
    %v814 = vsel %vm361, %v811, 0
    %v817 = vsel %vm361, %v812, 0
    %v820 = vsel %vm361, %v718, 0
    %v823 = vsel %vm361, %v723, 0
    %825 = vmatprep.subr.mxu0 0.0
    %826 = vmatpush1.xpose.msra.mxu0 0.0
    %827 = vmatprep.subr.mxu0 0.0
    %828 = vmatpush1.xpose.msra.mxu0 0.0
    %829 = vmatprep.subr.mxu0 0.0
    %830 = vmatpush1.xpose.msra.mxu0 0.0
    %831 = vmatprep.subr.mxu0 0.0
    %832 = vmatpush1.xpose.msra.mxu0 0.0
    %833 = vmatprep.subr.mxu0 0.0
    %834 = vmatpush1.xpose.msra.mxu0 0.0
    %835 = vmatprep.subr.mxu0 0.0
    %836 = vmatpush1.xpose.msra.mxu0 0.0
    %837 = vmatprep.subr.mxu0 0.0
    %838 = vmatpush1.xpose.msra.mxu0 0.0
    %839 = vmatprep.subr.mxu0 0.0
    %840 = vmatpush1.xpose.msra.mxu0 0.0
    %841 = vmatprep.subr.mxu0 0.0
    %842 = vmatpush1.xpose.msra.mxu0 0.0
    %843 = vmatprep.subr.mxu0 0.0
    %844 = vmatpush1.xpose.msra.mxu0 0.0
    %845 = vmatprep.subr.mxu0 0.0
    %846 = vmatpush1.xpose.msra.mxu0 0.0
    %847 = vmatprep.subr.mxu0 0.0
    %848 = vmatpush1.xpose.msra.mxu0 0.0
    %849 = vmatprep.subr.mxu0 0.0
    %850 = vmatpush1.xpose.msra.mxu0 0.0
    %851 = vmatprep.subr.mxu0 0.0
    %852 = vmatpush1.xpose.msra.mxu0 0.0
    %853 = vmatprep.subr.mxu0 0.0
    %854 = vmatpush1.xpose.msra.mxu0 %v823
    %855 = vmatprep.subr.mxu0 0.0
    %856 = vmatpush1.xpose.msra.mxu0 %v820
    %857 = vmatprep.subr.mxu0 0.0
    %858 = vmatpush2.xpose.msra.mxu0 0.0
    %859 = vmatprep.subr.mxu0 0.0
    %860 = vmatpush2.xpose.msra.mxu0 0.0
    %861 = vmatprep.subr.mxu0 0.0
    %862 = vmatpush2.xpose.msra.mxu0 0.0
    %863 = vmatprep.subr.mxu0 0.0
    %864 = vmatpush2.xpose.msra.mxu0 0.0
    %865 = vmatprep.subr.mxu0 0.0
    %866 = vmatpush2.xpose.msra.mxu0 0.0
    %867 = vmatprep.subr.mxu0 0.0
    %868 = vmatpush2.xpose.msra.mxu0 0.0
    %869 = vmatprep.subr.mxu0 0.0
    %870 = vmatpush2.xpose.msra.mxu0 0.0
    %871 = vmatprep.subr.mxu0 0.0
    %872 = vmatpush2.xpose.msra.mxu0 0.0
    %873 = vmatprep.subr.mxu0 0.0
    %874 = vmatpush2.xpose.msra.mxu0 0.0
    %875 = vmatprep.subr.mxu0 0.0
    %876 = vmatpush2.xpose.msra.mxu0 0.0
    %877 = vmatprep.subr.mxu0 0.0
    %878 = vmatpush2.xpose.msra.mxu0 0.0
    %879 = vmatprep.subr.mxu0 0.0
    %880 = vmatpush2.xpose.msra.mxu0 0.0
    %881 = vmatprep.subr.mxu0 0.0
    %882 = vmatpush2.xpose.msra.mxu0 0.0
    %883 = vmatprep.subr.mxu0 0.0
    %884 = vmatpush2.xpose.msra.mxu0 0.0
    %885 = vmatprep.subr.mxu0 0.0
    %886 = vmatpush2.xpose.msra.mxu0 0.0
    %887 = vmatprep.subr.mxu0 0.0
    %888 = vmatpush2.xpose.msra.mxu0 0.0
    %889 = vmatprep.mubr.f32.mxu0 0.0
    %890 = vmatmul.mubr.f32.gmra.mxu0 %v814
    %v891 = vpop.f32.mrf.mxu0
    %v892 = vadd.f32 0.0, %v891
    %v893 = vpop.f32.mrf.mxu0
    %894 = vmatprep.mubr.f32.mxu0 0.0
    %895 = vmatmul.mubr.f32.gmra.mxu0 %v817
    %v896 = vpop.f32.mrf.mxu0
    %v897 = vadd.f32 0.0, %v896
    %v898 = vpop.f32.mrf.mxu0
    %899 = vdwg.mxu0
    %v900 = vsel %vm88, %v892, -1e+30
    %v901 = vsel %vm89, %v897, -1e+30
    %v902 = vsel %vm451, %v900, -inf
    %903 = vmax.xlane.f32.xlu0 %v902
    %v904 = vpop.xlane.xlu0 %903
    %v905 = vsel %vm451, %v901, -inf
    %906 = vmax.xlane.f32.xlu0 %v905
    %v907 = vpop.xlane.xlu0 %906
    %v908 = vsub.f32 %v900, %v904
    %v909 = vsub.f32 %v901, %v907
    %v910 = vmul.f32 %v908, 1.442695
    %v911 = vpow.pop %v910
    %v912 = vmul.f32 %v909, 1.442695
    %v913 = vpow.pop %v912
    %v914 = vsel %vm451, %v911, 0.0
    %915 = vadd.xlane.f32.xlu0 %v914
    %v916 = vpop.xlane.xlu0 %915
    %v917 = vsel %vm451, %v913, 0.0
    %918 = vadd.xlane.f32.xlu0 %v917
    %v919 = vpop.xlane.xlu0 %918
    %v920 = vrcp.pop %v916
    %v921 = vrcp.pop %v919
    %v923 = vsel %vm451, %v911, 0
    %v926 = vsel %vm451, %v913, 0
    %928 = vmatprep.subr.mxu0 0.0
    %929 = vmatpush1.msra.mxu0 0.0
    %930 = vmatprep.subr.mxu0 0.0
    %931 = vmatpush1.msra.mxu0 0.0
    %932 = vmatprep.subr.mxu0 0.0
    %933 = vmatpush1.msra.mxu0 0.0
    %934 = vmatprep.subr.mxu0 0.0
    %935 = vmatpush1.msra.mxu0 0.0
    %936 = vmatprep.subr.mxu0 0.0
    %937 = vmatpush1.msra.mxu0 0.0
    %938 = vmatprep.subr.mxu0 0.0
    %939 = vmatpush1.msra.mxu0 0.0
    %940 = vmatprep.subr.mxu0 0.0
    %941 = vmatpush1.msra.mxu0 0.0
    %942 = vmatprep.subr.mxu0 0.0
    %943 = vmatpush1.msra.mxu0 0.0
    %944 = vmatprep.subr.mxu0 0.0
    %945 = vmatpush1.msra.mxu0 0.0
    %946 = vmatprep.subr.mxu0 0.0
    %947 = vmatpush1.msra.mxu0 0.0
    %948 = vmatprep.subr.mxu0 0.0
    %949 = vmatpush1.msra.mxu0 0.0
    %950 = vmatprep.subr.mxu0 0.0
    %951 = vmatpush1.msra.mxu0 0.0
    %952 = vmatprep.subr.mxu0 0.0
    %953 = vmatpush1.msra.mxu0 0.0
    %954 = vmatprep.subr.mxu0 0.0
    %955 = vmatpush1.msra.mxu0 0.0
    %956 = vmatprep.subr.mxu0 0.0
    %957 = vmatpush1.msra.mxu0 %v808
    %958 = vmatprep.subr.mxu0 0.0
    %959 = vmatpush1.msra.mxu0 %v803
    %960 = vmatprep.subr.mxu0 0.0
    %961 = vmatpush2.msra.mxu0 0.0
    %962 = vmatprep.subr.mxu0 0.0
    %963 = vmatpush2.msra.mxu0 0.0
    %964 = vmatprep.subr.mxu0 0.0
    %965 = vmatpush2.msra.mxu0 0.0
    %966 = vmatprep.subr.mxu0 0.0
    %967 = vmatpush2.msra.mxu0 0.0
    %968 = vmatprep.subr.mxu0 0.0
    %969 = vmatpush2.msra.mxu0 0.0
    %970 = vmatprep.subr.mxu0 0.0
    %971 = vmatpush2.msra.mxu0 0.0
    %972 = vmatprep.subr.mxu0 0.0
    %973 = vmatpush2.msra.mxu0 0.0
    %974 = vmatprep.subr.mxu0 0.0
    %975 = vmatpush2.msra.mxu0 0.0
    %976 = vmatprep.subr.mxu0 0.0
    %977 = vmatpush2.msra.mxu0 0.0
    %978 = vmatprep.subr.mxu0 0.0
    %979 = vmatpush2.msra.mxu0 0.0
    %980 = vmatprep.subr.mxu0 0.0
    %981 = vmatpush2.msra.mxu0 0.0
    %982 = vmatprep.subr.mxu0 0.0
    %983 = vmatpush2.msra.mxu0 0.0
    %984 = vmatprep.subr.mxu0 0.0
    %985 = vmatpush2.msra.mxu0 0.0
    %986 = vmatprep.subr.mxu0 0.0
    %987 = vmatpush2.msra.mxu0 0.0
    %988 = vmatprep.subr.mxu0 0.0
    %989 = vmatpush2.msra.mxu0 0.0
    %990 = vmatprep.subr.mxu0 0.0
    %991 = vmatpush2.msra.mxu0 0.0
    %992 = vmatprep.mubr.f32.mxu0 0.0
    %993 = vmatmul.mubr.f32.gmra.mxu0 %v923
    %v994 = vpop.f32.mrf.mxu0
    %v995 = vadd.f32 0.0, %v994
    %v996 = vpop.f32.mrf.mxu0
    %997 = vmatprep.mubr.f32.mxu0 0.0
    %998 = vmatmul.mubr.f32.gmra.mxu0 %v926
    %v999 = vpop.f32.mrf.mxu0
    %v1000 = vadd.f32 0.0, %v999
    %v1001 = vpop.f32.mrf.mxu0
    %1002 = vdwg.mxu0
    %v1003 = vmul.f32 %v995, %v920
    %v1004 = vmul.f32 %v1000, %v921
    %s1005 = scalar_lea.vmem %s6, 8
    %v1006 = vld [vmem:[%s1005] sm:$0xff]
    %v1008 = vsel %vm361, %v1003, 0
    %v1011 = vsel %vm361, %v1004, 0
    %1013 = vmatprep.subr.mxu0 0.0
    %1014 = vmatpush1.msra.mxu0 0.0
    %1015 = vmatprep.subr.mxu0 0.0
    %1016 = vmatpush1.msra.mxu0 0.0
    %1017 = vmatprep.subr.mxu0 0.0
    %1018 = vmatpush1.msra.mxu0 0.0
    %1019 = vmatprep.subr.mxu0 0.0
    %1020 = vmatpush1.msra.mxu0 0.0
    %1021 = vmatprep.subr.mxu0 0.0
    %1022 = vmatpush1.msra.mxu0 0.0
    %1023 = vmatprep.subr.mxu0 0.0
    %1024 = vmatpush1.msra.mxu0 0.0
    %1025 = vmatprep.subr.mxu0 0.0
    %1026 = vmatpush1.msra.mxu0 0.0
    %1027 = vmatprep.subr.mxu0 0.0
    %1028 = vmatpush1.msra.mxu0 0.0
    %1029 = vmatprep.subr.mxu0 0.0
    %1030 = vmatpush1.msra.mxu0 0.0
    %1031 = vmatprep.subr.mxu0 0.0
    %1032 = vmatpush1.msra.mxu0 0.0
    %1033 = vmatprep.subr.mxu0 0.0
    %1034 = vmatpush1.msra.mxu0 0.0
    %1035 = vmatprep.subr.mxu0 0.0
    %1036 = vmatpush1.msra.mxu0 0.0
    %1037 = vmatprep.subr.mxu0 0.0
    %1038 = vmatpush1.msra.mxu0 0.0
    %1039 = vmatprep.subr.mxu0 0.0
    %1040 = vmatpush1.msra.mxu0 0.0
    %1041 = vmatprep.subr.mxu0 0.0
    %1042 = vmatpush1.msra.mxu0 0.0
    %1043 = vmatprep.subr.mxu0 0.0
    %1044 = vmatpush1.msra.mxu0 %v1006
    %1045 = vmatprep.subr.mxu0 0.0
    %1046 = vmatpush2.msra.mxu0 0.0
    %1047 = vmatprep.subr.mxu0 0.0
    %1048 = vmatpush2.msra.mxu0 0.0
    %1049 = vmatprep.subr.mxu0 0.0
    %1050 = vmatpush2.msra.mxu0 0.0
    %1051 = vmatprep.subr.mxu0 0.0
    %1052 = vmatpush2.msra.mxu0 0.0
    %1053 = vmatprep.subr.mxu0 0.0
    %1054 = vmatpush2.msra.mxu0 0.0
    %1055 = vmatprep.subr.mxu0 0.0
    %1056 = vmatpush2.msra.mxu0 0.0
    %1057 = vmatprep.subr.mxu0 0.0
    %1058 = vmatpush2.msra.mxu0 0.0
    %1059 = vmatprep.subr.mxu0 0.0
    %1060 = vmatpush2.msra.mxu0 0.0
    %1061 = vmatprep.subr.mxu0 0.0
    %1062 = vmatpush2.msra.mxu0 0.0
    %1063 = vmatprep.subr.mxu0 0.0
    %1064 = vmatpush2.msra.mxu0 0.0
    %1065 = vmatprep.subr.mxu0 0.0
    %1066 = vmatpush2.msra.mxu0 0.0
    %1067 = vmatprep.subr.mxu0 0.0
    %1068 = vmatpush2.msra.mxu0 0.0
    %1069 = vmatprep.subr.mxu0 0.0
    %1070 = vmatpush2.msra.mxu0 0.0
    %1071 = vmatprep.subr.mxu0 0.0
    %1072 = vmatpush2.msra.mxu0 0.0
    %1073 = vmatprep.subr.mxu0 0.0
    %1074 = vmatpush2.msra.mxu0 0.0
    %1075 = vmatprep.subr.mxu0 0.0
    %1076 = vmatpush2.msra.mxu0 0.0
    %1077 = vmatprep.mubr.f32.mxu0 0.0
    %1078 = vmatmul.mubr.f32.gmra.mxu0 %v1008
    %v1079 = vpop.f32.mrf.mxu0
    %v1080 = vadd.f32 0.0, %v1079
    %v1081 = vpop.f32.mrf.mxu0
    %1082 = vmatprep.mubr.f32.mxu0 0.0
    %1083 = vmatmul.mubr.f32.gmra.mxu0 %v1011
    %v1084 = vpop.f32.mrf.mxu0
    %v1085 = vadd.f32 0.0, %v1084
    %v1086 = vpop.f32.mrf.mxu0
    %1087 = vdwg.mxu0
    %v1089 = vsel %vm361, %v553, 0
    %v1092 = vsel %vm361, %v554, 0
    %1094 = vmatprep.subr.mxu0 0.0
    %1095 = vmatpush1.msra.mxu0 0.0
    %1096 = vmatprep.subr.mxu0 0.0
    %1097 = vmatpush1.msra.mxu0 0.0
    %1098 = vmatprep.subr.mxu0 0.0
    %1099 = vmatpush1.msra.mxu0 0.0
    %1100 = vmatprep.subr.mxu0 0.0
    %1101 = vmatpush1.msra.mxu0 0.0
    %1102 = vmatprep.subr.mxu0 0.0
    %1103 = vmatpush1.msra.mxu0 0.0
    %1104 = vmatprep.subr.mxu0 0.0
    %1105 = vmatpush1.msra.mxu0 0.0
    %1106 = vmatprep.subr.mxu0 0.0
    %1107 = vmatpush1.msra.mxu0 0.0
    %1108 = vmatprep.subr.mxu0 0.0
    %1109 = vmatpush1.msra.mxu0 0.0
    %1110 = vmatprep.subr.mxu0 0.0
    %1111 = vmatpush1.msra.mxu0 0.0
    %1112 = vmatprep.subr.mxu0 0.0
    %1113 = vmatpush1.msra.mxu0 0.0
    %1114 = vmatprep.subr.mxu0 0.0
    %1115 = vmatpush1.msra.mxu0 0.0
    %1116 = vmatprep.subr.mxu0 0.0
    %1117 = vmatpush1.msra.mxu0 0.0
    %1118 = vmatprep.subr.mxu0 0.0
    %1119 = vmatpush1.msra.mxu0 0.0
    %1120 = vmatprep.subr.mxu0 0.0
    %1121 = vmatpush1.msra.mxu0 0.0
    %1122 = vmatprep.subr.mxu0 0.0
    %1123 = vmatpush1.msra.mxu0 0.0
    %1124 = vmatprep.subr.mxu0 0.0
    %1125 = vmatpush1.msra.mxu0 %v555
    %1126 = vmatprep.subr.mxu0 0.0
    %1127 = vmatpush2.msra.mxu0 0.0
    %1128 = vmatprep.subr.mxu0 0.0
    %1129 = vmatpush2.msra.mxu0 0.0
    %1130 = vmatprep.subr.mxu0 0.0
    %1131 = vmatpush2.msra.mxu0 0.0
    %1132 = vmatprep.subr.mxu0 0.0
    %1133 = vmatpush2.msra.mxu0 0.0
    %1134 = vmatprep.subr.mxu0 0.0
    %1135 = vmatpush2.msra.mxu0 0.0
    %1136 = vmatprep.subr.mxu0 0.0
    %1137 = vmatpush2.msra.mxu0 0.0
    %1138 = vmatprep.subr.mxu0 0.0
    %1139 = vmatpush2.msra.mxu0 0.0
    %1140 = vmatprep.subr.mxu0 0.0
    %1141 = vmatpush2.msra.mxu0 0.0
    %1142 = vmatprep.subr.mxu0 0.0
    %1143 = vmatpush2.msra.mxu0 0.0
    %1144 = vmatprep.subr.mxu0 0.0
    %1145 = vmatpush2.msra.mxu0 0.0
    %1146 = vmatprep.subr.mxu0 0.0
    %1147 = vmatpush2.msra.mxu0 0.0
    %1148 = vmatprep.subr.mxu0 0.0
    %1149 = vmatpush2.msra.mxu0 0.0
    %1150 = vmatprep.subr.mxu0 0.0
    %1151 = vmatpush2.msra.mxu0 0.0
    %1152 = vmatprep.subr.mxu0 0.0
    %1153 = vmatpush2.msra.mxu0 0.0
    %1154 = vmatprep.subr.mxu0 0.0
    %1155 = vmatpush2.msra.mxu0 0.0
    %1156 = vmatprep.subr.mxu0 0.0
    %1157 = vmatpush2.msra.mxu0 0.0
    %1158 = vmatprep.mubr.f32.mxu0 0.0
    %1159 = vmatmul.mubr.f32.gmra.mxu0 %v1089
    %v1160 = vpop.f32.mrf.mxu0
    %v1161 = vadd.f32 %v1080, %v1160
    %v1162 = vpop.f32.mrf.mxu0
    %1163 = vmatprep.mubr.f32.mxu0 0.0
    %1164 = vmatmul.mubr.f32.gmra.mxu0 %v1092
    %v1165 = vpop.f32.mrf.mxu0
    %v1166 = vadd.f32 %v1085, %v1165
    %v1167 = vpop.f32.mrf.mxu0
    %1168 = vdwg.mxu0
    %s1169 = scalar_lea.vmem %s4, 64
    %v1170 = vld [vmem:[%s1169] sm:$0xff]
    %v1171 = vld [vmem:[%s1169 + $0x8] sm:$0xff]
    %v1172 = vld [vmem:[%s1169 + $0x10] sm:$0xff]
    %v1173 = vld [vmem:[%s1169 + $0x18] sm:$0xff]
    %v1174 = vld [vmem:[%s5 + $0x2] sm:$0x1]
    %v1175 = vlaneseq
    %v1176 = vshrl.u32 %v1175, 7
    %v1177 = vsub.s32 0, %v1176
    %v1178 = vrot.slane %v1174, %v1177
    %1179 = vmatprep.subr.mxu0 0.0
    %1180 = vmatpush1.msra.mxu0 0.0
    %1181 = vmatprep.subr.mxu0 0.0
    %1182 = vmatpush1.msra.mxu0 0.0
    %1183 = vmatprep.subr.mxu0 0.0
    %1184 = vmatpush1.msra.mxu0 0.0
    %1185 = vmatprep.subr.mxu0 0.0
    %1186 = vmatpush1.msra.mxu0 0.0
    %1187 = vmatprep.subr.mxu0 0.0
    %1188 = vmatpush1.msra.mxu0 0.0
    %1189 = vmatprep.subr.mxu0 0.0
    %1190 = vmatpush1.msra.mxu0 0.0
    %1191 = vmatprep.subr.mxu0 0.0
    %1192 = vmatpush1.msra.mxu0 0.0
    %1193 = vmatprep.subr.mxu0 0.0
    %1194 = vmatpush1.msra.mxu0 0.0
    %1195 = vmatprep.subr.mxu0 0.0
    %1196 = vmatpush1.msra.mxu0 0.0
    %1197 = vmatprep.subr.mxu0 0.0
    %1198 = vmatpush1.msra.mxu0 0.0
    %1199 = vmatprep.subr.mxu0 0.0
    %1200 = vmatpush1.msra.mxu0 0.0
    %1201 = vmatprep.subr.mxu0 0.0
    %1202 = vmatpush1.msra.mxu0 0.0
    %1203 = vmatprep.subr.mxu0 0.0
    %1204 = vmatpush1.msra.mxu0 %v1173
    %1205 = vmatprep.subr.mxu0 0.0
    %1206 = vmatpush1.msra.mxu0 %v1172
    %1207 = vmatprep.subr.mxu0 0.0
    %1208 = vmatpush1.msra.mxu0 %v1171
    %1209 = vmatprep.subr.mxu0 0.0
    %1210 = vmatpush1.msra.mxu0 %v1170
    %1211 = vmatprep.subr.mxu0 0.0
    %1212 = vmatpush2.msra.mxu0 0.0
    %1213 = vmatprep.subr.mxu0 0.0
    %1214 = vmatpush2.msra.mxu0 0.0
    %1215 = vmatprep.subr.mxu0 0.0
    %1216 = vmatpush2.msra.mxu0 0.0
    %1217 = vmatprep.subr.mxu0 0.0
    %1218 = vmatpush2.msra.mxu0 0.0
    %1219 = vmatprep.subr.mxu0 0.0
    %1220 = vmatpush2.msra.mxu0 0.0
    %1221 = vmatprep.subr.mxu0 0.0
    %1222 = vmatpush2.msra.mxu0 0.0
    %1223 = vmatprep.subr.mxu0 0.0
    %1224 = vmatpush2.msra.mxu0 0.0
    %1225 = vmatprep.subr.mxu0 0.0
    %1226 = vmatpush2.msra.mxu0 0.0
    %1227 = vmatprep.subr.mxu0 0.0
    %1228 = vmatpush2.msra.mxu0 0.0
    %1229 = vmatprep.subr.mxu0 0.0
    %1230 = vmatpush2.msra.mxu0 0.0
    %1231 = vmatprep.subr.mxu0 0.0
    %1232 = vmatpush2.msra.mxu0 0.0
    %1233 = vmatprep.subr.mxu0 0.0
    %1234 = vmatpush2.msra.mxu0 0.0
    %1235 = vmatprep.subr.mxu0 0.0
    %1236 = vmatpush2.msra.mxu0 0.0
    %1237 = vmatprep.subr.mxu0 0.0
    %1238 = vmatpush2.msra.mxu0 0.0
    %1239 = vmatprep.subr.mxu0 0.0
    %1240 = vmatpush2.msra.mxu0 0.0
    %1241 = vmatprep.subr.mxu0 0.0
    %1242 = vmatpush2.msra.mxu0 0.0
    %1243 = vmatprep.mubr.f32.mxu0 0.0
    %1244 = vmatmul.mubr.f32.gmra.mxu0 %v103
    %v1245 = vpop.f32.mrf.mxu0
    %v1246 = vadd.f32 %v1178, %v1245
    %v1247 = vpop.f32.mrf.mxu0
    %1248 = vmatprep.mubr.f32.mxu0 0.0
    %1249 = vmatmul.mubr.f32.gmra.mxu0 %v106
    %v1250 = vpop.f32.mrf.mxu0
    %v1251 = vadd.f32 %v1178, %v1250
    %v1252 = vpop.f32.mrf.mxu0
    %1253 = vdwg.mxu0
    %s1254 = scalar_lea.vmem %s4, 192
    %v1255 = vld [vmem:[%s1254] sm:$0xff]
    %v1256 = vld [vmem:[%s1254 + $0x8] sm:$0xff]
    %v1257 = vld [vmem:[%s1254 + $0x10] sm:$0xff]
    %v1258 = vld [vmem:[%s1254 + $0x18] sm:$0xff]
    %v1259 = vld [vmem:[%s5 + $0x6] sm:$0x1]
    %v1260 = vlaneseq
    %v1261 = vshrl.u32 %v1260, 7
    %v1262 = vsub.s32 0, %v1261
    %v1263 = vrot.slane %v1259, %v1262
    %1264 = vmatprep.subr.mxu0 0.0
    %1265 = vmatpush1.msra.mxu0 0.0
    %1266 = vmatprep.subr.mxu0 0.0
    %1267 = vmatpush1.msra.mxu0 0.0
    %1268 = vmatprep.subr.mxu0 0.0
    %1269 = vmatpush1.msra.mxu0 0.0
    %1270 = vmatprep.subr.mxu0 0.0
    %1271 = vmatpush1.msra.mxu0 0.0
    %1272 = vmatprep.subr.mxu0 0.0
    %1273 = vmatpush1.msra.mxu0 0.0
    %1274 = vmatprep.subr.mxu0 0.0
    %1275 = vmatpush1.msra.mxu0 0.0
    %1276 = vmatprep.subr.mxu0 0.0
    %1277 = vmatpush1.msra.mxu0 0.0
    %1278 = vmatprep.subr.mxu0 0.0
    %1279 = vmatpush1.msra.mxu0 0.0
    %1280 = vmatprep.subr.mxu0 0.0
    %1281 = vmatpush1.msra.mxu0 0.0
    %1282 = vmatprep.subr.mxu0 0.0
    %1283 = vmatpush1.msra.mxu0 0.0
    %1284 = vmatprep.subr.mxu0 0.0
    %1285 = vmatpush1.msra.mxu0 0.0
    %1286 = vmatprep.subr.mxu0 0.0
    %1287 = vmatpush1.msra.mxu0 0.0
    %1288 = vmatprep.subr.mxu0 0.0
    %1289 = vmatpush1.msra.mxu0 %v1258
    %1290 = vmatprep.subr.mxu0 0.0
    %1291 = vmatpush1.msra.mxu0 %v1257
    %1292 = vmatprep.subr.mxu0 0.0
    %1293 = vmatpush1.msra.mxu0 %v1256
    %1294 = vmatprep.subr.mxu0 0.0
    %1295 = vmatpush1.msra.mxu0 %v1255
    %1296 = vmatprep.subr.mxu0 0.0
    %1297 = vmatpush2.msra.mxu0 0.0
    %1298 = vmatprep.subr.mxu0 0.0
    %1299 = vmatpush2.msra.mxu0 0.0
    %1300 = vmatprep.subr.mxu0 0.0
    %1301 = vmatpush2.msra.mxu0 0.0
    %1302 = vmatprep.subr.mxu0 0.0
    %1303 = vmatpush2.msra.mxu0 0.0
    %1304 = vmatprep.subr.mxu0 0.0
    %1305 = vmatpush2.msra.mxu0 0.0
    %1306 = vmatprep.subr.mxu0 0.0
    %1307 = vmatpush2.msra.mxu0 0.0
    %1308 = vmatprep.subr.mxu0 0.0
    %1309 = vmatpush2.msra.mxu0 0.0
    %1310 = vmatprep.subr.mxu0 0.0
    %1311 = vmatpush2.msra.mxu0 0.0
    %1312 = vmatprep.subr.mxu0 0.0
    %1313 = vmatpush2.msra.mxu0 0.0
    %1314 = vmatprep.subr.mxu0 0.0
    %1315 = vmatpush2.msra.mxu0 0.0
    %1316 = vmatprep.subr.mxu0 0.0
    %1317 = vmatpush2.msra.mxu0 0.0
    %1318 = vmatprep.subr.mxu0 0.0
    %1319 = vmatpush2.msra.mxu0 0.0
    %1320 = vmatprep.subr.mxu0 0.0
    %1321 = vmatpush2.msra.mxu0 0.0
    %1322 = vmatprep.subr.mxu0 0.0
    %1323 = vmatpush2.msra.mxu0 0.0
    %1324 = vmatprep.subr.mxu0 0.0
    %1325 = vmatpush2.msra.mxu0 0.0
    %1326 = vmatprep.subr.mxu0 0.0
    %1327 = vmatpush2.msra.mxu0 0.0
    %1328 = vmatprep.mubr.f32.mxu0 0.0
    %1329 = vmatmul.mubr.f32.gmra.mxu0 %v103
    %v1330 = vpop.f32.mrf.mxu0
    %v1331 = vadd.f32 %v1263, %v1330
    %v1332 = vpop.f32.mrf.mxu0
    %1333 = vmatprep.mubr.f32.mxu0 0.0
    %1334 = vmatmul.mubr.f32.gmra.mxu0 %v106
    %v1335 = vpop.f32.mrf.mxu0
    %v1336 = vadd.f32 %v1263, %v1335
    %v1337 = vpop.f32.mrf.mxu0
    %1338 = vdwg.mxu0
    %s1339 = scalar_lea.vmem %s4, 320
    %v1340 = vld [vmem:[%s1339] sm:$0xff]
    %v1341 = vld [vmem:[%s1339 + $0x8] sm:$0xff]
    %v1342 = vld [vmem:[%s1339 + $0x10] sm:$0xff]
    %v1343 = vld [vmem:[%s1339 + $0x18] sm:$0xff]
    %v1344 = vld [vmem:[%s5 + $0xa] sm:$0x1]
    %v1345 = vlaneseq
    %v1346 = vshrl.u32 %v1345, 7
    %v1347 = vsub.s32 0, %v1346
    %v1348 = vrot.slane %v1344, %v1347
    %1349 = vmatprep.subr.mxu0 0.0
    %1350 = vmatpush1.msra.mxu0 0.0
    %1351 = vmatprep.subr.mxu0 0.0
    %1352 = vmatpush1.msra.mxu0 0.0
    %1353 = vmatprep.subr.mxu0 0.0
    %1354 = vmatpush1.msra.mxu0 0.0
    %1355 = vmatprep.subr.mxu0 0.0
    %1356 = vmatpush1.msra.mxu0 0.0
    %1357 = vmatprep.subr.mxu0 0.0
    %1358 = vmatpush1.msra.mxu0 0.0
    %1359 = vmatprep.subr.mxu0 0.0
    %1360 = vmatpush1.msra.mxu0 0.0
    %1361 = vmatprep.subr.mxu0 0.0
    %1362 = vmatpush1.msra.mxu0 0.0
    %1363 = vmatprep.subr.mxu0 0.0
    %1364 = vmatpush1.msra.mxu0 0.0
    %1365 = vmatprep.subr.mxu0 0.0
    %1366 = vmatpush1.msra.mxu0 0.0
    %1367 = vmatprep.subr.mxu0 0.0
    %1368 = vmatpush1.msra.mxu0 0.0
    %1369 = vmatprep.subr.mxu0 0.0
    %1370 = vmatpush1.msra.mxu0 0.0
    %1371 = vmatprep.subr.mxu0 0.0
    %1372 = vmatpush1.msra.mxu0 0.0
    %1373 = vmatprep.subr.mxu0 0.0
    %1374 = vmatpush1.msra.mxu0 %v1343
    %1375 = vmatprep.subr.mxu0 0.0
    %1376 = vmatpush1.msra.mxu0 %v1342
    %1377 = vmatprep.subr.mxu0 0.0
    %1378 = vmatpush1.msra.mxu0 %v1341
    %1379 = vmatprep.subr.mxu0 0.0
    %1380 = vmatpush1.msra.mxu0 %v1340
    %1381 = vmatprep.subr.mxu0 0.0
    %1382 = vmatpush2.msra.mxu0 0.0
    %1383 = vmatprep.subr.mxu0 0.0
    %1384 = vmatpush2.msra.mxu0 0.0
    %1385 = vmatprep.subr.mxu0 0.0
    %1386 = vmatpush2.msra.mxu0 0.0
    %1387 = vmatprep.subr.mxu0 0.0
    %1388 = vmatpush2.msra.mxu0 0.0
    %1389 = vmatprep.subr.mxu0 0.0
    %1390 = vmatpush2.msra.mxu0 0.0
    %1391 = vmatprep.subr.mxu0 0.0
    %1392 = vmatpush2.msra.mxu0 0.0
    %1393 = vmatprep.subr.mxu0 0.0
    %1394 = vmatpush2.msra.mxu0 0.0
    %1395 = vmatprep.subr.mxu0 0.0
    %1396 = vmatpush2.msra.mxu0 0.0
    %1397 = vmatprep.subr.mxu0 0.0
    %1398 = vmatpush2.msra.mxu0 0.0
    %1399 = vmatprep.subr.mxu0 0.0
    %1400 = vmatpush2.msra.mxu0 0.0
    %1401 = vmatprep.subr.mxu0 0.0
    %1402 = vmatpush2.msra.mxu0 0.0
    %1403 = vmatprep.subr.mxu0 0.0
    %1404 = vmatpush2.msra.mxu0 0.0
    %1405 = vmatprep.subr.mxu0 0.0
    %1406 = vmatpush2.msra.mxu0 0.0
    %1407 = vmatprep.subr.mxu0 0.0
    %1408 = vmatpush2.msra.mxu0 0.0
    %1409 = vmatprep.subr.mxu0 0.0
    %1410 = vmatpush2.msra.mxu0 0.0
    %1411 = vmatprep.subr.mxu0 0.0
    %1412 = vmatpush2.msra.mxu0 0.0
    %1413 = vmatprep.mubr.f32.mxu0 0.0
    %1414 = vmatmul.mubr.f32.gmra.mxu0 %v279
    %v1415 = vpop.f32.mrf.mxu0
    %v1416 = vadd.f32 %v1348, %v1415
    %v1417 = vpop.f32.mrf.mxu0
    %1418 = vmatprep.mubr.f32.mxu0 0.0
    %1419 = vmatmul.mubr.f32.gmra.mxu0 %v282
    %v1420 = vpop.f32.mrf.mxu0
    %v1421 = vadd.f32 %v1348, %v1420
    %v1422 = vpop.f32.mrf.mxu0
    %1423 = vdwg.mxu0
    %v1424 = vmul.f32 %v1246, 0.35355338
    %v1425 = vmul.f32 %v1251, 0.35355338
    %v1427 = vsel %vm361, %v1424, 0
    %v1430 = vsel %vm361, %v1425, 0
    %v1433 = vsel %vm361, %v1331, 0
    %v1436 = vsel %vm361, %v1336, 0
    %1438 = vmatprep.subr.mxu0 0.0
    %1439 = vmatpush1.xpose.msra.mxu0 0.0
    %1440 = vmatprep.subr.mxu0 0.0
    %1441 = vmatpush1.xpose.msra.mxu0 0.0
    %1442 = vmatprep.subr.mxu0 0.0
    %1443 = vmatpush1.xpose.msra.mxu0 0.0
    %1444 = vmatprep.subr.mxu0 0.0
    %1445 = vmatpush1.xpose.msra.mxu0 0.0
    %1446 = vmatprep.subr.mxu0 0.0
    %1447 = vmatpush1.xpose.msra.mxu0 0.0
    %1448 = vmatprep.subr.mxu0 0.0
    %1449 = vmatpush1.xpose.msra.mxu0 0.0
    %1450 = vmatprep.subr.mxu0 0.0
    %1451 = vmatpush1.xpose.msra.mxu0 0.0
    %1452 = vmatprep.subr.mxu0 0.0
    %1453 = vmatpush1.xpose.msra.mxu0 0.0
    %1454 = vmatprep.subr.mxu0 0.0
    %1455 = vmatpush1.xpose.msra.mxu0 0.0
    %1456 = vmatprep.subr.mxu0 0.0
    %1457 = vmatpush1.xpose.msra.mxu0 0.0
    %1458 = vmatprep.subr.mxu0 0.0
    %1459 = vmatpush1.xpose.msra.mxu0 0.0
    %1460 = vmatprep.subr.mxu0 0.0
    %1461 = vmatpush1.xpose.msra.mxu0 0.0
    %1462 = vmatprep.subr.mxu0 0.0
    %1463 = vmatpush1.xpose.msra.mxu0 0.0
    %1464 = vmatprep.subr.mxu0 0.0
    %1465 = vmatpush1.xpose.msra.mxu0 0.0
    %1466 = vmatprep.subr.mxu0 0.0
    %1467 = vmatpush1.xpose.msra.mxu0 %v1436
    %1468 = vmatprep.subr.mxu0 0.0
    %1469 = vmatpush1.xpose.msra.mxu0 %v1433
    %1470 = vmatprep.subr.mxu0 0.0
    %1471 = vmatpush2.xpose.msra.mxu0 0.0
    %1472 = vmatprep.subr.mxu0 0.0
    %1473 = vmatpush2.xpose.msra.mxu0 0.0
    %1474 = vmatprep.subr.mxu0 0.0
    %1475 = vmatpush2.xpose.msra.mxu0 0.0
    %1476 = vmatprep.subr.mxu0 0.0
    %1477 = vmatpush2.xpose.msra.mxu0 0.0
    %1478 = vmatprep.subr.mxu0 0.0
    %1479 = vmatpush2.xpose.msra.mxu0 0.0
    %1480 = vmatprep.subr.mxu0 0.0
    %1481 = vmatpush2.xpose.msra.mxu0 0.0
    %1482 = vmatprep.subr.mxu0 0.0
    %1483 = vmatpush2.xpose.msra.mxu0 0.0
    %1484 = vmatprep.subr.mxu0 0.0
    %1485 = vmatpush2.xpose.msra.mxu0 0.0
    %1486 = vmatprep.subr.mxu0 0.0
    %1487 = vmatpush2.xpose.msra.mxu0 0.0
    %1488 = vmatprep.subr.mxu0 0.0
    %1489 = vmatpush2.xpose.msra.mxu0 0.0
    %1490 = vmatprep.subr.mxu0 0.0
    %1491 = vmatpush2.xpose.msra.mxu0 0.0
    %1492 = vmatprep.subr.mxu0 0.0
    %1493 = vmatpush2.xpose.msra.mxu0 0.0
    %1494 = vmatprep.subr.mxu0 0.0
    %1495 = vmatpush2.xpose.msra.mxu0 0.0
    %1496 = vmatprep.subr.mxu0 0.0
    %1497 = vmatpush2.xpose.msra.mxu0 0.0
    %1498 = vmatprep.subr.mxu0 0.0
    %1499 = vmatpush2.xpose.msra.mxu0 0.0
    %1500 = vmatprep.subr.mxu0 0.0
    %1501 = vmatpush2.xpose.msra.mxu0 0.0
    %1502 = vmatprep.mubr.f32.mxu0 0.0
    %1503 = vmatmul.mubr.f32.gmra.mxu0 %v1427
    %v1504 = vpop.f32.mrf.mxu0
    %v1505 = vadd.f32 0.0, %v1504
    %v1506 = vpop.f32.mrf.mxu0
    %1507 = vmatprep.mubr.f32.mxu0 0.0
    %1508 = vmatmul.mubr.f32.gmra.mxu0 %v1430
    %v1509 = vpop.f32.mrf.mxu0
    %v1510 = vadd.f32 0.0, %v1509
    %v1511 = vpop.f32.mrf.mxu0
    %1512 = vdwg.mxu0
    %v1513 = vsel %vm88, %v1505, -1e+30
    %v1514 = vsel %vm89, %v1510, -1e+30
    %v1515 = vsel %vm451, %v1513, -inf
    %1516 = vmax.xlane.f32.xlu0 %v1515
    %v1517 = vpop.xlane.xlu0 %1516
    %v1518 = vsel %vm451, %v1514, -inf
    %1519 = vmax.xlane.f32.xlu0 %v1518
    %v1520 = vpop.xlane.xlu0 %1519
    %v1521 = vsub.f32 %v1513, %v1517
    %v1522 = vsub.f32 %v1514, %v1520
    %v1523 = vmul.f32 %v1521, 1.442695
    %v1524 = vpow.pop %v1523
    %v1525 = vmul.f32 %v1522, 1.442695
    %v1526 = vpow.pop %v1525
    %v1527 = vsel %vm451, %v1524, 0.0
    %1528 = vadd.xlane.f32.xlu0 %v1527
    %v1529 = vpop.xlane.xlu0 %1528
    %v1530 = vsel %vm451, %v1526, 0.0
    %1531 = vadd.xlane.f32.xlu0 %v1530
    %v1532 = vpop.xlane.xlu0 %1531
    %v1533 = vrcp.pop %v1529
    %v1534 = vrcp.pop %v1532
    %v1536 = vsel %vm451, %v1524, 0
    %v1539 = vsel %vm451, %v1526, 0
    %1541 = vmatprep.subr.mxu0 0.0
    %1542 = vmatpush1.msra.mxu0 0.0
    %1543 = vmatprep.subr.mxu0 0.0
    %1544 = vmatpush1.msra.mxu0 0.0
    %1545 = vmatprep.subr.mxu0 0.0
    %1546 = vmatpush1.msra.mxu0 0.0
    %1547 = vmatprep.subr.mxu0 0.0
    %1548 = vmatpush1.msra.mxu0 0.0
    %1549 = vmatprep.subr.mxu0 0.0
    %1550 = vmatpush1.msra.mxu0 0.0
    %1551 = vmatprep.subr.mxu0 0.0
    %1552 = vmatpush1.msra.mxu0 0.0
    %1553 = vmatprep.subr.mxu0 0.0
    %1554 = vmatpush1.msra.mxu0 0.0
    %1555 = vmatprep.subr.mxu0 0.0
    %1556 = vmatpush1.msra.mxu0 0.0
    %1557 = vmatprep.subr.mxu0 0.0
    %1558 = vmatpush1.msra.mxu0 0.0
    %1559 = vmatprep.subr.mxu0 0.0
    %1560 = vmatpush1.msra.mxu0 0.0
    %1561 = vmatprep.subr.mxu0 0.0
    %1562 = vmatpush1.msra.mxu0 0.0
    %1563 = vmatprep.subr.mxu0 0.0
    %1564 = vmatpush1.msra.mxu0 0.0
    %1565 = vmatprep.subr.mxu0 0.0
    %1566 = vmatpush1.msra.mxu0 0.0
    %1567 = vmatprep.subr.mxu0 0.0
    %1568 = vmatpush1.msra.mxu0 0.0
    %1569 = vmatprep.subr.mxu0 0.0
    %1570 = vmatpush1.msra.mxu0 %v1421
    %1571 = vmatprep.subr.mxu0 0.0
    %1572 = vmatpush1.msra.mxu0 %v1416
    %1573 = vmatprep.subr.mxu0 0.0
    %1574 = vmatpush2.msra.mxu0 0.0
    %1575 = vmatprep.subr.mxu0 0.0
    %1576 = vmatpush2.msra.mxu0 0.0
    %1577 = vmatprep.subr.mxu0 0.0
    %1578 = vmatpush2.msra.mxu0 0.0
    %1579 = vmatprep.subr.mxu0 0.0
    %1580 = vmatpush2.msra.mxu0 0.0
    %1581 = vmatprep.subr.mxu0 0.0
    %1582 = vmatpush2.msra.mxu0 0.0
    %1583 = vmatprep.subr.mxu0 0.0
    %1584 = vmatpush2.msra.mxu0 0.0
    %1585 = vmatprep.subr.mxu0 0.0
    %1586 = vmatpush2.msra.mxu0 0.0
    %1587 = vmatprep.subr.mxu0 0.0
    %1588 = vmatpush2.msra.mxu0 0.0
    %1589 = vmatprep.subr.mxu0 0.0
    %1590 = vmatpush2.msra.mxu0 0.0
    %1591 = vmatprep.subr.mxu0 0.0
    %1592 = vmatpush2.msra.mxu0 0.0
    %1593 = vmatprep.subr.mxu0 0.0
    %1594 = vmatpush2.msra.mxu0 0.0
    %1595 = vmatprep.subr.mxu0 0.0
    %1596 = vmatpush2.msra.mxu0 0.0
    %1597 = vmatprep.subr.mxu0 0.0
    %1598 = vmatpush2.msra.mxu0 0.0
    %1599 = vmatprep.subr.mxu0 0.0
    %1600 = vmatpush2.msra.mxu0 0.0
    %1601 = vmatprep.subr.mxu0 0.0
    %1602 = vmatpush2.msra.mxu0 0.0
    %1603 = vmatprep.subr.mxu0 0.0
    %1604 = vmatpush2.msra.mxu0 0.0
    %1605 = vmatprep.mubr.f32.mxu0 0.0
    %1606 = vmatmul.mubr.f32.gmra.mxu0 %v1536
    %v1607 = vpop.f32.mrf.mxu0
    %v1608 = vadd.f32 0.0, %v1607
    %v1609 = vpop.f32.mrf.mxu0
    %1610 = vmatprep.mubr.f32.mxu0 0.0
    %1611 = vmatmul.mubr.f32.gmra.mxu0 %v1539
    %v1612 = vpop.f32.mrf.mxu0
    %v1613 = vadd.f32 0.0, %v1612
    %v1614 = vpop.f32.mrf.mxu0
    %1615 = vdwg.mxu0
    %v1616 = vmul.f32 %v1608, %v1533
    %v1617 = vmul.f32 %v1613, %v1534
    %s1618 = scalar_lea.vmem %s6, 16
    %v1619 = vld [vmem:[%s1618] sm:$0xff]
    %v1621 = vsel %vm361, %v1616, 0
    %v1624 = vsel %vm361, %v1617, 0
    %1626 = vmatprep.subr.mxu0 0.0
    %1627 = vmatpush1.msra.mxu0 0.0
    %1628 = vmatprep.subr.mxu0 0.0
    %1629 = vmatpush1.msra.mxu0 0.0
    %1630 = vmatprep.subr.mxu0 0.0
    %1631 = vmatpush1.msra.mxu0 0.0
    %1632 = vmatprep.subr.mxu0 0.0
    %1633 = vmatpush1.msra.mxu0 0.0
    %1634 = vmatprep.subr.mxu0 0.0
    %1635 = vmatpush1.msra.mxu0 0.0
    %1636 = vmatprep.subr.mxu0 0.0
    %1637 = vmatpush1.msra.mxu0 0.0
    %1638 = vmatprep.subr.mxu0 0.0
    %1639 = vmatpush1.msra.mxu0 0.0
    %1640 = vmatprep.subr.mxu0 0.0
    %1641 = vmatpush1.msra.mxu0 0.0
    %1642 = vmatprep.subr.mxu0 0.0
    %1643 = vmatpush1.msra.mxu0 0.0
    %1644 = vmatprep.subr.mxu0 0.0
    %1645 = vmatpush1.msra.mxu0 0.0
    %1646 = vmatprep.subr.mxu0 0.0
    %1647 = vmatpush1.msra.mxu0 0.0
    %1648 = vmatprep.subr.mxu0 0.0
    %1649 = vmatpush1.msra.mxu0 0.0
    %1650 = vmatprep.subr.mxu0 0.0
    %1651 = vmatpush1.msra.mxu0 0.0
    %1652 = vmatprep.subr.mxu0 0.0
    %1653 = vmatpush1.msra.mxu0 0.0
    %1654 = vmatprep.subr.mxu0 0.0
    %1655 = vmatpush1.msra.mxu0 0.0
    %1656 = vmatprep.subr.mxu0 0.0
    %1657 = vmatpush1.msra.mxu0 %v1619
    %1658 = vmatprep.subr.mxu0 0.0
    %1659 = vmatpush2.msra.mxu0 0.0
    %1660 = vmatprep.subr.mxu0 0.0
    %1661 = vmatpush2.msra.mxu0 0.0
    %1662 = vmatprep.subr.mxu0 0.0
    %1663 = vmatpush2.msra.mxu0 0.0
    %1664 = vmatprep.subr.mxu0 0.0
    %1665 = vmatpush2.msra.mxu0 0.0
    %1666 = vmatprep.subr.mxu0 0.0
    %1667 = vmatpush2.msra.mxu0 0.0
    %1668 = vmatprep.subr.mxu0 0.0
    %1669 = vmatpush2.msra.mxu0 0.0
    %1670 = vmatprep.subr.mxu0 0.0
    %1671 = vmatpush2.msra.mxu0 0.0
    %1672 = vmatprep.subr.mxu0 0.0
    %1673 = vmatpush2.msra.mxu0 0.0
    %1674 = vmatprep.subr.mxu0 0.0
    %1675 = vmatpush2.msra.mxu0 0.0
    %1676 = vmatprep.subr.mxu0 0.0
    %1677 = vmatpush2.msra.mxu0 0.0
    %1678 = vmatprep.subr.mxu0 0.0
    %1679 = vmatpush2.msra.mxu0 0.0
    %1680 = vmatprep.subr.mxu0 0.0
    %1681 = vmatpush2.msra.mxu0 0.0
    %1682 = vmatprep.subr.mxu0 0.0
    %1683 = vmatpush2.msra.mxu0 0.0
    %1684 = vmatprep.subr.mxu0 0.0
    %1685 = vmatpush2.msra.mxu0 0.0
    %1686 = vmatprep.subr.mxu0 0.0
    %1687 = vmatpush2.msra.mxu0 0.0
    %1688 = vmatprep.subr.mxu0 0.0
    %1689 = vmatpush2.msra.mxu0 0.0
    %1690 = vmatprep.mubr.f32.mxu0 0.0
    %1691 = vmatmul.mubr.f32.gmra.mxu0 %v1621
    %v1692 = vpop.f32.mrf.mxu0
    %v1693 = vadd.f32 0.0, %v1692
    %v1694 = vpop.f32.mrf.mxu0
    %1695 = vmatprep.mubr.f32.mxu0 0.0
    %1696 = vmatmul.mubr.f32.gmra.mxu0 %v1624
    %v1697 = vpop.f32.mrf.mxu0
    %v1698 = vadd.f32 0.0, %v1697
    %v1699 = vpop.f32.mrf.mxu0
    %1700 = vdwg.mxu0
    %v1701 = vadd.f32 %v1161, %v1693
    %v1702 = vadd.f32 %v1166, %v1698
    %s1703 = scalar_lea.vmem %s4, 96
    %v1704 = vld [vmem:[%s1703] sm:$0xff]
    %v1705 = vld [vmem:[%s1703 + $0x8] sm:$0xff]
    %v1706 = vld [vmem:[%s1703 + $0x10] sm:$0xff]
    %v1707 = vld [vmem:[%s1703 + $0x18] sm:$0xff]
    %v1708 = vld [vmem:[%s5 + $0x3] sm:$0x1]
    %v1709 = vlaneseq
    %v1710 = vshrl.u32 %v1709, 7
    %v1711 = vsub.s32 0, %v1710
    %v1712 = vrot.slane %v1708, %v1711
    %1713 = vmatprep.subr.mxu0 0.0
    %1714 = vmatpush1.msra.mxu0 0.0
    %1715 = vmatprep.subr.mxu0 0.0
    %1716 = vmatpush1.msra.mxu0 0.0
    %1717 = vmatprep.subr.mxu0 0.0
    %1718 = vmatpush1.msra.mxu0 0.0
    %1719 = vmatprep.subr.mxu0 0.0
    %1720 = vmatpush1.msra.mxu0 0.0
    %1721 = vmatprep.subr.mxu0 0.0
    %1722 = vmatpush1.msra.mxu0 0.0
    %1723 = vmatprep.subr.mxu0 0.0
    %1724 = vmatpush1.msra.mxu0 0.0
    %1725 = vmatprep.subr.mxu0 0.0
    %1726 = vmatpush1.msra.mxu0 0.0
    %1727 = vmatprep.subr.mxu0 0.0
    %1728 = vmatpush1.msra.mxu0 0.0
    %1729 = vmatprep.subr.mxu0 0.0
    %1730 = vmatpush1.msra.mxu0 0.0
    %1731 = vmatprep.subr.mxu0 0.0
    %1732 = vmatpush1.msra.mxu0 0.0
    %1733 = vmatprep.subr.mxu0 0.0
    %1734 = vmatpush1.msra.mxu0 0.0
    %1735 = vmatprep.subr.mxu0 0.0
    %1736 = vmatpush1.msra.mxu0 0.0
    %1737 = vmatprep.subr.mxu0 0.0
    %1738 = vmatpush1.msra.mxu0 %v1707
    %1739 = vmatprep.subr.mxu0 0.0
    %1740 = vmatpush1.msra.mxu0 %v1706
    %1741 = vmatprep.subr.mxu0 0.0
    %1742 = vmatpush1.msra.mxu0 %v1705
    %1743 = vmatprep.subr.mxu0 0.0
    %1744 = vmatpush1.msra.mxu0 %v1704
    %1745 = vmatprep.subr.mxu0 0.0
    %1746 = vmatpush2.msra.mxu0 0.0
    %1747 = vmatprep.subr.mxu0 0.0
    %1748 = vmatpush2.msra.mxu0 0.0
    %1749 = vmatprep.subr.mxu0 0.0
    %1750 = vmatpush2.msra.mxu0 0.0
    %1751 = vmatprep.subr.mxu0 0.0
    %1752 = vmatpush2.msra.mxu0 0.0
    %1753 = vmatprep.subr.mxu0 0.0
    %1754 = vmatpush2.msra.mxu0 0.0
    %1755 = vmatprep.subr.mxu0 0.0
    %1756 = vmatpush2.msra.mxu0 0.0
    %1757 = vmatprep.subr.mxu0 0.0
    %1758 = vmatpush2.msra.mxu0 0.0
    %1759 = vmatprep.subr.mxu0 0.0
    %1760 = vmatpush2.msra.mxu0 0.0
    %1761 = vmatprep.subr.mxu0 0.0
    %1762 = vmatpush2.msra.mxu0 0.0
    %1763 = vmatprep.subr.mxu0 0.0
    %1764 = vmatpush2.msra.mxu0 0.0
    %1765 = vmatprep.subr.mxu0 0.0
    %1766 = vmatpush2.msra.mxu0 0.0
    %1767 = vmatprep.subr.mxu0 0.0
    %1768 = vmatpush2.msra.mxu0 0.0
    %1769 = vmatprep.subr.mxu0 0.0
    %1770 = vmatpush2.msra.mxu0 0.0
    %1771 = vmatprep.subr.mxu0 0.0
    %1772 = vmatpush2.msra.mxu0 0.0
    %1773 = vmatprep.subr.mxu0 0.0
    %1774 = vmatpush2.msra.mxu0 0.0
    %1775 = vmatprep.subr.mxu0 0.0
    %1776 = vmatpush2.msra.mxu0 0.0
    %1777 = vmatprep.mubr.f32.mxu0 0.0
    %1778 = vmatmul.mubr.f32.gmra.mxu0 %v103
    %v1779 = vpop.f32.mrf.mxu0
    %v1780 = vadd.f32 %v1712, %v1779
    %v1781 = vpop.f32.mrf.mxu0
    %1782 = vmatprep.mubr.f32.mxu0 0.0
    %1783 = vmatmul.mubr.f32.gmra.mxu0 %v106
    %v1784 = vpop.f32.mrf.mxu0
    %v1785 = vadd.f32 %v1712, %v1784
    %v1786 = vpop.f32.mrf.mxu0
    %1787 = vdwg.mxu0
    %s1788 = scalar_lea.vmem %s4, 224
    %v1789 = vld [vmem:[%s1788] sm:$0xff]
    %v1790 = vld [vmem:[%s1788 + $0x8] sm:$0xff]
    %v1791 = vld [vmem:[%s1788 + $0x10] sm:$0xff]
    %v1792 = vld [vmem:[%s1788 + $0x18] sm:$0xff]
    %v1793 = vld [vmem:[%s5 + $0x7] sm:$0x1]
    %v1794 = vlaneseq
    %v1795 = vshrl.u32 %v1794, 7
    %v1796 = vsub.s32 0, %v1795
    %v1797 = vrot.slane %v1793, %v1796
    %1798 = vmatprep.subr.mxu0 0.0
    %1799 = vmatpush1.msra.mxu0 0.0
    %1800 = vmatprep.subr.mxu0 0.0
    %1801 = vmatpush1.msra.mxu0 0.0
    %1802 = vmatprep.subr.mxu0 0.0
    %1803 = vmatpush1.msra.mxu0 0.0
    %1804 = vmatprep.subr.mxu0 0.0
    %1805 = vmatpush1.msra.mxu0 0.0
    %1806 = vmatprep.subr.mxu0 0.0
    %1807 = vmatpush1.msra.mxu0 0.0
    %1808 = vmatprep.subr.mxu0 0.0
    %1809 = vmatpush1.msra.mxu0 0.0
    %1810 = vmatprep.subr.mxu0 0.0
    %1811 = vmatpush1.msra.mxu0 0.0
    %1812 = vmatprep.subr.mxu0 0.0
    %1813 = vmatpush1.msra.mxu0 0.0
    %1814 = vmatprep.subr.mxu0 0.0
    %1815 = vmatpush1.msra.mxu0 0.0
    %1816 = vmatprep.subr.mxu0 0.0
    %1817 = vmatpush1.msra.mxu0 0.0
    %1818 = vmatprep.subr.mxu0 0.0
    %1819 = vmatpush1.msra.mxu0 0.0
    %1820 = vmatprep.subr.mxu0 0.0
    %1821 = vmatpush1.msra.mxu0 0.0
    %1822 = vmatprep.subr.mxu0 0.0
    %1823 = vmatpush1.msra.mxu0 %v1792
    %1824 = vmatprep.subr.mxu0 0.0
    %1825 = vmatpush1.msra.mxu0 %v1791
    %1826 = vmatprep.subr.mxu0 0.0
    %1827 = vmatpush1.msra.mxu0 %v1790
    %1828 = vmatprep.subr.mxu0 0.0
    %1829 = vmatpush1.msra.mxu0 %v1789
    %1830 = vmatprep.subr.mxu0 0.0
    %1831 = vmatpush2.msra.mxu0 0.0
    %1832 = vmatprep.subr.mxu0 0.0
    %1833 = vmatpush2.msra.mxu0 0.0
    %1834 = vmatprep.subr.mxu0 0.0
    %1835 = vmatpush2.msra.mxu0 0.0
    %1836 = vmatprep.subr.mxu0 0.0
    %1837 = vmatpush2.msra.mxu0 0.0
    %1838 = vmatprep.subr.mxu0 0.0
    %1839 = vmatpush2.msra.mxu0 0.0
    %1840 = vmatprep.subr.mxu0 0.0
    %1841 = vmatpush2.msra.mxu0 0.0
    %1842 = vmatprep.subr.mxu0 0.0
    %1843 = vmatpush2.msra.mxu0 0.0
    %1844 = vmatprep.subr.mxu0 0.0
    %1845 = vmatpush2.msra.mxu0 0.0
    %1846 = vmatprep.subr.mxu0 0.0
    %1847 = vmatpush2.msra.mxu0 0.0
    %1848 = vmatprep.subr.mxu0 0.0
    %1849 = vmatpush2.msra.mxu0 0.0
    %1850 = vmatprep.subr.mxu0 0.0
    %1851 = vmatpush2.msra.mxu0 0.0
    %1852 = vmatprep.subr.mxu0 0.0
    %1853 = vmatpush2.msra.mxu0 0.0
    %1854 = vmatprep.subr.mxu0 0.0
    %1855 = vmatpush2.msra.mxu0 0.0
    %1856 = vmatprep.subr.mxu0 0.0
    %1857 = vmatpush2.msra.mxu0 0.0
    %1858 = vmatprep.subr.mxu0 0.0
    %1859 = vmatpush2.msra.mxu0 0.0
    %1860 = vmatprep.subr.mxu0 0.0
    %1861 = vmatpush2.msra.mxu0 0.0
    %1862 = vmatprep.mubr.f32.mxu0 0.0
    %1863 = vmatmul.mubr.f32.gmra.mxu0 %v103
    %v1864 = vpop.f32.mrf.mxu0
    %v1865 = vadd.f32 %v1797, %v1864
    %v1866 = vpop.f32.mrf.mxu0
    %1867 = vmatprep.mubr.f32.mxu0 0.0
    %1868 = vmatmul.mubr.f32.gmra.mxu0 %v106
    %v1869 = vpop.f32.mrf.mxu0
    %v1870 = vadd.f32 %v1797, %v1869
    %v1871 = vpop.f32.mrf.mxu0
    %1872 = vdwg.mxu0
    %s1873 = scalar_lea.vmem %s4, 352
    %v1874 = vld [vmem:[%s1873] sm:$0xff]
    %v1875 = vld [vmem:[%s1873 + $0x8] sm:$0xff]
    %v1876 = vld [vmem:[%s1873 + $0x10] sm:$0xff]
    %v1877 = vld [vmem:[%s1873 + $0x18] sm:$0xff]
    %v1878 = vld [vmem:[%s5 + $0xb] sm:$0x1]
    %v1879 = vlaneseq
    %v1880 = vshrl.u32 %v1879, 7
    %v1881 = vsub.s32 0, %v1880
    %v1882 = vrot.slane %v1878, %v1881
    %1883 = vmatprep.subr.mxu0 0.0
    %1884 = vmatpush1.msra.mxu0 0.0
    %1885 = vmatprep.subr.mxu0 0.0
    %1886 = vmatpush1.msra.mxu0 0.0
    %1887 = vmatprep.subr.mxu0 0.0
    %1888 = vmatpush1.msra.mxu0 0.0
    %1889 = vmatprep.subr.mxu0 0.0
    %1890 = vmatpush1.msra.mxu0 0.0
    %1891 = vmatprep.subr.mxu0 0.0
    %1892 = vmatpush1.msra.mxu0 0.0
    %1893 = vmatprep.subr.mxu0 0.0
    %1894 = vmatpush1.msra.mxu0 0.0
    %1895 = vmatprep.subr.mxu0 0.0
    %1896 = vmatpush1.msra.mxu0 0.0
    %1897 = vmatprep.subr.mxu0 0.0
    %1898 = vmatpush1.msra.mxu0 0.0
    %1899 = vmatprep.subr.mxu0 0.0
    %1900 = vmatpush1.msra.mxu0 0.0
    %1901 = vmatprep.subr.mxu0 0.0
    %1902 = vmatpush1.msra.mxu0 0.0
    %1903 = vmatprep.subr.mxu0 0.0
    %1904 = vmatpush1.msra.mxu0 0.0
    %1905 = vmatprep.subr.mxu0 0.0
    %1906 = vmatpush1.msra.mxu0 0.0
    %1907 = vmatprep.subr.mxu0 0.0
    %1908 = vmatpush1.msra.mxu0 %v1877
    %1909 = vmatprep.subr.mxu0 0.0
    %1910 = vmatpush1.msra.mxu0 %v1876
    %1911 = vmatprep.subr.mxu0 0.0
    %1912 = vmatpush1.msra.mxu0 %v1875
    %1913 = vmatprep.subr.mxu0 0.0
    %1914 = vmatpush1.msra.mxu0 %v1874
    %1915 = vmatprep.subr.mxu0 0.0
    %1916 = vmatpush2.msra.mxu0 0.0
    %1917 = vmatprep.subr.mxu0 0.0
    %1918 = vmatpush2.msra.mxu0 0.0
    %1919 = vmatprep.subr.mxu0 0.0
    %1920 = vmatpush2.msra.mxu0 0.0
    %1921 = vmatprep.subr.mxu0 0.0
    %1922 = vmatpush2.msra.mxu0 0.0
    %1923 = vmatprep.subr.mxu0 0.0
    %1924 = vmatpush2.msra.mxu0 0.0
    %1925 = vmatprep.subr.mxu0 0.0
    %1926 = vmatpush2.msra.mxu0 0.0
    %1927 = vmatprep.subr.mxu0 0.0
    %1928 = vmatpush2.msra.mxu0 0.0
    %1929 = vmatprep.subr.mxu0 0.0
    %1930 = vmatpush2.msra.mxu0 0.0
    %1931 = vmatprep.subr.mxu0 0.0
    %1932 = vmatpush2.msra.mxu0 0.0
    %1933 = vmatprep.subr.mxu0 0.0
    %1934 = vmatpush2.msra.mxu0 0.0
    %1935 = vmatprep.subr.mxu0 0.0
    %1936 = vmatpush2.msra.mxu0 0.0
    %1937 = vmatprep.subr.mxu0 0.0
    %1938 = vmatpush2.msra.mxu0 0.0
    %1939 = vmatprep.subr.mxu0 0.0
    %1940 = vmatpush2.msra.mxu0 0.0
    %1941 = vmatprep.subr.mxu0 0.0
    %1942 = vmatpush2.msra.mxu0 0.0
    %1943 = vmatprep.subr.mxu0 0.0
    %1944 = vmatpush2.msra.mxu0 0.0
    %1945 = vmatprep.subr.mxu0 0.0
    %1946 = vmatpush2.msra.mxu0 0.0
    %1947 = vmatprep.mubr.f32.mxu0 0.0
    %1948 = vmatmul.mubr.f32.gmra.mxu0 %v279
    %v1949 = vpop.f32.mrf.mxu0
    %v1950 = vadd.f32 %v1882, %v1949
    %v1951 = vpop.f32.mrf.mxu0
    %1952 = vmatprep.mubr.f32.mxu0 0.0
    %1953 = vmatmul.mubr.f32.gmra.mxu0 %v282
    %v1954 = vpop.f32.mrf.mxu0
    %v1955 = vadd.f32 %v1882, %v1954
    %v1956 = vpop.f32.mrf.mxu0
    %1957 = vdwg.mxu0
    %v1958 = vmul.f32 %v1780, 0.35355338
    %v1959 = vmul.f32 %v1785, 0.35355338
    %v1961 = vsel %vm361, %v1958, 0
    %v1964 = vsel %vm361, %v1959, 0
    %v1967 = vsel %vm361, %v1865, 0
    %v1970 = vsel %vm361, %v1870, 0
    %1972 = vmatprep.subr.mxu0 0.0
    %1973 = vmatpush1.xpose.msra.mxu0 0.0
    %1974 = vmatprep.subr.mxu0 0.0
    %1975 = vmatpush1.xpose.msra.mxu0 0.0
    %1976 = vmatprep.subr.mxu0 0.0
    %1977 = vmatpush1.xpose.msra.mxu0 0.0
    %1978 = vmatprep.subr.mxu0 0.0
    %1979 = vmatpush1.xpose.msra.mxu0 0.0
    %1980 = vmatprep.subr.mxu0 0.0
    %1981 = vmatpush1.xpose.msra.mxu0 0.0
    %1982 = vmatprep.subr.mxu0 0.0
    %1983 = vmatpush1.xpose.msra.mxu0 0.0
    %1984 = vmatprep.subr.mxu0 0.0
    %1985 = vmatpush1.xpose.msra.mxu0 0.0
    %1986 = vmatprep.subr.mxu0 0.0
    %1987 = vmatpush1.xpose.msra.mxu0 0.0
    %1988 = vmatprep.subr.mxu0 0.0
    %1989 = vmatpush1.xpose.msra.mxu0 0.0
    %1990 = vmatprep.subr.mxu0 0.0
    %1991 = vmatpush1.xpose.msra.mxu0 0.0
    %1992 = vmatprep.subr.mxu0 0.0
    %1993 = vmatpush1.xpose.msra.mxu0 0.0
    %1994 = vmatprep.subr.mxu0 0.0
    %1995 = vmatpush1.xpose.msra.mxu0 0.0
    %1996 = vmatprep.subr.mxu0 0.0
    %1997 = vmatpush1.xpose.msra.mxu0 0.0
    %1998 = vmatprep.subr.mxu0 0.0
    %1999 = vmatpush1.xpose.msra.mxu0 0.0
    %2000 = vmatprep.subr.mxu0 0.0
    %2001 = vmatpush1.xpose.msra.mxu0 %v1970
    %2002 = vmatprep.subr.mxu0 0.0
    %2003 = vmatpush1.xpose.msra.mxu0 %v1967
    %2004 = vmatprep.subr.mxu0 0.0
    %2005 = vmatpush2.xpose.msra.mxu0 0.0
    %2006 = vmatprep.subr.mxu0 0.0
    %2007 = vmatpush2.xpose.msra.mxu0 0.0
    %2008 = vmatprep.subr.mxu0 0.0
    %2009 = vmatpush2.xpose.msra.mxu0 0.0
    %2010 = vmatprep.subr.mxu0 0.0
    %2011 = vmatpush2.xpose.msra.mxu0 0.0
    %2012 = vmatprep.subr.mxu0 0.0
    %2013 = vmatpush2.xpose.msra.mxu0 0.0
    %2014 = vmatprep.subr.mxu0 0.0
    %2015 = vmatpush2.xpose.msra.mxu0 0.0
    %2016 = vmatprep.subr.mxu0 0.0
    %2017 = vmatpush2.xpose.msra.mxu0 0.0
    %2018 = vmatprep.subr.mxu0 0.0
    %2019 = vmatpush2.xpose.msra.mxu0 0.0
    %2020 = vmatprep.subr.mxu0 0.0
    %2021 = vmatpush2.xpose.msra.mxu0 0.0
    %2022 = vmatprep.subr.mxu0 0.0
    %2023 = vmatpush2.xpose.msra.mxu0 0.0
    %2024 = vmatprep.subr.mxu0 0.0
    %2025 = vmatpush2.xpose.msra.mxu0 0.0
    %2026 = vmatprep.subr.mxu0 0.0
    %2027 = vmatpush2.xpose.msra.mxu0 0.0
    %2028 = vmatprep.subr.mxu0 0.0
    %2029 = vmatpush2.xpose.msra.mxu0 0.0
    %2030 = vmatprep.subr.mxu0 0.0
    %2031 = vmatpush2.xpose.msra.mxu0 0.0
    %2032 = vmatprep.subr.mxu0 0.0
    %2033 = vmatpush2.xpose.msra.mxu0 0.0
    %2034 = vmatprep.subr.mxu0 0.0
    %2035 = vmatpush2.xpose.msra.mxu0 0.0
    %2036 = vmatprep.mubr.f32.mxu0 0.0
    %2037 = vmatmul.mubr.f32.gmra.mxu0 %v1961
    %v2038 = vpop.f32.mrf.mxu0
    %v2039 = vadd.f32 0.0, %v2038
    %v2040 = vpop.f32.mrf.mxu0
    %2041 = vmatprep.mubr.f32.mxu0 0.0
    %2042 = vmatmul.mubr.f32.gmra.mxu0 %v1964
    %v2043 = vpop.f32.mrf.mxu0
    %v2044 = vadd.f32 0.0, %v2043
    %v2045 = vpop.f32.mrf.mxu0
    %2046 = vdwg.mxu0
    %v2047 = vsel %vm88, %v2039, -1e+30
    %v2048 = vsel %vm89, %v2044, -1e+30
    %v2049 = vsel %vm451, %v2047, -inf
    %2050 = vmax.xlane.f32.xlu0 %v2049
    %v2051 = vpop.xlane.xlu0 %2050
    %v2052 = vsel %vm451, %v2048, -inf
    %2053 = vmax.xlane.f32.xlu0 %v2052
    %v2054 = vpop.xlane.xlu0 %2053
    %v2055 = vsub.f32 %v2047, %v2051
    %v2056 = vsub.f32 %v2048, %v2054
    %v2057 = vmul.f32 %v2055, 1.442695
    %v2058 = vpow.pop %v2057
    %v2059 = vmul.f32 %v2056, 1.442695
    %v2060 = vpow.pop %v2059
    %v2061 = vsel %vm451, %v2058, 0.0
    %2062 = vadd.xlane.f32.xlu0 %v2061
    %v2063 = vpop.xlane.xlu0 %2062
    %v2064 = vsel %vm451, %v2060, 0.0
    %2065 = vadd.xlane.f32.xlu0 %v2064
    %v2066 = vpop.xlane.xlu0 %2065
    %v2067 = vrcp.pop %v2063
    %v2068 = vrcp.pop %v2066
    %v2070 = vsel %vm451, %v2058, 0
    %v2073 = vsel %vm451, %v2060, 0
    %2075 = vmatprep.subr.mxu0 0.0
    %2076 = vmatpush1.msra.mxu0 0.0
    %2077 = vmatprep.subr.mxu0 0.0
    %2078 = vmatpush1.msra.mxu0 0.0
    %2079 = vmatprep.subr.mxu0 0.0
    %2080 = vmatpush1.msra.mxu0 0.0
    %2081 = vmatprep.subr.mxu0 0.0
    %2082 = vmatpush1.msra.mxu0 0.0
    %2083 = vmatprep.subr.mxu0 0.0
    %2084 = vmatpush1.msra.mxu0 0.0
    %2085 = vmatprep.subr.mxu0 0.0
    %2086 = vmatpush1.msra.mxu0 0.0
    %2087 = vmatprep.subr.mxu0 0.0
    %2088 = vmatpush1.msra.mxu0 0.0
    %2089 = vmatprep.subr.mxu0 0.0
    %2090 = vmatpush1.msra.mxu0 0.0
    %2091 = vmatprep.subr.mxu0 0.0
    %2092 = vmatpush1.msra.mxu0 0.0
    %2093 = vmatprep.subr.mxu0 0.0
    %2094 = vmatpush1.msra.mxu0 0.0
    %2095 = vmatprep.subr.mxu0 0.0
    %2096 = vmatpush1.msra.mxu0 0.0
    %2097 = vmatprep.subr.mxu0 0.0
    %2098 = vmatpush1.msra.mxu0 0.0
    %2099 = vmatprep.subr.mxu0 0.0
    %2100 = vmatpush1.msra.mxu0 0.0
    %2101 = vmatprep.subr.mxu0 0.0
    %2102 = vmatpush1.msra.mxu0 0.0
    %2103 = vmatprep.subr.mxu0 0.0
    %2104 = vmatpush1.msra.mxu0 %v1955
    %2105 = vmatprep.subr.mxu0 0.0
    %2106 = vmatpush1.msra.mxu0 %v1950
    %2107 = vmatprep.subr.mxu0 0.0
    %2108 = vmatpush2.msra.mxu0 0.0
    %2109 = vmatprep.subr.mxu0 0.0
    %2110 = vmatpush2.msra.mxu0 0.0
    %2111 = vmatprep.subr.mxu0 0.0
    %2112 = vmatpush2.msra.mxu0 0.0
    %2113 = vmatprep.subr.mxu0 0.0
    %2114 = vmatpush2.msra.mxu0 0.0
    %2115 = vmatprep.subr.mxu0 0.0
    %2116 = vmatpush2.msra.mxu0 0.0
    %2117 = vmatprep.subr.mxu0 0.0
    %2118 = vmatpush2.msra.mxu0 0.0
    %2119 = vmatprep.subr.mxu0 0.0
    %2120 = vmatpush2.msra.mxu0 0.0
    %2121 = vmatprep.subr.mxu0 0.0
    %2122 = vmatpush2.msra.mxu0 0.0
    %2123 = vmatprep.subr.mxu0 0.0
    %2124 = vmatpush2.msra.mxu0 0.0
    %2125 = vmatprep.subr.mxu0 0.0
    %2126 = vmatpush2.msra.mxu0 0.0
    %2127 = vmatprep.subr.mxu0 0.0
    %2128 = vmatpush2.msra.mxu0 0.0
    %2129 = vmatprep.subr.mxu0 0.0
    %2130 = vmatpush2.msra.mxu0 0.0
    %2131 = vmatprep.subr.mxu0 0.0
    %2132 = vmatpush2.msra.mxu0 0.0
    %2133 = vmatprep.subr.mxu0 0.0
    %2134 = vmatpush2.msra.mxu0 0.0
    %2135 = vmatprep.subr.mxu0 0.0
    %2136 = vmatpush2.msra.mxu0 0.0
    %2137 = vmatprep.subr.mxu0 0.0
    %2138 = vmatpush2.msra.mxu0 0.0
    %2139 = vmatprep.mubr.f32.mxu0 0.0
    %2140 = vmatmul.mubr.f32.gmra.mxu0 %v2070
    %v2141 = vpop.f32.mrf.mxu0
    %v2142 = vadd.f32 0.0, %v2141
    %v2143 = vpop.f32.mrf.mxu0
    %2144 = vmatprep.mubr.f32.mxu0 0.0
    %2145 = vmatmul.mubr.f32.gmra.mxu0 %v2073
    %v2146 = vpop.f32.mrf.mxu0
    %v2147 = vadd.f32 0.0, %v2146
    %v2148 = vpop.f32.mrf.mxu0
    %2149 = vdwg.mxu0
    %v2150 = vmul.f32 %v2142, %v2067
    %v2151 = vmul.f32 %v2147, %v2068
    %s2152 = scalar_lea.vmem %s6, 24
    %v2153 = vld [vmem:[%s2152] sm:$0xff]
    %v2155 = vsel %vm361, %v2150, 0
    %v2158 = vsel %vm361, %v2151, 0
    %2160 = vmatprep.subr.mxu0 0.0
    %2161 = vmatpush1.msra.mxu0 0.0
    %2162 = vmatprep.subr.mxu0 0.0
    %2163 = vmatpush1.msra.mxu0 0.0
    %2164 = vmatprep.subr.mxu0 0.0
    %2165 = vmatpush1.msra.mxu0 0.0
    %2166 = vmatprep.subr.mxu0 0.0
    %2167 = vmatpush1.msra.mxu0 0.0
    %2168 = vmatprep.subr.mxu0 0.0
    %2169 = vmatpush1.msra.mxu0 0.0
    %2170 = vmatprep.subr.mxu0 0.0
    %2171 = vmatpush1.msra.mxu0 0.0
    %2172 = vmatprep.subr.mxu0 0.0
    %2173 = vmatpush1.msra.mxu0 0.0
    %2174 = vmatprep.subr.mxu0 0.0
    %2175 = vmatpush1.msra.mxu0 0.0
    %2176 = vmatprep.subr.mxu0 0.0
    %2177 = vmatpush1.msra.mxu0 0.0
    %2178 = vmatprep.subr.mxu0 0.0
    %2179 = vmatpush1.msra.mxu0 0.0
    %2180 = vmatprep.subr.mxu0 0.0
    %2181 = vmatpush1.msra.mxu0 0.0
    %2182 = vmatprep.subr.mxu0 0.0
    %2183 = vmatpush1.msra.mxu0 0.0
    %2184 = vmatprep.subr.mxu0 0.0
    %2185 = vmatpush1.msra.mxu0 0.0
    %2186 = vmatprep.subr.mxu0 0.0
    %2187 = vmatpush1.msra.mxu0 0.0
    %2188 = vmatprep.subr.mxu0 0.0
    %2189 = vmatpush1.msra.mxu0 0.0
    %2190 = vmatprep.subr.mxu0 0.0
    %2191 = vmatpush1.msra.mxu0 %v2153
    %2192 = vmatprep.subr.mxu0 0.0
    %2193 = vmatpush2.msra.mxu0 0.0
    %2194 = vmatprep.subr.mxu0 0.0
    %2195 = vmatpush2.msra.mxu0 0.0
    %2196 = vmatprep.subr.mxu0 0.0
    %2197 = vmatpush2.msra.mxu0 0.0
    %2198 = vmatprep.subr.mxu0 0.0
    %2199 = vmatpush2.msra.mxu0 0.0
    %2200 = vmatprep.subr.mxu0 0.0
    %2201 = vmatpush2.msra.mxu0 0.0
    %2202 = vmatprep.subr.mxu0 0.0
    %2203 = vmatpush2.msra.mxu0 0.0
    %2204 = vmatprep.subr.mxu0 0.0
    %2205 = vmatpush2.msra.mxu0 0.0
    %2206 = vmatprep.subr.mxu0 0.0
    %2207 = vmatpush2.msra.mxu0 0.0
    %2208 = vmatprep.subr.mxu0 0.0
    %2209 = vmatpush2.msra.mxu0 0.0
    %2210 = vmatprep.subr.mxu0 0.0
    %2211 = vmatpush2.msra.mxu0 0.0
    %2212 = vmatprep.subr.mxu0 0.0
    %2213 = vmatpush2.msra.mxu0 0.0
    %2214 = vmatprep.subr.mxu0 0.0
    %2215 = vmatpush2.msra.mxu0 0.0
    %2216 = vmatprep.subr.mxu0 0.0
    %2217 = vmatpush2.msra.mxu0 0.0
    %2218 = vmatprep.subr.mxu0 0.0
    %2219 = vmatpush2.msra.mxu0 0.0
    %2220 = vmatprep.subr.mxu0 0.0
    %2221 = vmatpush2.msra.mxu0 0.0
    %2222 = vmatprep.subr.mxu0 0.0
    %2223 = vmatpush2.msra.mxu0 0.0
    %2224 = vmatprep.mubr.f32.mxu0 0.0
    %2225 = vmatmul.mubr.f32.gmra.mxu0 %v2155
    %v2226 = vpop.f32.mrf.mxu0
    %v2227 = vadd.f32 0.0, %v2226
    %v2228 = vpop.f32.mrf.mxu0
    %2229 = vmatprep.mubr.f32.mxu0 0.0
    %2230 = vmatmul.mubr.f32.gmra.mxu0 %v2158
    %v2231 = vpop.f32.mrf.mxu0
    %v2232 = vadd.f32 0.0, %v2231
    %v2233 = vpop.f32.mrf.mxu0
    %2234 = vdwg.mxu0
    %v2235 = vadd.f32 %v1701, %v2227
    %v2236 = vadd.f32 %v1702, %v2232
    %v2237 = vld [vmem:[%s10] sm:$0x1]
    %v2238 = vlaneseq
    %v2239 = vshrl.u32 %v2238, 7
    %v2240 = vsub.s32 0, %v2239
    %v2241 = vrot.slane %v2237, %v2240
    %v2242 = vadd.f32 %v2235, %v2241
    %v2243 = vadd.f32 %v2236, %v2241
    %v2244 = vadd.f32 %v39, %v2242
    %v2245 = vadd.f32 %v40, %v2243
    %v2246 = vld [vmem:[%s10 + $0x3] sm:$0x1]
    %v2247 = vld [vmem:[%s10 + $0x4] sm:$0x1]
    %v2248 = vsel %vm101, %v2244, 0.0
    %2249 = vadd.xlane.f32.xlu0 %v2248
    %v2250 = vpop.xlane.xlu0 %2249
    %v2251 = vsel %vm101, %v2245, 0.0
    %2252 = vadd.xlane.f32.xlu0 %v2251
    %v2253 = vpop.xlane.xlu0 %2252
    %v2254 = vrcp.pop 32.0
    %v2255 = vmul.f32 %v2250, %v2254
    %v2256 = vmul.f32 %v2253, %v2254
    %v2257 = vsub.f32 %v2244, %v2255
    %v2258 = vsub.f32 %v2245, %v2256
    %v2259 = vmul.f32 %v2257, %v2257
    %v2260 = vmul.f32 %v2258, %v2258
    %v2261 = vsel %vm101, %v2259, 0.0
    %2262 = vadd.xlane.f32.xlu0 %v2261
    %v2263 = vpop.xlane.xlu0 %2262
    %v2264 = vsel %vm101, %v2260, 0.0
    %2265 = vadd.xlane.f32.xlu0 %v2264
    %v2266 = vpop.xlane.xlu0 %2265
    %v2267 = vmul.f32 %v2263, %v2254
    %v2268 = vmul.f32 %v2266, %v2254
    %v2269 = vadd.f32 %v2267, 1e-05
    %v2270 = vadd.f32 %v2268, 1e-05
    %v2271 = vrsqrt.pop %v2269
    %v2272 = vrsqrt.pop %v2270
    %v2273 = vmul.f32 %v2257, %v2271
    %v2274 = vmul.f32 %v2258, %v2272
    %v2275 = vlaneseq
    %v2276 = vshrl.u32 %v2275, 7
    %v2277 = vsub.s32 0, %v2276
    %v2278 = vrot.slane %v2246, %v2277
    %v2279 = vmul.f32 %v2273, %v2278
    %v2280 = vmul.f32 %v2274, %v2278
    %v2281 = vlaneseq
    %v2282 = vshrl.u32 %v2281, 7
    %v2283 = vsub.s32 0, %v2282
    %v2284 = vrot.slane %v2247, %v2283
    %v2285 = vadd.f32 %v2279, %v2284
    %v2286 = vadd.f32 %v2280, %v2284
    %v2287 = vadd.f32 %v2285, %v43
    %v2288 = vadd.f32 %v2286, %v44
    %v2289 = vadd.f32 %v41, %v45
    %v2290 = vadd.f32 %v42, %v46
    %s2291 = scalar_lea.vmem %s4, 384
    %v2292 = vld [vmem:[%s2291] sm:$0xff]
    %v2293 = vld [vmem:[%s2291 + $0x8] sm:$0xff]
    %v2294 = vld [vmem:[%s2291 + $0x10] sm:$0xff]
    %v2295 = vld [vmem:[%s2291 + $0x18] sm:$0xff]
    %v2296 = vld [vmem:[%s5 + $0xc] sm:$0x1]
    %v2297 = vlaneseq
    %v2298 = vshrl.u32 %v2297, 7
    %v2299 = vsub.s32 0, %v2298
    %v2300 = vrot.slane %v2296, %v2299
    %v2302 = vsel %vm101, %v2287, 0
    %v2305 = vsel %vm101, %v2288, 0
    %2307 = vmatprep.subr.mxu0 0.0
    %2308 = vmatpush1.msra.mxu0 0.0
    %2309 = vmatprep.subr.mxu0 0.0
    %2310 = vmatpush1.msra.mxu0 0.0
    %2311 = vmatprep.subr.mxu0 0.0
    %2312 = vmatpush1.msra.mxu0 0.0
    %2313 = vmatprep.subr.mxu0 0.0
    %2314 = vmatpush1.msra.mxu0 0.0
    %2315 = vmatprep.subr.mxu0 0.0
    %2316 = vmatpush1.msra.mxu0 0.0
    %2317 = vmatprep.subr.mxu0 0.0
    %2318 = vmatpush1.msra.mxu0 0.0
    %2319 = vmatprep.subr.mxu0 0.0
    %2320 = vmatpush1.msra.mxu0 0.0
    %2321 = vmatprep.subr.mxu0 0.0
    %2322 = vmatpush1.msra.mxu0 0.0
    %2323 = vmatprep.subr.mxu0 0.0
    %2324 = vmatpush1.msra.mxu0 0.0
    %2325 = vmatprep.subr.mxu0 0.0
    %2326 = vmatpush1.msra.mxu0 0.0
    %2327 = vmatprep.subr.mxu0 0.0
    %2328 = vmatpush1.msra.mxu0 0.0
    %2329 = vmatprep.subr.mxu0 0.0
    %2330 = vmatpush1.msra.mxu0 0.0
    %2331 = vmatprep.subr.mxu0 0.0
    %2332 = vmatpush1.msra.mxu0 %v2295
    %2333 = vmatprep.subr.mxu0 0.0
    %2334 = vmatpush1.msra.mxu0 %v2294
    %2335 = vmatprep.subr.mxu0 0.0
    %2336 = vmatpush1.msra.mxu0 %v2293
    %2337 = vmatprep.subr.mxu0 0.0
    %2338 = vmatpush1.msra.mxu0 %v2292
    %2339 = vmatprep.subr.mxu0 0.0
    %2340 = vmatpush2.msra.mxu0 0.0
    %2341 = vmatprep.subr.mxu0 0.0
    %2342 = vmatpush2.msra.mxu0 0.0
    %2343 = vmatprep.subr.mxu0 0.0
    %2344 = vmatpush2.msra.mxu0 0.0
    %2345 = vmatprep.subr.mxu0 0.0
    %2346 = vmatpush2.msra.mxu0 0.0
    %2347 = vmatprep.subr.mxu0 0.0
    %2348 = vmatpush2.msra.mxu0 0.0
    %2349 = vmatprep.subr.mxu0 0.0
    %2350 = vmatpush2.msra.mxu0 0.0
    %2351 = vmatprep.subr.mxu0 0.0
    %2352 = vmatpush2.msra.mxu0 0.0
    %2353 = vmatprep.subr.mxu0 0.0
    %2354 = vmatpush2.msra.mxu0 0.0
    %2355 = vmatprep.subr.mxu0 0.0
    %2356 = vmatpush2.msra.mxu0 0.0
    %2357 = vmatprep.subr.mxu0 0.0
    %2358 = vmatpush2.msra.mxu0 0.0
    %2359 = vmatprep.subr.mxu0 0.0
    %2360 = vmatpush2.msra.mxu0 0.0
    %2361 = vmatprep.subr.mxu0 0.0
    %2362 = vmatpush2.msra.mxu0 0.0
    %2363 = vmatprep.subr.mxu0 0.0
    %2364 = vmatpush2.msra.mxu0 0.0
    %2365 = vmatprep.subr.mxu0 0.0
    %2366 = vmatpush2.msra.mxu0 0.0
    %2367 = vmatprep.subr.mxu0 0.0
    %2368 = vmatpush2.msra.mxu0 0.0
    %2369 = vmatprep.subr.mxu0 0.0
    %2370 = vmatpush2.msra.mxu0 0.0
    %2371 = vmatprep.mubr.f32.mxu0 0.0
    %2372 = vmatmul.mubr.f32.gmra.mxu0 %v2302
    %v2373 = vpop.f32.mrf.mxu0
    %v2374 = vadd.f32 %v2300, %v2373
    %v2375 = vpop.f32.mrf.mxu0
    %2376 = vmatprep.mubr.f32.mxu0 0.0
    %2377 = vmatmul.mubr.f32.gmra.mxu0 %v2305
    %v2378 = vpop.f32.mrf.mxu0
    %v2379 = vadd.f32 %v2300, %v2378
    %v2380 = vpop.f32.mrf.mxu0
    %2381 = vdwg.mxu0
    %s2382 = scalar_lea.vmem %s4, 512
    %v2383 = vld [vmem:[%s2382] sm:$0xff]
    %v2384 = vld [vmem:[%s2382 + $0x8] sm:$0xff]
    %v2385 = vld [vmem:[%s2382 + $0x10] sm:$0xff]
    %v2386 = vld [vmem:[%s2382 + $0x18] sm:$0xff]
    %v2387 = vld [vmem:[%s5 + $0x10] sm:$0x1]
    %v2388 = vlaneseq
    %v2389 = vshrl.u32 %v2388, 7
    %v2390 = vsub.s32 0, %v2389
    %v2391 = vrot.slane %v2387, %v2390
    %v2393 = vsel %vm101, %v2289, 0
    %v2396 = vsel %vm101, %v2290, 0
    %2398 = vmatprep.subr.mxu0 0.0
    %2399 = vmatpush1.msra.mxu0 0.0
    %2400 = vmatprep.subr.mxu0 0.0
    %2401 = vmatpush1.msra.mxu0 0.0
    %2402 = vmatprep.subr.mxu0 0.0
    %2403 = vmatpush1.msra.mxu0 0.0
    %2404 = vmatprep.subr.mxu0 0.0
    %2405 = vmatpush1.msra.mxu0 0.0
    %2406 = vmatprep.subr.mxu0 0.0
    %2407 = vmatpush1.msra.mxu0 0.0
    %2408 = vmatprep.subr.mxu0 0.0
    %2409 = vmatpush1.msra.mxu0 0.0
    %2410 = vmatprep.subr.mxu0 0.0
    %2411 = vmatpush1.msra.mxu0 0.0
    %2412 = vmatprep.subr.mxu0 0.0
    %2413 = vmatpush1.msra.mxu0 0.0
    %2414 = vmatprep.subr.mxu0 0.0
    %2415 = vmatpush1.msra.mxu0 0.0
    %2416 = vmatprep.subr.mxu0 0.0
    %2417 = vmatpush1.msra.mxu0 0.0
    %2418 = vmatprep.subr.mxu0 0.0
    %2419 = vmatpush1.msra.mxu0 0.0
    %2420 = vmatprep.subr.mxu0 0.0
    %2421 = vmatpush1.msra.mxu0 0.0
    %2422 = vmatprep.subr.mxu0 0.0
    %2423 = vmatpush1.msra.mxu0 %v2386
    %2424 = vmatprep.subr.mxu0 0.0
    %2425 = vmatpush1.msra.mxu0 %v2385
    %2426 = vmatprep.subr.mxu0 0.0
    %2427 = vmatpush1.msra.mxu0 %v2384
    %2428 = vmatprep.subr.mxu0 0.0
    %2429 = vmatpush1.msra.mxu0 %v2383
    %2430 = vmatprep.subr.mxu0 0.0
    %2431 = vmatpush2.msra.mxu0 0.0
    %2432 = vmatprep.subr.mxu0 0.0
    %2433 = vmatpush2.msra.mxu0 0.0
    %2434 = vmatprep.subr.mxu0 0.0
    %2435 = vmatpush2.msra.mxu0 0.0
    %2436 = vmatprep.subr.mxu0 0.0
    %2437 = vmatpush2.msra.mxu0 0.0
    %2438 = vmatprep.subr.mxu0 0.0
    %2439 = vmatpush2.msra.mxu0 0.0
    %2440 = vmatprep.subr.mxu0 0.0
    %2441 = vmatpush2.msra.mxu0 0.0
    %2442 = vmatprep.subr.mxu0 0.0
    %2443 = vmatpush2.msra.mxu0 0.0
    %2444 = vmatprep.subr.mxu0 0.0
    %2445 = vmatpush2.msra.mxu0 0.0
    %2446 = vmatprep.subr.mxu0 0.0
    %2447 = vmatpush2.msra.mxu0 0.0
    %2448 = vmatprep.subr.mxu0 0.0
    %2449 = vmatpush2.msra.mxu0 0.0
    %2450 = vmatprep.subr.mxu0 0.0
    %2451 = vmatpush2.msra.mxu0 0.0
    %2452 = vmatprep.subr.mxu0 0.0
    %2453 = vmatpush2.msra.mxu0 0.0
    %2454 = vmatprep.subr.mxu0 0.0
    %2455 = vmatpush2.msra.mxu0 0.0
    %2456 = vmatprep.subr.mxu0 0.0
    %2457 = vmatpush2.msra.mxu0 0.0
    %2458 = vmatprep.subr.mxu0 0.0
    %2459 = vmatpush2.msra.mxu0 0.0
    %2460 = vmatprep.subr.mxu0 0.0
    %2461 = vmatpush2.msra.mxu0 0.0
    %2462 = vmatprep.mubr.f32.mxu0 0.0
    %2463 = vmatmul.mubr.f32.gmra.mxu0 %v2393
    %v2464 = vpop.f32.mrf.mxu0
    %v2465 = vadd.f32 %v2391, %v2464
    %v2466 = vpop.f32.mrf.mxu0
    %2467 = vmatprep.mubr.f32.mxu0 0.0
    %2468 = vmatmul.mubr.f32.gmra.mxu0 %v2396
    %v2469 = vpop.f32.mrf.mxu0
    %v2470 = vadd.f32 %v2391, %v2469
    %v2471 = vpop.f32.mrf.mxu0
    %2472 = vdwg.mxu0
    %s2473 = scalar_lea.vmem %s4, 640
    %v2474 = vld [vmem:[%s2473] sm:$0xff]
    %v2475 = vld [vmem:[%s2473 + $0x8] sm:$0xff]
    %v2476 = vld [vmem:[%s2473 + $0x10] sm:$0xff]
    %v2477 = vld [vmem:[%s2473 + $0x18] sm:$0xff]
    %v2478 = vld [vmem:[%s5 + $0x14] sm:$0x1]
    %v2479 = vlaneseq
    %v2480 = vshrl.u32 %v2479, 7
    %v2481 = vsub.s32 0, %v2480
    %v2482 = vrot.slane %v2478, %v2481
    %v2484 = vsel %vm101, %v41, 0
    %v2487 = vsel %vm101, %v42, 0
    %2489 = vmatprep.subr.mxu0 0.0
    %2490 = vmatpush1.msra.mxu0 0.0
    %2491 = vmatprep.subr.mxu0 0.0
    %2492 = vmatpush1.msra.mxu0 0.0
    %2493 = vmatprep.subr.mxu0 0.0
    %2494 = vmatpush1.msra.mxu0 0.0
    %2495 = vmatprep.subr.mxu0 0.0
    %2496 = vmatpush1.msra.mxu0 0.0
    %2497 = vmatprep.subr.mxu0 0.0
    %2498 = vmatpush1.msra.mxu0 0.0
    %2499 = vmatprep.subr.mxu0 0.0
    %2500 = vmatpush1.msra.mxu0 0.0
    %2501 = vmatprep.subr.mxu0 0.0
    %2502 = vmatpush1.msra.mxu0 0.0
    %2503 = vmatprep.subr.mxu0 0.0
    %2504 = vmatpush1.msra.mxu0 0.0
    %2505 = vmatprep.subr.mxu0 0.0
    %2506 = vmatpush1.msra.mxu0 0.0
    %2507 = vmatprep.subr.mxu0 0.0
    %2508 = vmatpush1.msra.mxu0 0.0
    %2509 = vmatprep.subr.mxu0 0.0
    %2510 = vmatpush1.msra.mxu0 0.0
    %2511 = vmatprep.subr.mxu0 0.0
    %2512 = vmatpush1.msra.mxu0 0.0
    %2513 = vmatprep.subr.mxu0 0.0
    %2514 = vmatpush1.msra.mxu0 %v2477
    %2515 = vmatprep.subr.mxu0 0.0
    %2516 = vmatpush1.msra.mxu0 %v2476
    %2517 = vmatprep.subr.mxu0 0.0
    %2518 = vmatpush1.msra.mxu0 %v2475
    %2519 = vmatprep.subr.mxu0 0.0
    %2520 = vmatpush1.msra.mxu0 %v2474
    %2521 = vmatprep.subr.mxu0 0.0
    %2522 = vmatpush2.msra.mxu0 0.0
    %2523 = vmatprep.subr.mxu0 0.0
    %2524 = vmatpush2.msra.mxu0 0.0
    %2525 = vmatprep.subr.mxu0 0.0
    %2526 = vmatpush2.msra.mxu0 0.0
    %2527 = vmatprep.subr.mxu0 0.0
    %2528 = vmatpush2.msra.mxu0 0.0
    %2529 = vmatprep.subr.mxu0 0.0
    %2530 = vmatpush2.msra.mxu0 0.0
    %2531 = vmatprep.subr.mxu0 0.0
    %2532 = vmatpush2.msra.mxu0 0.0
    %2533 = vmatprep.subr.mxu0 0.0
    %2534 = vmatpush2.msra.mxu0 0.0
    %2535 = vmatprep.subr.mxu0 0.0
    %2536 = vmatpush2.msra.mxu0 0.0
    %2537 = vmatprep.subr.mxu0 0.0
    %2538 = vmatpush2.msra.mxu0 0.0
    %2539 = vmatprep.subr.mxu0 0.0
    %2540 = vmatpush2.msra.mxu0 0.0
    %2541 = vmatprep.subr.mxu0 0.0
    %2542 = vmatpush2.msra.mxu0 0.0
    %2543 = vmatprep.subr.mxu0 0.0
    %2544 = vmatpush2.msra.mxu0 0.0
    %2545 = vmatprep.subr.mxu0 0.0
    %2546 = vmatpush2.msra.mxu0 0.0
    %2547 = vmatprep.subr.mxu0 0.0
    %2548 = vmatpush2.msra.mxu0 0.0
    %2549 = vmatprep.subr.mxu0 0.0
    %2550 = vmatpush2.msra.mxu0 0.0
    %2551 = vmatprep.subr.mxu0 0.0
    %2552 = vmatpush2.msra.mxu0 0.0
    %2553 = vmatprep.mubr.f32.mxu0 0.0
    %2554 = vmatmul.mubr.f32.gmra.mxu0 %v2484
    %v2555 = vpop.f32.mrf.mxu0
    %v2556 = vadd.f32 %v2482, %v2555
    %v2557 = vpop.f32.mrf.mxu0
    %2558 = vmatprep.mubr.f32.mxu0 0.0
    %2559 = vmatmul.mubr.f32.gmra.mxu0 %v2487
    %v2560 = vpop.f32.mrf.mxu0
    %v2561 = vadd.f32 %v2482, %v2560
    %v2562 = vpop.f32.mrf.mxu0
    %2563 = vdwg.mxu0
    %v2564 = vmul.f32 %v2374, 0.35355338
    %v2565 = vmul.f32 %v2379, 0.35355338
    %v2567 = vsel %vm361, %v2564, 0
    %v2570 = vsel %vm361, %v2565, 0
    %v2573 = vsel %vm361, %v2465, 0
    %v2576 = vsel %vm361, %v2470, 0
    %2578 = vmatprep.subr.mxu0 0.0
    %2579 = vmatpush1.xpose.msra.mxu0 0.0
    %2580 = vmatprep.subr.mxu0 0.0
    %2581 = vmatpush1.xpose.msra.mxu0 0.0
    %2582 = vmatprep.subr.mxu0 0.0
    %2583 = vmatpush1.xpose.msra.mxu0 0.0
    %2584 = vmatprep.subr.mxu0 0.0
    %2585 = vmatpush1.xpose.msra.mxu0 0.0
    %2586 = vmatprep.subr.mxu0 0.0
    %2587 = vmatpush1.xpose.msra.mxu0 0.0
    %2588 = vmatprep.subr.mxu0 0.0
    %2589 = vmatpush1.xpose.msra.mxu0 0.0
    %2590 = vmatprep.subr.mxu0 0.0
    %2591 = vmatpush1.xpose.msra.mxu0 0.0
    %2592 = vmatprep.subr.mxu0 0.0
    %2593 = vmatpush1.xpose.msra.mxu0 0.0
    %2594 = vmatprep.subr.mxu0 0.0
    %2595 = vmatpush1.xpose.msra.mxu0 0.0
    %2596 = vmatprep.subr.mxu0 0.0
    %2597 = vmatpush1.xpose.msra.mxu0 0.0
    %2598 = vmatprep.subr.mxu0 0.0
    %2599 = vmatpush1.xpose.msra.mxu0 0.0
    %2600 = vmatprep.subr.mxu0 0.0
    %2601 = vmatpush1.xpose.msra.mxu0 0.0
    %2602 = vmatprep.subr.mxu0 0.0
    %2603 = vmatpush1.xpose.msra.mxu0 0.0
    %2604 = vmatprep.subr.mxu0 0.0
    %2605 = vmatpush1.xpose.msra.mxu0 0.0
    %2606 = vmatprep.subr.mxu0 0.0
    %2607 = vmatpush1.xpose.msra.mxu0 %v2576
    %2608 = vmatprep.subr.mxu0 0.0
    %2609 = vmatpush1.xpose.msra.mxu0 %v2573
    %2610 = vmatprep.subr.mxu0 0.0
    %2611 = vmatpush2.xpose.msra.mxu0 0.0
    %2612 = vmatprep.subr.mxu0 0.0
    %2613 = vmatpush2.xpose.msra.mxu0 0.0
    %2614 = vmatprep.subr.mxu0 0.0
    %2615 = vmatpush2.xpose.msra.mxu0 0.0
    %2616 = vmatprep.subr.mxu0 0.0
    %2617 = vmatpush2.xpose.msra.mxu0 0.0
    %2618 = vmatprep.subr.mxu0 0.0
    %2619 = vmatpush2.xpose.msra.mxu0 0.0
    %2620 = vmatprep.subr.mxu0 0.0
    %2621 = vmatpush2.xpose.msra.mxu0 0.0
    %2622 = vmatprep.subr.mxu0 0.0
    %2623 = vmatpush2.xpose.msra.mxu0 0.0
    %2624 = vmatprep.subr.mxu0 0.0
    %2625 = vmatpush2.xpose.msra.mxu0 0.0
    %2626 = vmatprep.subr.mxu0 0.0
    %2627 = vmatpush2.xpose.msra.mxu0 0.0
    %2628 = vmatprep.subr.mxu0 0.0
    %2629 = vmatpush2.xpose.msra.mxu0 0.0
    %2630 = vmatprep.subr.mxu0 0.0
    %2631 = vmatpush2.xpose.msra.mxu0 0.0
    %2632 = vmatprep.subr.mxu0 0.0
    %2633 = vmatpush2.xpose.msra.mxu0 0.0
    %2634 = vmatprep.subr.mxu0 0.0
    %2635 = vmatpush2.xpose.msra.mxu0 0.0
    %2636 = vmatprep.subr.mxu0 0.0
    %2637 = vmatpush2.xpose.msra.mxu0 0.0
    %2638 = vmatprep.subr.mxu0 0.0
    %2639 = vmatpush2.xpose.msra.mxu0 0.0
    %2640 = vmatprep.subr.mxu0 0.0
    %2641 = vmatpush2.xpose.msra.mxu0 0.0
    %2642 = vmatprep.mubr.f32.mxu0 0.0
    %2643 = vmatmul.mubr.f32.gmra.mxu0 %v2567
    %v2644 = vpop.f32.mrf.mxu0
    %v2645 = vadd.f32 0.0, %v2644
    %v2646 = vpop.f32.mrf.mxu0
    %2647 = vmatprep.mubr.f32.mxu0 0.0
    %2648 = vmatmul.mubr.f32.gmra.mxu0 %v2570
    %v2649 = vpop.f32.mrf.mxu0
    %v2650 = vadd.f32 0.0, %v2649
    %v2651 = vpop.f32.mrf.mxu0
    %2652 = vdwg.mxu0
    %v2653 = vsel %vm88, %v2645, -1e+30
    %v2654 = vsel %vm89, %v2650, -1e+30
    %v2655 = vsel %vm451, %v2653, -inf
    %2656 = vmax.xlane.f32.xlu0 %v2655
    %v2657 = vpop.xlane.xlu0 %2656
    %v2658 = vsel %vm451, %v2654, -inf
    %2659 = vmax.xlane.f32.xlu0 %v2658
    %v2660 = vpop.xlane.xlu0 %2659
    %v2661 = vsub.f32 %v2653, %v2657
    %v2662 = vsub.f32 %v2654, %v2660
    %v2663 = vmul.f32 %v2661, 1.442695
    %v2664 = vpow.pop %v2663
    %v2665 = vmul.f32 %v2662, 1.442695
    %v2666 = vpow.pop %v2665
    %v2667 = vsel %vm451, %v2664, 0.0
    %2668 = vadd.xlane.f32.xlu0 %v2667
    %v2669 = vpop.xlane.xlu0 %2668
    %v2670 = vsel %vm451, %v2666, 0.0
    %2671 = vadd.xlane.f32.xlu0 %v2670
    %v2672 = vpop.xlane.xlu0 %2671
    %v2673 = vrcp.pop %v2669
    %v2674 = vrcp.pop %v2672
    %v2676 = vsel %vm451, %v2664, 0
    %v2679 = vsel %vm451, %v2666, 0
    %2681 = vmatprep.subr.mxu0 0.0
    %2682 = vmatpush1.msra.mxu0 0.0
    %2683 = vmatprep.subr.mxu0 0.0
    %2684 = vmatpush1.msra.mxu0 0.0
    %2685 = vmatprep.subr.mxu0 0.0
    %2686 = vmatpush1.msra.mxu0 0.0
    %2687 = vmatprep.subr.mxu0 0.0
    %2688 = vmatpush1.msra.mxu0 0.0
    %2689 = vmatprep.subr.mxu0 0.0
    %2690 = vmatpush1.msra.mxu0 0.0
    %2691 = vmatprep.subr.mxu0 0.0
    %2692 = vmatpush1.msra.mxu0 0.0
    %2693 = vmatprep.subr.mxu0 0.0
    %2694 = vmatpush1.msra.mxu0 0.0
    %2695 = vmatprep.subr.mxu0 0.0
    %2696 = vmatpush1.msra.mxu0 0.0
    %2697 = vmatprep.subr.mxu0 0.0
    %2698 = vmatpush1.msra.mxu0 0.0
    %2699 = vmatprep.subr.mxu0 0.0
    %2700 = vmatpush1.msra.mxu0 0.0
    %2701 = vmatprep.subr.mxu0 0.0
    %2702 = vmatpush1.msra.mxu0 0.0
    %2703 = vmatprep.subr.mxu0 0.0
    %2704 = vmatpush1.msra.mxu0 0.0
    %2705 = vmatprep.subr.mxu0 0.0
    %2706 = vmatpush1.msra.mxu0 0.0
    %2707 = vmatprep.subr.mxu0 0.0
    %2708 = vmatpush1.msra.mxu0 0.0
    %2709 = vmatprep.subr.mxu0 0.0
    %2710 = vmatpush1.msra.mxu0 %v2561
    %2711 = vmatprep.subr.mxu0 0.0
    %2712 = vmatpush1.msra.mxu0 %v2556
    %2713 = vmatprep.subr.mxu0 0.0
    %2714 = vmatpush2.msra.mxu0 0.0
    %2715 = vmatprep.subr.mxu0 0.0
    %2716 = vmatpush2.msra.mxu0 0.0
    %2717 = vmatprep.subr.mxu0 0.0
    %2718 = vmatpush2.msra.mxu0 0.0
    %2719 = vmatprep.subr.mxu0 0.0
    %2720 = vmatpush2.msra.mxu0 0.0
    %2721 = vmatprep.subr.mxu0 0.0
    %2722 = vmatpush2.msra.mxu0 0.0
    %2723 = vmatprep.subr.mxu0 0.0
    %2724 = vmatpush2.msra.mxu0 0.0
    %2725 = vmatprep.subr.mxu0 0.0
    %2726 = vmatpush2.msra.mxu0 0.0
    %2727 = vmatprep.subr.mxu0 0.0
    %2728 = vmatpush2.msra.mxu0 0.0
    %2729 = vmatprep.subr.mxu0 0.0
    %2730 = vmatpush2.msra.mxu0 0.0
    %2731 = vmatprep.subr.mxu0 0.0
    %2732 = vmatpush2.msra.mxu0 0.0
    %2733 = vmatprep.subr.mxu0 0.0
    %2734 = vmatpush2.msra.mxu0 0.0
    %2735 = vmatprep.subr.mxu0 0.0
    %2736 = vmatpush2.msra.mxu0 0.0
    %2737 = vmatprep.subr.mxu0 0.0
    %2738 = vmatpush2.msra.mxu0 0.0
    %2739 = vmatprep.subr.mxu0 0.0
    %2740 = vmatpush2.msra.mxu0 0.0
    %2741 = vmatprep.subr.mxu0 0.0
    %2742 = vmatpush2.msra.mxu0 0.0
    %2743 = vmatprep.subr.mxu0 0.0
    %2744 = vmatpush2.msra.mxu0 0.0
    %2745 = vmatprep.mubr.f32.mxu0 0.0
    %2746 = vmatmul.mubr.f32.gmra.mxu0 %v2676
    %v2747 = vpop.f32.mrf.mxu0
    %v2748 = vadd.f32 0.0, %v2747
    %v2749 = vpop.f32.mrf.mxu0
    %2750 = vmatprep.mubr.f32.mxu0 0.0
    %2751 = vmatmul.mubr.f32.gmra.mxu0 %v2679
    %v2752 = vpop.f32.mrf.mxu0
    %v2753 = vadd.f32 0.0, %v2752
    %v2754 = vpop.f32.mrf.mxu0
    %2755 = vdwg.mxu0
    %v2756 = vmul.f32 %v2748, %v2673
    %v2757 = vmul.f32 %v2753, %v2674
    %s2758 = scalar_lea.vmem %s6, 32
    %v2759 = vld [vmem:[%s2758] sm:$0xff]
    %s2760 = scalar_lea.vmem %s4, 416
    %v2761 = vld [vmem:[%s2760] sm:$0xff]
    %v2762 = vld [vmem:[%s2760 + $0x8] sm:$0xff]
    %v2763 = vld [vmem:[%s2760 + $0x10] sm:$0xff]
    %v2764 = vld [vmem:[%s2760 + $0x18] sm:$0xff]
    %v2765 = vld [vmem:[%s5 + $0xd] sm:$0x1]
    %v2766 = vlaneseq
    %v2767 = vshrl.u32 %v2766, 7
    %v2768 = vsub.s32 0, %v2767
    %v2769 = vrot.slane %v2765, %v2768
    %2770 = vmatprep.subr.mxu0 0.0
    %2771 = vmatpush1.msra.mxu0 0.0
    %2772 = vmatprep.subr.mxu0 0.0
    %2773 = vmatpush1.msra.mxu0 0.0
    %2774 = vmatprep.subr.mxu0 0.0
    %2775 = vmatpush1.msra.mxu0 0.0
    %2776 = vmatprep.subr.mxu0 0.0
    %2777 = vmatpush1.msra.mxu0 0.0
    %2778 = vmatprep.subr.mxu0 0.0
    %2779 = vmatpush1.msra.mxu0 0.0
    %2780 = vmatprep.subr.mxu0 0.0
    %2781 = vmatpush1.msra.mxu0 0.0
    %2782 = vmatprep.subr.mxu0 0.0
    %2783 = vmatpush1.msra.mxu0 0.0
    %2784 = vmatprep.subr.mxu0 0.0
    %2785 = vmatpush1.msra.mxu0 0.0
    %2786 = vmatprep.subr.mxu0 0.0
    %2787 = vmatpush1.msra.mxu0 0.0
    %2788 = vmatprep.subr.mxu0 0.0
    %2789 = vmatpush1.msra.mxu0 0.0
    %2790 = vmatprep.subr.mxu0 0.0
    %2791 = vmatpush1.msra.mxu0 0.0
    %2792 = vmatprep.subr.mxu0 0.0
    %2793 = vmatpush1.msra.mxu0 0.0
    %2794 = vmatprep.subr.mxu0 0.0
    %2795 = vmatpush1.msra.mxu0 %v2764
    %2796 = vmatprep.subr.mxu0 0.0
    %2797 = vmatpush1.msra.mxu0 %v2763
    %2798 = vmatprep.subr.mxu0 0.0
    %2799 = vmatpush1.msra.mxu0 %v2762
    %2800 = vmatprep.subr.mxu0 0.0
    %2801 = vmatpush1.msra.mxu0 %v2761
    %2802 = vmatprep.subr.mxu0 0.0
    %2803 = vmatpush2.msra.mxu0 0.0
    %2804 = vmatprep.subr.mxu0 0.0
    %2805 = vmatpush2.msra.mxu0 0.0
    %2806 = vmatprep.subr.mxu0 0.0
    %2807 = vmatpush2.msra.mxu0 0.0
    %2808 = vmatprep.subr.mxu0 0.0
    %2809 = vmatpush2.msra.mxu0 0.0
    %2810 = vmatprep.subr.mxu0 0.0
    %2811 = vmatpush2.msra.mxu0 0.0
    %2812 = vmatprep.subr.mxu0 0.0
    %2813 = vmatpush2.msra.mxu0 0.0
    %2814 = vmatprep.subr.mxu0 0.0
    %2815 = vmatpush2.msra.mxu0 0.0
    %2816 = vmatprep.subr.mxu0 0.0
    %2817 = vmatpush2.msra.mxu0 0.0
    %2818 = vmatprep.subr.mxu0 0.0
    %2819 = vmatpush2.msra.mxu0 0.0
    %2820 = vmatprep.subr.mxu0 0.0
    %2821 = vmatpush2.msra.mxu0 0.0
    %2822 = vmatprep.subr.mxu0 0.0
    %2823 = vmatpush2.msra.mxu0 0.0
    %2824 = vmatprep.subr.mxu0 0.0
    %2825 = vmatpush2.msra.mxu0 0.0
    %2826 = vmatprep.subr.mxu0 0.0
    %2827 = vmatpush2.msra.mxu0 0.0
    %2828 = vmatprep.subr.mxu0 0.0
    %2829 = vmatpush2.msra.mxu0 0.0
    %2830 = vmatprep.subr.mxu0 0.0
    %2831 = vmatpush2.msra.mxu0 0.0
    %2832 = vmatprep.subr.mxu0 0.0
    %2833 = vmatpush2.msra.mxu0 0.0
    %2834 = vmatprep.mubr.f32.mxu0 0.0
    %2835 = vmatmul.mubr.f32.gmra.mxu0 %v2302
    %v2836 = vpop.f32.mrf.mxu0
    %v2837 = vadd.f32 %v2769, %v2836
    %v2838 = vpop.f32.mrf.mxu0
    %2839 = vmatprep.mubr.f32.mxu0 0.0
    %2840 = vmatmul.mubr.f32.gmra.mxu0 %v2305
    %v2841 = vpop.f32.mrf.mxu0
    %v2842 = vadd.f32 %v2769, %v2841
    %v2843 = vpop.f32.mrf.mxu0
    %2844 = vdwg.mxu0
    %s2845 = scalar_lea.vmem %s4, 544
    %v2846 = vld [vmem:[%s2845] sm:$0xff]
    %v2847 = vld [vmem:[%s2845 + $0x8] sm:$0xff]
    %v2848 = vld [vmem:[%s2845 + $0x10] sm:$0xff]
    %v2849 = vld [vmem:[%s2845 + $0x18] sm:$0xff]
    %v2850 = vld [vmem:[%s5 + $0x11] sm:$0x1]
    %v2851 = vlaneseq
    %v2852 = vshrl.u32 %v2851, 7
    %v2853 = vsub.s32 0, %v2852
    %v2854 = vrot.slane %v2850, %v2853
    %2855 = vmatprep.subr.mxu0 0.0
    %2856 = vmatpush1.msra.mxu0 0.0
    %2857 = vmatprep.subr.mxu0 0.0
    %2858 = vmatpush1.msra.mxu0 0.0
    %2859 = vmatprep.subr.mxu0 0.0
    %2860 = vmatpush1.msra.mxu0 0.0
    %2861 = vmatprep.subr.mxu0 0.0
    %2862 = vmatpush1.msra.mxu0 0.0
    %2863 = vmatprep.subr.mxu0 0.0
    %2864 = vmatpush1.msra.mxu0 0.0
    %2865 = vmatprep.subr.mxu0 0.0
    %2866 = vmatpush1.msra.mxu0 0.0
    %2867 = vmatprep.subr.mxu0 0.0
    %2868 = vmatpush1.msra.mxu0 0.0
    %2869 = vmatprep.subr.mxu0 0.0
    %2870 = vmatpush1.msra.mxu0 0.0
    %2871 = vmatprep.subr.mxu0 0.0
    %2872 = vmatpush1.msra.mxu0 0.0
    %2873 = vmatprep.subr.mxu0 0.0
    %2874 = vmatpush1.msra.mxu0 0.0
    %2875 = vmatprep.subr.mxu0 0.0
    %2876 = vmatpush1.msra.mxu0 0.0
    %2877 = vmatprep.subr.mxu0 0.0
    %2878 = vmatpush1.msra.mxu0 0.0
    %2879 = vmatprep.subr.mxu0 0.0
    %2880 = vmatpush1.msra.mxu0 %v2849
    %2881 = vmatprep.subr.mxu0 0.0
    %2882 = vmatpush1.msra.mxu0 %v2848
    %2883 = vmatprep.subr.mxu0 0.0
    %2884 = vmatpush1.msra.mxu0 %v2847
    %2885 = vmatprep.subr.mxu0 0.0
    %2886 = vmatpush1.msra.mxu0 %v2846
    %2887 = vmatprep.subr.mxu0 0.0
    %2888 = vmatpush2.msra.mxu0 0.0
    %2889 = vmatprep.subr.mxu0 0.0
    %2890 = vmatpush2.msra.mxu0 0.0
    %2891 = vmatprep.subr.mxu0 0.0
    %2892 = vmatpush2.msra.mxu0 0.0
    %2893 = vmatprep.subr.mxu0 0.0
    %2894 = vmatpush2.msra.mxu0 0.0
    %2895 = vmatprep.subr.mxu0 0.0
    %2896 = vmatpush2.msra.mxu0 0.0
    %2897 = vmatprep.subr.mxu0 0.0
    %2898 = vmatpush2.msra.mxu0 0.0
    %2899 = vmatprep.subr.mxu0 0.0
    %2900 = vmatpush2.msra.mxu0 0.0
    %2901 = vmatprep.subr.mxu0 0.0
    %2902 = vmatpush2.msra.mxu0 0.0
    %2903 = vmatprep.subr.mxu0 0.0
    %2904 = vmatpush2.msra.mxu0 0.0
    %2905 = vmatprep.subr.mxu0 0.0
    %2906 = vmatpush2.msra.mxu0 0.0
    %2907 = vmatprep.subr.mxu0 0.0
    %2908 = vmatpush2.msra.mxu0 0.0
    %2909 = vmatprep.subr.mxu0 0.0
    %2910 = vmatpush2.msra.mxu0 0.0
    %2911 = vmatprep.subr.mxu0 0.0
    %2912 = vmatpush2.msra.mxu0 0.0
    %2913 = vmatprep.subr.mxu0 0.0
    %2914 = vmatpush2.msra.mxu0 0.0
    %2915 = vmatprep.subr.mxu0 0.0
    %2916 = vmatpush2.msra.mxu0 0.0
    %2917 = vmatprep.subr.mxu0 0.0
    %2918 = vmatpush2.msra.mxu0 0.0
    %2919 = vmatprep.mubr.f32.mxu0 0.0
    %2920 = vmatmul.mubr.f32.gmra.mxu0 %v2393
    %v2921 = vpop.f32.mrf.mxu0
    %v2922 = vadd.f32 %v2854, %v2921
    %v2923 = vpop.f32.mrf.mxu0
    %2924 = vmatprep.mubr.f32.mxu0 0.0
    %2925 = vmatmul.mubr.f32.gmra.mxu0 %v2396
    %v2926 = vpop.f32.mrf.mxu0
    %v2927 = vadd.f32 %v2854, %v2926
    %v2928 = vpop.f32.mrf.mxu0
    %2929 = vdwg.mxu0
    %s2930 = scalar_lea.vmem %s4, 672
    %v2931 = vld [vmem:[%s2930] sm:$0xff]
    %v2932 = vld [vmem:[%s2930 + $0x8] sm:$0xff]
    %v2933 = vld [vmem:[%s2930 + $0x10] sm:$0xff]
    %v2934 = vld [vmem:[%s2930 + $0x18] sm:$0xff]
    %v2935 = vld [vmem:[%s5 + $0x15] sm:$0x1]
    %v2936 = vlaneseq
    %v2937 = vshrl.u32 %v2936, 7
    %v2938 = vsub.s32 0, %v2937
    %v2939 = vrot.slane %v2935, %v2938
    %2940 = vmatprep.subr.mxu0 0.0
    %2941 = vmatpush1.msra.mxu0 0.0
    %2942 = vmatprep.subr.mxu0 0.0
    %2943 = vmatpush1.msra.mxu0 0.0
    %2944 = vmatprep.subr.mxu0 0.0
    %2945 = vmatpush1.msra.mxu0 0.0
    %2946 = vmatprep.subr.mxu0 0.0
    %2947 = vmatpush1.msra.mxu0 0.0
    %2948 = vmatprep.subr.mxu0 0.0
    %2949 = vmatpush1.msra.mxu0 0.0
    %2950 = vmatprep.subr.mxu0 0.0
    %2951 = vmatpush1.msra.mxu0 0.0
    %2952 = vmatprep.subr.mxu0 0.0
    %2953 = vmatpush1.msra.mxu0 0.0
    %2954 = vmatprep.subr.mxu0 0.0
    %2955 = vmatpush1.msra.mxu0 0.0
    %2956 = vmatprep.subr.mxu0 0.0
    %2957 = vmatpush1.msra.mxu0 0.0
    %2958 = vmatprep.subr.mxu0 0.0
    %2959 = vmatpush1.msra.mxu0 0.0
    %2960 = vmatprep.subr.mxu0 0.0
    %2961 = vmatpush1.msra.mxu0 0.0
    %2962 = vmatprep.subr.mxu0 0.0
    %2963 = vmatpush1.msra.mxu0 0.0
    %2964 = vmatprep.subr.mxu0 0.0
    %2965 = vmatpush1.msra.mxu0 %v2934
    %2966 = vmatprep.subr.mxu0 0.0
    %2967 = vmatpush1.msra.mxu0 %v2933
    %2968 = vmatprep.subr.mxu0 0.0
    %2969 = vmatpush1.msra.mxu0 %v2932
    %2970 = vmatprep.subr.mxu0 0.0
    %2971 = vmatpush1.msra.mxu0 %v2931
    %2972 = vmatprep.subr.mxu0 0.0
    %2973 = vmatpush2.msra.mxu0 0.0
    %2974 = vmatprep.subr.mxu0 0.0
    %2975 = vmatpush2.msra.mxu0 0.0
    %2976 = vmatprep.subr.mxu0 0.0
    %2977 = vmatpush2.msra.mxu0 0.0
    %2978 = vmatprep.subr.mxu0 0.0
    %2979 = vmatpush2.msra.mxu0 0.0
    %2980 = vmatprep.subr.mxu0 0.0
    %2981 = vmatpush2.msra.mxu0 0.0
    %2982 = vmatprep.subr.mxu0 0.0
    %2983 = vmatpush2.msra.mxu0 0.0
    %2984 = vmatprep.subr.mxu0 0.0
    %2985 = vmatpush2.msra.mxu0 0.0
    %2986 = vmatprep.subr.mxu0 0.0
    %2987 = vmatpush2.msra.mxu0 0.0
    %2988 = vmatprep.subr.mxu0 0.0
    %2989 = vmatpush2.msra.mxu0 0.0
    %2990 = vmatprep.subr.mxu0 0.0
    %2991 = vmatpush2.msra.mxu0 0.0
    %2992 = vmatprep.subr.mxu0 0.0
    %2993 = vmatpush2.msra.mxu0 0.0
    %2994 = vmatprep.subr.mxu0 0.0
    %2995 = vmatpush2.msra.mxu0 0.0
    %2996 = vmatprep.subr.mxu0 0.0
    %2997 = vmatpush2.msra.mxu0 0.0
    %2998 = vmatprep.subr.mxu0 0.0
    %2999 = vmatpush2.msra.mxu0 0.0
    %3000 = vmatprep.subr.mxu0 0.0
    %3001 = vmatpush2.msra.mxu0 0.0
    %3002 = vmatprep.subr.mxu0 0.0
    %3003 = vmatpush2.msra.mxu0 0.0
    %3004 = vmatprep.mubr.f32.mxu0 0.0
    %3005 = vmatmul.mubr.f32.gmra.mxu0 %v2484
    %v3006 = vpop.f32.mrf.mxu0
    %v3007 = vadd.f32 %v2939, %v3006
    %v3008 = vpop.f32.mrf.mxu0
    %3009 = vmatprep.mubr.f32.mxu0 0.0
    %3010 = vmatmul.mubr.f32.gmra.mxu0 %v2487
    %v3011 = vpop.f32.mrf.mxu0
    %v3012 = vadd.f32 %v2939, %v3011
    %v3013 = vpop.f32.mrf.mxu0
    %3014 = vdwg.mxu0
    %v3015 = vmul.f32 %v2837, 0.35355338
    %v3016 = vmul.f32 %v2842, 0.35355338
    %v3018 = vsel %vm361, %v3015, 0
    %v3021 = vsel %vm361, %v3016, 0
    %v3024 = vsel %vm361, %v2922, 0
    %v3027 = vsel %vm361, %v2927, 0
    %3029 = vmatprep.subr.mxu0 0.0
    %3030 = vmatpush1.xpose.msra.mxu0 0.0
    %3031 = vmatprep.subr.mxu0 0.0
    %3032 = vmatpush1.xpose.msra.mxu0 0.0
    %3033 = vmatprep.subr.mxu0 0.0
    %3034 = vmatpush1.xpose.msra.mxu0 0.0
    %3035 = vmatprep.subr.mxu0 0.0
    %3036 = vmatpush1.xpose.msra.mxu0 0.0
    %3037 = vmatprep.subr.mxu0 0.0
    %3038 = vmatpush1.xpose.msra.mxu0 0.0
    %3039 = vmatprep.subr.mxu0 0.0
    %3040 = vmatpush1.xpose.msra.mxu0 0.0
    %3041 = vmatprep.subr.mxu0 0.0
    %3042 = vmatpush1.xpose.msra.mxu0 0.0
    %3043 = vmatprep.subr.mxu0 0.0
    %3044 = vmatpush1.xpose.msra.mxu0 0.0
    %3045 = vmatprep.subr.mxu0 0.0
    %3046 = vmatpush1.xpose.msra.mxu0 0.0
    %3047 = vmatprep.subr.mxu0 0.0
    %3048 = vmatpush1.xpose.msra.mxu0 0.0
    %3049 = vmatprep.subr.mxu0 0.0
    %3050 = vmatpush1.xpose.msra.mxu0 0.0
    %3051 = vmatprep.subr.mxu0 0.0
    %3052 = vmatpush1.xpose.msra.mxu0 0.0
    %3053 = vmatprep.subr.mxu0 0.0
    %3054 = vmatpush1.xpose.msra.mxu0 0.0
    %3055 = vmatprep.subr.mxu0 0.0
    %3056 = vmatpush1.xpose.msra.mxu0 0.0
    %3057 = vmatprep.subr.mxu0 0.0
    %3058 = vmatpush1.xpose.msra.mxu0 %v3027
    %3059 = vmatprep.subr.mxu0 0.0
    %3060 = vmatpush1.xpose.msra.mxu0 %v3024
    %3061 = vmatprep.subr.mxu0 0.0
    %3062 = vmatpush2.xpose.msra.mxu0 0.0
    %3063 = vmatprep.subr.mxu0 0.0
    %3064 = vmatpush2.xpose.msra.mxu0 0.0
    %3065 = vmatprep.subr.mxu0 0.0
    %3066 = vmatpush2.xpose.msra.mxu0 0.0
    %3067 = vmatprep.subr.mxu0 0.0
    %3068 = vmatpush2.xpose.msra.mxu0 0.0
    %3069 = vmatprep.subr.mxu0 0.0
    %3070 = vmatpush2.xpose.msra.mxu0 0.0
    %3071 = vmatprep.subr.mxu0 0.0
    %3072 = vmatpush2.xpose.msra.mxu0 0.0
    %3073 = vmatprep.subr.mxu0 0.0
    %3074 = vmatpush2.xpose.msra.mxu0 0.0
    %3075 = vmatprep.subr.mxu0 0.0
    %3076 = vmatpush2.xpose.msra.mxu0 0.0
    %3077 = vmatprep.subr.mxu0 0.0
    %3078 = vmatpush2.xpose.msra.mxu0 0.0
    %3079 = vmatprep.subr.mxu0 0.0
    %3080 = vmatpush2.xpose.msra.mxu0 0.0
    %3081 = vmatprep.subr.mxu0 0.0
    %3082 = vmatpush2.xpose.msra.mxu0 0.0
    %3083 = vmatprep.subr.mxu0 0.0
    %3084 = vmatpush2.xpose.msra.mxu0 0.0
    %3085 = vmatprep.subr.mxu0 0.0
    %3086 = vmatpush2.xpose.msra.mxu0 0.0
    %3087 = vmatprep.subr.mxu0 0.0
    %3088 = vmatpush2.xpose.msra.mxu0 0.0
    %3089 = vmatprep.subr.mxu0 0.0
    %3090 = vmatpush2.xpose.msra.mxu0 0.0
    %3091 = vmatprep.subr.mxu0 0.0
    %3092 = vmatpush2.xpose.msra.mxu0 0.0
    %3093 = vmatprep.mubr.f32.mxu0 0.0
    %3094 = vmatmul.mubr.f32.gmra.mxu0 %v3018
    %v3095 = vpop.f32.mrf.mxu0
    %v3096 = vadd.f32 0.0, %v3095
    %v3097 = vpop.f32.mrf.mxu0
    %3098 = vmatprep.mubr.f32.mxu0 0.0
    %3099 = vmatmul.mubr.f32.gmra.mxu0 %v3021
    %v3100 = vpop.f32.mrf.mxu0
    %v3101 = vadd.f32 0.0, %v3100
    %v3102 = vpop.f32.mrf.mxu0
    %3103 = vdwg.mxu0
    %v3104 = vsel %vm88, %v3096, -1e+30
    %v3105 = vsel %vm89, %v3101, -1e+30
    %v3106 = vsel %vm451, %v3104, -inf
    %3107 = vmax.xlane.f32.xlu0 %v3106
    %v3108 = vpop.xlane.xlu0 %3107
    %v3109 = vsel %vm451, %v3105, -inf
    %3110 = vmax.xlane.f32.xlu0 %v3109
    %v3111 = vpop.xlane.xlu0 %3110
    %v3112 = vsub.f32 %v3104, %v3108
    %v3113 = vsub.f32 %v3105, %v3111
    %v3114 = vmul.f32 %v3112, 1.442695
    %v3115 = vpow.pop %v3114
    %v3116 = vmul.f32 %v3113, 1.442695
    %v3117 = vpow.pop %v3116
    %v3118 = vsel %vm451, %v3115, 0.0
    %3119 = vadd.xlane.f32.xlu0 %v3118
    %v3120 = vpop.xlane.xlu0 %3119
    %v3121 = vsel %vm451, %v3117, 0.0
    %3122 = vadd.xlane.f32.xlu0 %v3121
    %v3123 = vpop.xlane.xlu0 %3122
    %v3124 = vrcp.pop %v3120
    %v3125 = vrcp.pop %v3123
    %v3127 = vsel %vm451, %v3115, 0
    %v3130 = vsel %vm451, %v3117, 0
    %3132 = vmatprep.subr.mxu0 0.0
    %3133 = vmatpush1.msra.mxu0 0.0
    %3134 = vmatprep.subr.mxu0 0.0
    %3135 = vmatpush1.msra.mxu0 0.0
    %3136 = vmatprep.subr.mxu0 0.0
    %3137 = vmatpush1.msra.mxu0 0.0
    %3138 = vmatprep.subr.mxu0 0.0
    %3139 = vmatpush1.msra.mxu0 0.0
    %3140 = vmatprep.subr.mxu0 0.0
    %3141 = vmatpush1.msra.mxu0 0.0
    %3142 = vmatprep.subr.mxu0 0.0
    %3143 = vmatpush1.msra.mxu0 0.0
    %3144 = vmatprep.subr.mxu0 0.0
    %3145 = vmatpush1.msra.mxu0 0.0
    %3146 = vmatprep.subr.mxu0 0.0
    %3147 = vmatpush1.msra.mxu0 0.0
    %3148 = vmatprep.subr.mxu0 0.0
    %3149 = vmatpush1.msra.mxu0 0.0
    %3150 = vmatprep.subr.mxu0 0.0
    %3151 = vmatpush1.msra.mxu0 0.0
    %3152 = vmatprep.subr.mxu0 0.0
    %3153 = vmatpush1.msra.mxu0 0.0
    %3154 = vmatprep.subr.mxu0 0.0
    %3155 = vmatpush1.msra.mxu0 0.0
    %3156 = vmatprep.subr.mxu0 0.0
    %3157 = vmatpush1.msra.mxu0 0.0
    %3158 = vmatprep.subr.mxu0 0.0
    %3159 = vmatpush1.msra.mxu0 0.0
    %3160 = vmatprep.subr.mxu0 0.0
    %3161 = vmatpush1.msra.mxu0 %v3012
    %3162 = vmatprep.subr.mxu0 0.0
    %3163 = vmatpush1.msra.mxu0 %v3007
    %3164 = vmatprep.subr.mxu0 0.0
    %3165 = vmatpush2.msra.mxu0 0.0
    %3166 = vmatprep.subr.mxu0 0.0
    %3167 = vmatpush2.msra.mxu0 0.0
    %3168 = vmatprep.subr.mxu0 0.0
    %3169 = vmatpush2.msra.mxu0 0.0
    %3170 = vmatprep.subr.mxu0 0.0
    %3171 = vmatpush2.msra.mxu0 0.0
    %3172 = vmatprep.subr.mxu0 0.0
    %3173 = vmatpush2.msra.mxu0 0.0
    %3174 = vmatprep.subr.mxu0 0.0
    %3175 = vmatpush2.msra.mxu0 0.0
    %3176 = vmatprep.subr.mxu0 0.0
    %3177 = vmatpush2.msra.mxu0 0.0
    %3178 = vmatprep.subr.mxu0 0.0
    %3179 = vmatpush2.msra.mxu0 0.0
    %3180 = vmatprep.subr.mxu0 0.0
    %3181 = vmatpush2.msra.mxu0 0.0
    %3182 = vmatprep.subr.mxu0 0.0
    %3183 = vmatpush2.msra.mxu0 0.0
    %3184 = vmatprep.subr.mxu0 0.0
    %3185 = vmatpush2.msra.mxu0 0.0
    %3186 = vmatprep.subr.mxu0 0.0
    %3187 = vmatpush2.msra.mxu0 0.0
    %3188 = vmatprep.subr.mxu0 0.0
    %3189 = vmatpush2.msra.mxu0 0.0
    %3190 = vmatprep.subr.mxu0 0.0
    %3191 = vmatpush2.msra.mxu0 0.0
    %3192 = vmatprep.subr.mxu0 0.0
    %3193 = vmatpush2.msra.mxu0 0.0
    %3194 = vmatprep.subr.mxu0 0.0
    %3195 = vmatpush2.msra.mxu0 0.0
    %3196 = vmatprep.mubr.f32.mxu0 0.0
    %3197 = vmatmul.mubr.f32.gmra.mxu0 %v3127
    %v3198 = vpop.f32.mrf.mxu0
    %v3199 = vadd.f32 0.0, %v3198
    %v3200 = vpop.f32.mrf.mxu0
    %3201 = vmatprep.mubr.f32.mxu0 0.0
    %3202 = vmatmul.mubr.f32.gmra.mxu0 %v3130
    %v3203 = vpop.f32.mrf.mxu0
    %v3204 = vadd.f32 0.0, %v3203
    %v3205 = vpop.f32.mrf.mxu0
    %3206 = vdwg.mxu0
    %v3207 = vmul.f32 %v3199, %v3124
    %v3208 = vmul.f32 %v3204, %v3125
    %s3209 = scalar_lea.vmem %s6, 40
    %v3210 = vld [vmem:[%s3209] sm:$0xff]
    %v3212 = vsel %vm361, %v3207, 0
    %v3215 = vsel %vm361, %v3208, 0
    %3217 = vmatprep.subr.mxu0 0.0
    %3218 = vmatpush1.msra.mxu0 0.0
    %3219 = vmatprep.subr.mxu0 0.0
    %3220 = vmatpush1.msra.mxu0 0.0
    %3221 = vmatprep.subr.mxu0 0.0
    %3222 = vmatpush1.msra.mxu0 0.0
    %3223 = vmatprep.subr.mxu0 0.0
    %3224 = vmatpush1.msra.mxu0 0.0
    %3225 = vmatprep.subr.mxu0 0.0
    %3226 = vmatpush1.msra.mxu0 0.0
    %3227 = vmatprep.subr.mxu0 0.0
    %3228 = vmatpush1.msra.mxu0 0.0
    %3229 = vmatprep.subr.mxu0 0.0
    %3230 = vmatpush1.msra.mxu0 0.0
    %3231 = vmatprep.subr.mxu0 0.0
    %3232 = vmatpush1.msra.mxu0 0.0
    %3233 = vmatprep.subr.mxu0 0.0
    %3234 = vmatpush1.msra.mxu0 0.0
    %3235 = vmatprep.subr.mxu0 0.0
    %3236 = vmatpush1.msra.mxu0 0.0
    %3237 = vmatprep.subr.mxu0 0.0
    %3238 = vmatpush1.msra.mxu0 0.0
    %3239 = vmatprep.subr.mxu0 0.0
    %3240 = vmatpush1.msra.mxu0 0.0
    %3241 = vmatprep.subr.mxu0 0.0
    %3242 = vmatpush1.msra.mxu0 0.0
    %3243 = vmatprep.subr.mxu0 0.0
    %3244 = vmatpush1.msra.mxu0 0.0
    %3245 = vmatprep.subr.mxu0 0.0
    %3246 = vmatpush1.msra.mxu0 0.0
    %3247 = vmatprep.subr.mxu0 0.0
    %3248 = vmatpush1.msra.mxu0 %v3210
    %3249 = vmatprep.subr.mxu0 0.0
    %3250 = vmatpush2.msra.mxu0 0.0
    %3251 = vmatprep.subr.mxu0 0.0
    %3252 = vmatpush2.msra.mxu0 0.0
    %3253 = vmatprep.subr.mxu0 0.0
    %3254 = vmatpush2.msra.mxu0 0.0
    %3255 = vmatprep.subr.mxu0 0.0
    %3256 = vmatpush2.msra.mxu0 0.0
    %3257 = vmatprep.subr.mxu0 0.0
    %3258 = vmatpush2.msra.mxu0 0.0
    %3259 = vmatprep.subr.mxu0 0.0
    %3260 = vmatpush2.msra.mxu0 0.0
    %3261 = vmatprep.subr.mxu0 0.0
    %3262 = vmatpush2.msra.mxu0 0.0
    %3263 = vmatprep.subr.mxu0 0.0
    %3264 = vmatpush2.msra.mxu0 0.0
    %3265 = vmatprep.subr.mxu0 0.0
    %3266 = vmatpush2.msra.mxu0 0.0
    %3267 = vmatprep.subr.mxu0 0.0
    %3268 = vmatpush2.msra.mxu0 0.0
    %3269 = vmatprep.subr.mxu0 0.0
    %3270 = vmatpush2.msra.mxu0 0.0
    %3271 = vmatprep.subr.mxu0 0.0
    %3272 = vmatpush2.msra.mxu0 0.0
    %3273 = vmatprep.subr.mxu0 0.0
    %3274 = vmatpush2.msra.mxu0 0.0
    %3275 = vmatprep.subr.mxu0 0.0
    %3276 = vmatpush2.msra.mxu0 0.0
    %3277 = vmatprep.subr.mxu0 0.0
    %3278 = vmatpush2.msra.mxu0 0.0
    %3279 = vmatprep.subr.mxu0 0.0
    %3280 = vmatpush2.msra.mxu0 0.0
    %3281 = vmatprep.mubr.f32.mxu0 0.0
    %3282 = vmatmul.mubr.f32.gmra.mxu0 %v3212
    %v3283 = vpop.f32.mrf.mxu0
    %v3284 = vadd.f32 0.0, %v3283
    %v3285 = vpop.f32.mrf.mxu0
    %3286 = vmatprep.mubr.f32.mxu0 0.0
    %3287 = vmatmul.mubr.f32.gmra.mxu0 %v3215
    %v3288 = vpop.f32.mrf.mxu0
    %v3289 = vadd.f32 0.0, %v3288
    %v3290 = vpop.f32.mrf.mxu0
    %3291 = vdwg.mxu0
    %v3293 = vsel %vm361, %v2756, 0
    %v3296 = vsel %vm361, %v2757, 0
    %3298 = vmatprep.subr.mxu0 0.0
    %3299 = vmatpush1.msra.mxu0 0.0
    %3300 = vmatprep.subr.mxu0 0.0
    %3301 = vmatpush1.msra.mxu0 0.0
    %3302 = vmatprep.subr.mxu0 0.0
    %3303 = vmatpush1.msra.mxu0 0.0
    %3304 = vmatprep.subr.mxu0 0.0
    %3305 = vmatpush1.msra.mxu0 0.0
    %3306 = vmatprep.subr.mxu0 0.0
    %3307 = vmatpush1.msra.mxu0 0.0
    %3308 = vmatprep.subr.mxu0 0.0
    %3309 = vmatpush1.msra.mxu0 0.0
    %3310 = vmatprep.subr.mxu0 0.0
    %3311 = vmatpush1.msra.mxu0 0.0
    %3312 = vmatprep.subr.mxu0 0.0
    %3313 = vmatpush1.msra.mxu0 0.0
    %3314 = vmatprep.subr.mxu0 0.0
    %3315 = vmatpush1.msra.mxu0 0.0
    %3316 = vmatprep.subr.mxu0 0.0
    %3317 = vmatpush1.msra.mxu0 0.0
    %3318 = vmatprep.subr.mxu0 0.0
    %3319 = vmatpush1.msra.mxu0 0.0
    %3320 = vmatprep.subr.mxu0 0.0
    %3321 = vmatpush1.msra.mxu0 0.0
    %3322 = vmatprep.subr.mxu0 0.0
    %3323 = vmatpush1.msra.mxu0 0.0
    %3324 = vmatprep.subr.mxu0 0.0
    %3325 = vmatpush1.msra.mxu0 0.0
    %3326 = vmatprep.subr.mxu0 0.0
    %3327 = vmatpush1.msra.mxu0 0.0
    %3328 = vmatprep.subr.mxu0 0.0
    %3329 = vmatpush1.msra.mxu0 %v2759
    %3330 = vmatprep.subr.mxu0 0.0
    %3331 = vmatpush2.msra.mxu0 0.0
    %3332 = vmatprep.subr.mxu0 0.0
    %3333 = vmatpush2.msra.mxu0 0.0
    %3334 = vmatprep.subr.mxu0 0.0
    %3335 = vmatpush2.msra.mxu0 0.0
    %3336 = vmatprep.subr.mxu0 0.0
    %3337 = vmatpush2.msra.mxu0 0.0
    %3338 = vmatprep.subr.mxu0 0.0
    %3339 = vmatpush2.msra.mxu0 0.0
    %3340 = vmatprep.subr.mxu0 0.0
    %3341 = vmatpush2.msra.mxu0 0.0
    %3342 = vmatprep.subr.mxu0 0.0
    %3343 = vmatpush2.msra.mxu0 0.0
    %3344 = vmatprep.subr.mxu0 0.0
    %3345 = vmatpush2.msra.mxu0 0.0
    %3346 = vmatprep.subr.mxu0 0.0
    %3347 = vmatpush2.msra.mxu0 0.0
    %3348 = vmatprep.subr.mxu0 0.0
    %3349 = vmatpush2.msra.mxu0 0.0
    %3350 = vmatprep.subr.mxu0 0.0
    %3351 = vmatpush2.msra.mxu0 0.0
    %3352 = vmatprep.subr.mxu0 0.0
    %3353 = vmatpush2.msra.mxu0 0.0
    %3354 = vmatprep.subr.mxu0 0.0
    %3355 = vmatpush2.msra.mxu0 0.0
    %3356 = vmatprep.subr.mxu0 0.0
    %3357 = vmatpush2.msra.mxu0 0.0
    %3358 = vmatprep.subr.mxu0 0.0
    %3359 = vmatpush2.msra.mxu0 0.0
    %3360 = vmatprep.subr.mxu0 0.0
    %3361 = vmatpush2.msra.mxu0 0.0
    %3362 = vmatprep.mubr.f32.mxu0 0.0
    %3363 = vmatmul.mubr.f32.gmra.mxu0 %v3293
    %v3364 = vpop.f32.mrf.mxu0
    %v3365 = vadd.f32 %v3284, %v3364
    %v3366 = vpop.f32.mrf.mxu0
    %3367 = vmatprep.mubr.f32.mxu0 0.0
    %3368 = vmatmul.mubr.f32.gmra.mxu0 %v3296
    %v3369 = vpop.f32.mrf.mxu0
    %v3370 = vadd.f32 %v3289, %v3369
    %v3371 = vpop.f32.mrf.mxu0
    %3372 = vdwg.mxu0
    %s3373 = scalar_lea.vmem %s4, 448
    %v3374 = vld [vmem:[%s3373] sm:$0xff]
    %v3375 = vld [vmem:[%s3373 + $0x8] sm:$0xff]
    %v3376 = vld [vmem:[%s3373 + $0x10] sm:$0xff]
    %v3377 = vld [vmem:[%s3373 + $0x18] sm:$0xff]
    %v3378 = vld [vmem:[%s5 + $0xe] sm:$0x1]
    %v3379 = vlaneseq
    %v3380 = vshrl.u32 %v3379, 7
    %v3381 = vsub.s32 0, %v3380
    %v3382 = vrot.slane %v3378, %v3381
    %3383 = vmatprep.subr.mxu0 0.0
    %3384 = vmatpush1.msra.mxu0 0.0
    %3385 = vmatprep.subr.mxu0 0.0
    %3386 = vmatpush1.msra.mxu0 0.0
    %3387 = vmatprep.subr.mxu0 0.0
    %3388 = vmatpush1.msra.mxu0 0.0
    %3389 = vmatprep.subr.mxu0 0.0
    %3390 = vmatpush1.msra.mxu0 0.0
    %3391 = vmatprep.subr.mxu0 0.0
    %3392 = vmatpush1.msra.mxu0 0.0
    %3393 = vmatprep.subr.mxu0 0.0
    %3394 = vmatpush1.msra.mxu0 0.0
    %3395 = vmatprep.subr.mxu0 0.0
    %3396 = vmatpush1.msra.mxu0 0.0
    %3397 = vmatprep.subr.mxu0 0.0
    %3398 = vmatpush1.msra.mxu0 0.0
    %3399 = vmatprep.subr.mxu0 0.0
    %3400 = vmatpush1.msra.mxu0 0.0
    %3401 = vmatprep.subr.mxu0 0.0
    %3402 = vmatpush1.msra.mxu0 0.0
    %3403 = vmatprep.subr.mxu0 0.0
    %3404 = vmatpush1.msra.mxu0 0.0
    %3405 = vmatprep.subr.mxu0 0.0
    %3406 = vmatpush1.msra.mxu0 0.0
    %3407 = vmatprep.subr.mxu0 0.0
    %3408 = vmatpush1.msra.mxu0 %v3377
    %3409 = vmatprep.subr.mxu0 0.0
    %3410 = vmatpush1.msra.mxu0 %v3376
    %3411 = vmatprep.subr.mxu0 0.0
    %3412 = vmatpush1.msra.mxu0 %v3375
    %3413 = vmatprep.subr.mxu0 0.0
    %3414 = vmatpush1.msra.mxu0 %v3374
    %3415 = vmatprep.subr.mxu0 0.0
    %3416 = vmatpush2.msra.mxu0 0.0
    %3417 = vmatprep.subr.mxu0 0.0
    %3418 = vmatpush2.msra.mxu0 0.0
    %3419 = vmatprep.subr.mxu0 0.0
    %3420 = vmatpush2.msra.mxu0 0.0
    %3421 = vmatprep.subr.mxu0 0.0
    %3422 = vmatpush2.msra.mxu0 0.0
    %3423 = vmatprep.subr.mxu0 0.0
    %3424 = vmatpush2.msra.mxu0 0.0
    %3425 = vmatprep.subr.mxu0 0.0
    %3426 = vmatpush2.msra.mxu0 0.0
    %3427 = vmatprep.subr.mxu0 0.0
    %3428 = vmatpush2.msra.mxu0 0.0
    %3429 = vmatprep.subr.mxu0 0.0
    %3430 = vmatpush2.msra.mxu0 0.0
    %3431 = vmatprep.subr.mxu0 0.0
    %3432 = vmatpush2.msra.mxu0 0.0
    %3433 = vmatprep.subr.mxu0 0.0
    %3434 = vmatpush2.msra.mxu0 0.0
    %3435 = vmatprep.subr.mxu0 0.0
    %3436 = vmatpush2.msra.mxu0 0.0
    %3437 = vmatprep.subr.mxu0 0.0
    %3438 = vmatpush2.msra.mxu0 0.0
    %3439 = vmatprep.subr.mxu0 0.0
    %3440 = vmatpush2.msra.mxu0 0.0
    %3441 = vmatprep.subr.mxu0 0.0
    %3442 = vmatpush2.msra.mxu0 0.0
    %3443 = vmatprep.subr.mxu0 0.0
    %3444 = vmatpush2.msra.mxu0 0.0
    %3445 = vmatprep.subr.mxu0 0.0
    %3446 = vmatpush2.msra.mxu0 0.0
    %3447 = vmatprep.mubr.f32.mxu0 0.0
    %3448 = vmatmul.mubr.f32.gmra.mxu0 %v2302
    %v3449 = vpop.f32.mrf.mxu0
    %v3450 = vadd.f32 %v3382, %v3449
    %v3451 = vpop.f32.mrf.mxu0
    %3452 = vmatprep.mubr.f32.mxu0 0.0
    %3453 = vmatmul.mubr.f32.gmra.mxu0 %v2305
    %v3454 = vpop.f32.mrf.mxu0
    %v3455 = vadd.f32 %v3382, %v3454
    %v3456 = vpop.f32.mrf.mxu0
    %3457 = vdwg.mxu0
    %s3458 = scalar_lea.vmem %s4, 576
    %v3459 = vld [vmem:[%s3458] sm:$0xff]
    %v3460 = vld [vmem:[%s3458 + $0x8] sm:$0xff]
    %v3461 = vld [vmem:[%s3458 + $0x10] sm:$0xff]
    %v3462 = vld [vmem:[%s3458 + $0x18] sm:$0xff]
    %v3463 = vld [vmem:[%s5 + $0x12] sm:$0x1]
    %v3464 = vlaneseq
    %v3465 = vshrl.u32 %v3464, 7
    %v3466 = vsub.s32 0, %v3465
    %v3467 = vrot.slane %v3463, %v3466
    %3468 = vmatprep.subr.mxu0 0.0
    %3469 = vmatpush1.msra.mxu0 0.0
    %3470 = vmatprep.subr.mxu0 0.0
    %3471 = vmatpush1.msra.mxu0 0.0
    %3472 = vmatprep.subr.mxu0 0.0
    %3473 = vmatpush1.msra.mxu0 0.0
    %3474 = vmatprep.subr.mxu0 0.0
    %3475 = vmatpush1.msra.mxu0 0.0
    %3476 = vmatprep.subr.mxu0 0.0
    %3477 = vmatpush1.msra.mxu0 0.0
    %3478 = vmatprep.subr.mxu0 0.0
    %3479 = vmatpush1.msra.mxu0 0.0
    %3480 = vmatprep.subr.mxu0 0.0
    %3481 = vmatpush1.msra.mxu0 0.0
    %3482 = vmatprep.subr.mxu0 0.0
    %3483 = vmatpush1.msra.mxu0 0.0
    %3484 = vmatprep.subr.mxu0 0.0
    %3485 = vmatpush1.msra.mxu0 0.0
    %3486 = vmatprep.subr.mxu0 0.0
    %3487 = vmatpush1.msra.mxu0 0.0
    %3488 = vmatprep.subr.mxu0 0.0
    %3489 = vmatpush1.msra.mxu0 0.0
    %3490 = vmatprep.subr.mxu0 0.0
    %3491 = vmatpush1.msra.mxu0 0.0
    %3492 = vmatprep.subr.mxu0 0.0
    %3493 = vmatpush1.msra.mxu0 %v3462
    %3494 = vmatprep.subr.mxu0 0.0
    %3495 = vmatpush1.msra.mxu0 %v3461
    %3496 = vmatprep.subr.mxu0 0.0
    %3497 = vmatpush1.msra.mxu0 %v3460
    %3498 = vmatprep.subr.mxu0 0.0
    %3499 = vmatpush1.msra.mxu0 %v3459
    %3500 = vmatprep.subr.mxu0 0.0
    %3501 = vmatpush2.msra.mxu0 0.0
    %3502 = vmatprep.subr.mxu0 0.0
    %3503 = vmatpush2.msra.mxu0 0.0
    %3504 = vmatprep.subr.mxu0 0.0
    %3505 = vmatpush2.msra.mxu0 0.0
    %3506 = vmatprep.subr.mxu0 0.0
    %3507 = vmatpush2.msra.mxu0 0.0
    %3508 = vmatprep.subr.mxu0 0.0
    %3509 = vmatpush2.msra.mxu0 0.0
    %3510 = vmatprep.subr.mxu0 0.0
    %3511 = vmatpush2.msra.mxu0 0.0
    %3512 = vmatprep.subr.mxu0 0.0
    %3513 = vmatpush2.msra.mxu0 0.0
    %3514 = vmatprep.subr.mxu0 0.0
    %3515 = vmatpush2.msra.mxu0 0.0
    %3516 = vmatprep.subr.mxu0 0.0
    %3517 = vmatpush2.msra.mxu0 0.0
    %3518 = vmatprep.subr.mxu0 0.0
    %3519 = vmatpush2.msra.mxu0 0.0
    %3520 = vmatprep.subr.mxu0 0.0
    %3521 = vmatpush2.msra.mxu0 0.0
    %3522 = vmatprep.subr.mxu0 0.0
    %3523 = vmatpush2.msra.mxu0 0.0
    %3524 = vmatprep.subr.mxu0 0.0
    %3525 = vmatpush2.msra.mxu0 0.0
    %3526 = vmatprep.subr.mxu0 0.0
    %3527 = vmatpush2.msra.mxu0 0.0
    %3528 = vmatprep.subr.mxu0 0.0
    %3529 = vmatpush2.msra.mxu0 0.0
    %3530 = vmatprep.subr.mxu0 0.0
    %3531 = vmatpush2.msra.mxu0 0.0
    %3532 = vmatprep.mubr.f32.mxu0 0.0
    %3533 = vmatmul.mubr.f32.gmra.mxu0 %v2393
    %v3534 = vpop.f32.mrf.mxu0
    %v3535 = vadd.f32 %v3467, %v3534
    %v3536 = vpop.f32.mrf.mxu0
    %3537 = vmatprep.mubr.f32.mxu0 0.0
    %3538 = vmatmul.mubr.f32.gmra.mxu0 %v2396
    %v3539 = vpop.f32.mrf.mxu0
    %v3540 = vadd.f32 %v3467, %v3539
    %v3541 = vpop.f32.mrf.mxu0
    %3542 = vdwg.mxu0
    %s3543 = scalar_lea.vmem %s4, 704
    %v3544 = vld [vmem:[%s3543] sm:$0xff]
    %v3545 = vld [vmem:[%s3543 + $0x8] sm:$0xff]
    %v3546 = vld [vmem:[%s3543 + $0x10] sm:$0xff]
    %v3547 = vld [vmem:[%s3543 + $0x18] sm:$0xff]
    %v3548 = vld [vmem:[%s5 + $0x16] sm:$0x1]
    %v3549 = vlaneseq
    %v3550 = vshrl.u32 %v3549, 7
    %v3551 = vsub.s32 0, %v3550
    %v3552 = vrot.slane %v3548, %v3551
    %3553 = vmatprep.subr.mxu0 0.0
    %3554 = vmatpush1.msra.mxu0 0.0
    %3555 = vmatprep.subr.mxu0 0.0
    %3556 = vmatpush1.msra.mxu0 0.0
    %3557 = vmatprep.subr.mxu0 0.0
    %3558 = vmatpush1.msra.mxu0 0.0
    %3559 = vmatprep.subr.mxu0 0.0
    %3560 = vmatpush1.msra.mxu0 0.0
    %3561 = vmatprep.subr.mxu0 0.0
    %3562 = vmatpush1.msra.mxu0 0.0
    %3563 = vmatprep.subr.mxu0 0.0
    %3564 = vmatpush1.msra.mxu0 0.0
    %3565 = vmatprep.subr.mxu0 0.0
    %3566 = vmatpush1.msra.mxu0 0.0
    %3567 = vmatprep.subr.mxu0 0.0
    %3568 = vmatpush1.msra.mxu0 0.0
    %3569 = vmatprep.subr.mxu0 0.0
    %3570 = vmatpush1.msra.mxu0 0.0
    %3571 = vmatprep.subr.mxu0 0.0
    %3572 = vmatpush1.msra.mxu0 0.0
    %3573 = vmatprep.subr.mxu0 0.0
    %3574 = vmatpush1.msra.mxu0 0.0
    %3575 = vmatprep.subr.mxu0 0.0
    %3576 = vmatpush1.msra.mxu0 0.0
    %3577 = vmatprep.subr.mxu0 0.0
    %3578 = vmatpush1.msra.mxu0 %v3547
    %3579 = vmatprep.subr.mxu0 0.0
    %3580 = vmatpush1.msra.mxu0 %v3546
    %3581 = vmatprep.subr.mxu0 0.0
    %3582 = vmatpush1.msra.mxu0 %v3545
    %3583 = vmatprep.subr.mxu0 0.0
    %3584 = vmatpush1.msra.mxu0 %v3544
    %3585 = vmatprep.subr.mxu0 0.0
    %3586 = vmatpush2.msra.mxu0 0.0
    %3587 = vmatprep.subr.mxu0 0.0
    %3588 = vmatpush2.msra.mxu0 0.0
    %3589 = vmatprep.subr.mxu0 0.0
    %3590 = vmatpush2.msra.mxu0 0.0
    %3591 = vmatprep.subr.mxu0 0.0
    %3592 = vmatpush2.msra.mxu0 0.0
    %3593 = vmatprep.subr.mxu0 0.0
    %3594 = vmatpush2.msra.mxu0 0.0
    %3595 = vmatprep.subr.mxu0 0.0
    %3596 = vmatpush2.msra.mxu0 0.0
    %3597 = vmatprep.subr.mxu0 0.0
    %3598 = vmatpush2.msra.mxu0 0.0
    %3599 = vmatprep.subr.mxu0 0.0
    %3600 = vmatpush2.msra.mxu0 0.0
    %3601 = vmatprep.subr.mxu0 0.0
    %3602 = vmatpush2.msra.mxu0 0.0
    %3603 = vmatprep.subr.mxu0 0.0
    %3604 = vmatpush2.msra.mxu0 0.0
    %3605 = vmatprep.subr.mxu0 0.0
    %3606 = vmatpush2.msra.mxu0 0.0
    %3607 = vmatprep.subr.mxu0 0.0
    %3608 = vmatpush2.msra.mxu0 0.0
    %3609 = vmatprep.subr.mxu0 0.0
    %3610 = vmatpush2.msra.mxu0 0.0
    %3611 = vmatprep.subr.mxu0 0.0
    %3612 = vmatpush2.msra.mxu0 0.0
    %3613 = vmatprep.subr.mxu0 0.0
    %3614 = vmatpush2.msra.mxu0 0.0
    %3615 = vmatprep.subr.mxu0 0.0
    %3616 = vmatpush2.msra.mxu0 0.0
    %3617 = vmatprep.mubr.f32.mxu0 0.0
    %3618 = vmatmul.mubr.f32.gmra.mxu0 %v2484
    %v3619 = vpop.f32.mrf.mxu0
    %v3620 = vadd.f32 %v3552, %v3619
    %v3621 = vpop.f32.mrf.mxu0
    %3622 = vmatprep.mubr.f32.mxu0 0.0
    %3623 = vmatmul.mubr.f32.gmra.mxu0 %v2487
    %v3624 = vpop.f32.mrf.mxu0
    %v3625 = vadd.f32 %v3552, %v3624
    %v3626 = vpop.f32.mrf.mxu0
    %3627 = vdwg.mxu0
    %v3628 = vmul.f32 %v3450, 0.35355338
    %v3629 = vmul.f32 %v3455, 0.35355338
    %v3631 = vsel %vm361, %v3628, 0
    %v3634 = vsel %vm361, %v3629, 0
    %v3637 = vsel %vm361, %v3535, 0
    %v3640 = vsel %vm361, %v3540, 0
    %3642 = vmatprep.subr.mxu0 0.0
    %3643 = vmatpush1.xpose.msra.mxu0 0.0
    %3644 = vmatprep.subr.mxu0 0.0
    %3645 = vmatpush1.xpose.msra.mxu0 0.0
    %3646 = vmatprep.subr.mxu0 0.0
    %3647 = vmatpush1.xpose.msra.mxu0 0.0
    %3648 = vmatprep.subr.mxu0 0.0
    %3649 = vmatpush1.xpose.msra.mxu0 0.0
    %3650 = vmatprep.subr.mxu0 0.0
    %3651 = vmatpush1.xpose.msra.mxu0 0.0
    %3652 = vmatprep.subr.mxu0 0.0
    %3653 = vmatpush1.xpose.msra.mxu0 0.0
    %3654 = vmatprep.subr.mxu0 0.0
    %3655 = vmatpush1.xpose.msra.mxu0 0.0
    %3656 = vmatprep.subr.mxu0 0.0
    %3657 = vmatpush1.xpose.msra.mxu0 0.0
    %3658 = vmatprep.subr.mxu0 0.0
    %3659 = vmatpush1.xpose.msra.mxu0 0.0
    %3660 = vmatprep.subr.mxu0 0.0
    %3661 = vmatpush1.xpose.msra.mxu0 0.0
    %3662 = vmatprep.subr.mxu0 0.0
    %3663 = vmatpush1.xpose.msra.mxu0 0.0
    %3664 = vmatprep.subr.mxu0 0.0
    %3665 = vmatpush1.xpose.msra.mxu0 0.0
    %3666 = vmatprep.subr.mxu0 0.0
    %3667 = vmatpush1.xpose.msra.mxu0 0.0
    %3668 = vmatprep.subr.mxu0 0.0
    %3669 = vmatpush1.xpose.msra.mxu0 0.0
    %3670 = vmatprep.subr.mxu0 0.0
    %3671 = vmatpush1.xpose.msra.mxu0 %v3640
    %3672 = vmatprep.subr.mxu0 0.0
    %3673 = vmatpush1.xpose.msra.mxu0 %v3637
    %3674 = vmatprep.subr.mxu0 0.0
    %3675 = vmatpush2.xpose.msra.mxu0 0.0
    %3676 = vmatprep.subr.mxu0 0.0
    %3677 = vmatpush2.xpose.msra.mxu0 0.0
    %3678 = vmatprep.subr.mxu0 0.0
    %3679 = vmatpush2.xpose.msra.mxu0 0.0
    %3680 = vmatprep.subr.mxu0 0.0
    %3681 = vmatpush2.xpose.msra.mxu0 0.0
    %3682 = vmatprep.subr.mxu0 0.0
    %3683 = vmatpush2.xpose.msra.mxu0 0.0
    %3684 = vmatprep.subr.mxu0 0.0
    %3685 = vmatpush2.xpose.msra.mxu0 0.0
    %3686 = vmatprep.subr.mxu0 0.0
    %3687 = vmatpush2.xpose.msra.mxu0 0.0
    %3688 = vmatprep.subr.mxu0 0.0
    %3689 = vmatpush2.xpose.msra.mxu0 0.0
    %3690 = vmatprep.subr.mxu0 0.0
    %3691 = vmatpush2.xpose.msra.mxu0 0.0
    %3692 = vmatprep.subr.mxu0 0.0
    %3693 = vmatpush2.xpose.msra.mxu0 0.0
    %3694 = vmatprep.subr.mxu0 0.0
    %3695 = vmatpush2.xpose.msra.mxu0 0.0
    %3696 = vmatprep.subr.mxu0 0.0
    %3697 = vmatpush2.xpose.msra.mxu0 0.0
    %3698 = vmatprep.subr.mxu0 0.0
    %3699 = vmatpush2.xpose.msra.mxu0 0.0
    %3700 = vmatprep.subr.mxu0 0.0
    %3701 = vmatpush2.xpose.msra.mxu0 0.0
    %3702 = vmatprep.subr.mxu0 0.0
    %3703 = vmatpush2.xpose.msra.mxu0 0.0
    %3704 = vmatprep.subr.mxu0 0.0
    %3705 = vmatpush2.xpose.msra.mxu0 0.0
    %3706 = vmatprep.mubr.f32.mxu0 0.0
    %3707 = vmatmul.mubr.f32.gmra.mxu0 %v3631
    %v3708 = vpop.f32.mrf.mxu0
    %v3709 = vadd.f32 0.0, %v3708
    %v3710 = vpop.f32.mrf.mxu0
    %3711 = vmatprep.mubr.f32.mxu0 0.0
    %3712 = vmatmul.mubr.f32.gmra.mxu0 %v3634
    %v3713 = vpop.f32.mrf.mxu0
    %v3714 = vadd.f32 0.0, %v3713
    %v3715 = vpop.f32.mrf.mxu0
    %3716 = vdwg.mxu0
    %v3717 = vsel %vm88, %v3709, -1e+30
    %v3718 = vsel %vm89, %v3714, -1e+30
    %v3719 = vsel %vm451, %v3717, -inf
    %3720 = vmax.xlane.f32.xlu0 %v3719
    %v3721 = vpop.xlane.xlu0 %3720
    %v3722 = vsel %vm451, %v3718, -inf
    %3723 = vmax.xlane.f32.xlu0 %v3722
    %v3724 = vpop.xlane.xlu0 %3723
    %v3725 = vsub.f32 %v3717, %v3721
    %v3726 = vsub.f32 %v3718, %v3724
    %v3727 = vmul.f32 %v3725, 1.442695
    %v3728 = vpow.pop %v3727
    %v3729 = vmul.f32 %v3726, 1.442695
    %v3730 = vpow.pop %v3729
    %v3731 = vsel %vm451, %v3728, 0.0
    %3732 = vadd.xlane.f32.xlu0 %v3731
    %v3733 = vpop.xlane.xlu0 %3732
    %v3734 = vsel %vm451, %v3730, 0.0
    %3735 = vadd.xlane.f32.xlu0 %v3734
    %v3736 = vpop.xlane.xlu0 %3735
    %v3737 = vrcp.pop %v3733
    %v3738 = vrcp.pop %v3736
    %v3740 = vsel %vm451, %v3728, 0
    %v3743 = vsel %vm451, %v3730, 0
    %3745 = vmatprep.subr.mxu0 0.0
    %3746 = vmatpush1.msra.mxu0 0.0
    %3747 = vmatprep.subr.mxu0 0.0
    %3748 = vmatpush1.msra.mxu0 0.0
    %3749 = vmatprep.subr.mxu0 0.0
    %3750 = vmatpush1.msra.mxu0 0.0
    %3751 = vmatprep.subr.mxu0 0.0
    %3752 = vmatpush1.msra.mxu0 0.0
    %3753 = vmatprep.subr.mxu0 0.0
    %3754 = vmatpush1.msra.mxu0 0.0
    %3755 = vmatprep.subr.mxu0 0.0
    %3756 = vmatpush1.msra.mxu0 0.0
    %3757 = vmatprep.subr.mxu0 0.0
    %3758 = vmatpush1.msra.mxu0 0.0
    %3759 = vmatprep.subr.mxu0 0.0
    %3760 = vmatpush1.msra.mxu0 0.0
    %3761 = vmatprep.subr.mxu0 0.0
    %3762 = vmatpush1.msra.mxu0 0.0
    %3763 = vmatprep.subr.mxu0 0.0
    %3764 = vmatpush1.msra.mxu0 0.0
    %3765 = vmatprep.subr.mxu0 0.0
    %3766 = vmatpush1.msra.mxu0 0.0
    %3767 = vmatprep.subr.mxu0 0.0
    %3768 = vmatpush1.msra.mxu0 0.0
    %3769 = vmatprep.subr.mxu0 0.0
    %3770 = vmatpush1.msra.mxu0 0.0
    %3771 = vmatprep.subr.mxu0 0.0
    %3772 = vmatpush1.msra.mxu0 0.0
    %3773 = vmatprep.subr.mxu0 0.0
    %3774 = vmatpush1.msra.mxu0 %v3625
    %3775 = vmatprep.subr.mxu0 0.0
    %3776 = vmatpush1.msra.mxu0 %v3620
    %3777 = vmatprep.subr.mxu0 0.0
    %3778 = vmatpush2.msra.mxu0 0.0
    %3779 = vmatprep.subr.mxu0 0.0
    %3780 = vmatpush2.msra.mxu0 0.0
    %3781 = vmatprep.subr.mxu0 0.0
    %3782 = vmatpush2.msra.mxu0 0.0
    %3783 = vmatprep.subr.mxu0 0.0
    %3784 = vmatpush2.msra.mxu0 0.0
    %3785 = vmatprep.subr.mxu0 0.0
    %3786 = vmatpush2.msra.mxu0 0.0
    %3787 = vmatprep.subr.mxu0 0.0
    %3788 = vmatpush2.msra.mxu0 0.0
    %3789 = vmatprep.subr.mxu0 0.0
    %3790 = vmatpush2.msra.mxu0 0.0
    %3791 = vmatprep.subr.mxu0 0.0
    %3792 = vmatpush2.msra.mxu0 0.0
    %3793 = vmatprep.subr.mxu0 0.0
    %3794 = vmatpush2.msra.mxu0 0.0
    %3795 = vmatprep.subr.mxu0 0.0
    %3796 = vmatpush2.msra.mxu0 0.0
    %3797 = vmatprep.subr.mxu0 0.0
    %3798 = vmatpush2.msra.mxu0 0.0
    %3799 = vmatprep.subr.mxu0 0.0
    %3800 = vmatpush2.msra.mxu0 0.0
    %3801 = vmatprep.subr.mxu0 0.0
    %3802 = vmatpush2.msra.mxu0 0.0
    %3803 = vmatprep.subr.mxu0 0.0
    %3804 = vmatpush2.msra.mxu0 0.0
    %3805 = vmatprep.subr.mxu0 0.0
    %3806 = vmatpush2.msra.mxu0 0.0
    %3807 = vmatprep.subr.mxu0 0.0
    %3808 = vmatpush2.msra.mxu0 0.0
    %3809 = vmatprep.mubr.f32.mxu0 0.0
    %3810 = vmatmul.mubr.f32.gmra.mxu0 %v3740
    %v3811 = vpop.f32.mrf.mxu0
    %v3812 = vadd.f32 0.0, %v3811
    %v3813 = vpop.f32.mrf.mxu0
    %3814 = vmatprep.mubr.f32.mxu0 0.0
    %3815 = vmatmul.mubr.f32.gmra.mxu0 %v3743
    %v3816 = vpop.f32.mrf.mxu0
    %v3817 = vadd.f32 0.0, %v3816
    %v3818 = vpop.f32.mrf.mxu0
    %3819 = vdwg.mxu0
    %v3820 = vmul.f32 %v3812, %v3737
    %v3821 = vmul.f32 %v3817, %v3738
    %s3822 = scalar_lea.vmem %s6, 48
    %v3823 = vld [vmem:[%s3822] sm:$0xff]
    %v3825 = vsel %vm361, %v3820, 0
    %v3828 = vsel %vm361, %v3821, 0
    %3830 = vmatprep.subr.mxu0 0.0
    %3831 = vmatpush1.msra.mxu0 0.0
    %3832 = vmatprep.subr.mxu0 0.0
    %3833 = vmatpush1.msra.mxu0 0.0
    %3834 = vmatprep.subr.mxu0 0.0
    %3835 = vmatpush1.msra.mxu0 0.0
    %3836 = vmatprep.subr.mxu0 0.0
    %3837 = vmatpush1.msra.mxu0 0.0
    %3838 = vmatprep.subr.mxu0 0.0
    %3839 = vmatpush1.msra.mxu0 0.0
    %3840 = vmatprep.subr.mxu0 0.0
    %3841 = vmatpush1.msra.mxu0 0.0
    %3842 = vmatprep.subr.mxu0 0.0
    %3843 = vmatpush1.msra.mxu0 0.0
    %3844 = vmatprep.subr.mxu0 0.0
    %3845 = vmatpush1.msra.mxu0 0.0
    %3846 = vmatprep.subr.mxu0 0.0
    %3847 = vmatpush1.msra.mxu0 0.0
    %3848 = vmatprep.subr.mxu0 0.0
    %3849 = vmatpush1.msra.mxu0 0.0
    %3850 = vmatprep.subr.mxu0 0.0
    %3851 = vmatpush1.msra.mxu0 0.0
    %3852 = vmatprep.subr.mxu0 0.0
    %3853 = vmatpush1.msra.mxu0 0.0
    %3854 = vmatprep.subr.mxu0 0.0
    %3855 = vmatpush1.msra.mxu0 0.0
    %3856 = vmatprep.subr.mxu0 0.0
    %3857 = vmatpush1.msra.mxu0 0.0
    %3858 = vmatprep.subr.mxu0 0.0
    %3859 = vmatpush1.msra.mxu0 0.0
    %3860 = vmatprep.subr.mxu0 0.0
    %3861 = vmatpush1.msra.mxu0 %v3823
    %3862 = vmatprep.subr.mxu0 0.0
    %3863 = vmatpush2.msra.mxu0 0.0
    %3864 = vmatprep.subr.mxu0 0.0
    %3865 = vmatpush2.msra.mxu0 0.0
    %3866 = vmatprep.subr.mxu0 0.0
    %3867 = vmatpush2.msra.mxu0 0.0
    %3868 = vmatprep.subr.mxu0 0.0
    %3869 = vmatpush2.msra.mxu0 0.0
    %3870 = vmatprep.subr.mxu0 0.0
    %3871 = vmatpush2.msra.mxu0 0.0
    %3872 = vmatprep.subr.mxu0 0.0
    %3873 = vmatpush2.msra.mxu0 0.0
    %3874 = vmatprep.subr.mxu0 0.0
    %3875 = vmatpush2.msra.mxu0 0.0
    %3876 = vmatprep.subr.mxu0 0.0
    %3877 = vmatpush2.msra.mxu0 0.0
    %3878 = vmatprep.subr.mxu0 0.0
    %3879 = vmatpush2.msra.mxu0 0.0
    %3880 = vmatprep.subr.mxu0 0.0
    %3881 = vmatpush2.msra.mxu0 0.0
    %3882 = vmatprep.subr.mxu0 0.0
    %3883 = vmatpush2.msra.mxu0 0.0
    %3884 = vmatprep.subr.mxu0 0.0
    %3885 = vmatpush2.msra.mxu0 0.0
    %3886 = vmatprep.subr.mxu0 0.0
    %3887 = vmatpush2.msra.mxu0 0.0
    %3888 = vmatprep.subr.mxu0 0.0
    %3889 = vmatpush2.msra.mxu0 0.0
    %3890 = vmatprep.subr.mxu0 0.0
    %3891 = vmatpush2.msra.mxu0 0.0
    %3892 = vmatprep.subr.mxu0 0.0
    %3893 = vmatpush2.msra.mxu0 0.0
    %3894 = vmatprep.mubr.f32.mxu0 0.0
    %3895 = vmatmul.mubr.f32.gmra.mxu0 %v3825
    %v3896 = vpop.f32.mrf.mxu0
    %v3897 = vadd.f32 0.0, %v3896
    %v3898 = vpop.f32.mrf.mxu0
    %3899 = vmatprep.mubr.f32.mxu0 0.0
    %3900 = vmatmul.mubr.f32.gmra.mxu0 %v3828
    %v3901 = vpop.f32.mrf.mxu0
    %v3902 = vadd.f32 0.0, %v3901
    %v3903 = vpop.f32.mrf.mxu0
    %3904 = vdwg.mxu0
    %v3905 = vadd.f32 %v3365, %v3897
    %v3906 = vadd.f32 %v3370, %v3902
    %s3907 = scalar_lea.vmem %s4, 480
    %v3908 = vld [vmem:[%s3907] sm:$0xff]
    %v3909 = vld [vmem:[%s3907 + $0x8] sm:$0xff]
    %v3910 = vld [vmem:[%s3907 + $0x10] sm:$0xff]
    %v3911 = vld [vmem:[%s3907 + $0x18] sm:$0xff]
    %v3912 = vld [vmem:[%s5 + $0xf] sm:$0x1]
    %v3913 = vlaneseq
    %v3914 = vshrl.u32 %v3913, 7
    %v3915 = vsub.s32 0, %v3914
    %v3916 = vrot.slane %v3912, %v3915
    %3917 = vmatprep.subr.mxu0 0.0
    %3918 = vmatpush1.msra.mxu0 0.0
    %3919 = vmatprep.subr.mxu0 0.0
    %3920 = vmatpush1.msra.mxu0 0.0
    %3921 = vmatprep.subr.mxu0 0.0
    %3922 = vmatpush1.msra.mxu0 0.0
    %3923 = vmatprep.subr.mxu0 0.0
    %3924 = vmatpush1.msra.mxu0 0.0
    %3925 = vmatprep.subr.mxu0 0.0
    %3926 = vmatpush1.msra.mxu0 0.0
    %3927 = vmatprep.subr.mxu0 0.0
    %3928 = vmatpush1.msra.mxu0 0.0
    %3929 = vmatprep.subr.mxu0 0.0
    %3930 = vmatpush1.msra.mxu0 0.0
    %3931 = vmatprep.subr.mxu0 0.0
    %3932 = vmatpush1.msra.mxu0 0.0
    %3933 = vmatprep.subr.mxu0 0.0
    %3934 = vmatpush1.msra.mxu0 0.0
    %3935 = vmatprep.subr.mxu0 0.0
    %3936 = vmatpush1.msra.mxu0 0.0
    %3937 = vmatprep.subr.mxu0 0.0
    %3938 = vmatpush1.msra.mxu0 0.0
    %3939 = vmatprep.subr.mxu0 0.0
    %3940 = vmatpush1.msra.mxu0 0.0
    %3941 = vmatprep.subr.mxu0 0.0
    %3942 = vmatpush1.msra.mxu0 %v3911
    %3943 = vmatprep.subr.mxu0 0.0
    %3944 = vmatpush1.msra.mxu0 %v3910
    %3945 = vmatprep.subr.mxu0 0.0
    %3946 = vmatpush1.msra.mxu0 %v3909
    %3947 = vmatprep.subr.mxu0 0.0
    %3948 = vmatpush1.msra.mxu0 %v3908
    %3949 = vmatprep.subr.mxu0 0.0
    %3950 = vmatpush2.msra.mxu0 0.0
    %3951 = vmatprep.subr.mxu0 0.0
    %3952 = vmatpush2.msra.mxu0 0.0
    %3953 = vmatprep.subr.mxu0 0.0
    %3954 = vmatpush2.msra.mxu0 0.0
    %3955 = vmatprep.subr.mxu0 0.0
    %3956 = vmatpush2.msra.mxu0 0.0
    %3957 = vmatprep.subr.mxu0 0.0
    %3958 = vmatpush2.msra.mxu0 0.0
    %3959 = vmatprep.subr.mxu0 0.0
    %3960 = vmatpush2.msra.mxu0 0.0
    %3961 = vmatprep.subr.mxu0 0.0
    %3962 = vmatpush2.msra.mxu0 0.0
    %3963 = vmatprep.subr.mxu0 0.0
    %3964 = vmatpush2.msra.mxu0 0.0
    %3965 = vmatprep.subr.mxu0 0.0
    %3966 = vmatpush2.msra.mxu0 0.0
    %3967 = vmatprep.subr.mxu0 0.0
    %3968 = vmatpush2.msra.mxu0 0.0
    %3969 = vmatprep.subr.mxu0 0.0
    %3970 = vmatpush2.msra.mxu0 0.0
    %3971 = vmatprep.subr.mxu0 0.0
    %3972 = vmatpush2.msra.mxu0 0.0
    %3973 = vmatprep.subr.mxu0 0.0
    %3974 = vmatpush2.msra.mxu0 0.0
    %3975 = vmatprep.subr.mxu0 0.0
    %3976 = vmatpush2.msra.mxu0 0.0
    %3977 = vmatprep.subr.mxu0 0.0
    %3978 = vmatpush2.msra.mxu0 0.0
    %3979 = vmatprep.subr.mxu0 0.0
    %3980 = vmatpush2.msra.mxu0 0.0
    %3981 = vmatprep.mubr.f32.mxu0 0.0
    %3982 = vmatmul.mubr.f32.gmra.mxu0 %v2302
    %v3983 = vpop.f32.mrf.mxu0
    %v3984 = vadd.f32 %v3916, %v3983
    %v3985 = vpop.f32.mrf.mxu0
    %3986 = vmatprep.mubr.f32.mxu0 0.0
    %3987 = vmatmul.mubr.f32.gmra.mxu0 %v2305
    %v3988 = vpop.f32.mrf.mxu0
    %v3989 = vadd.f32 %v3916, %v3988
    %v3990 = vpop.f32.mrf.mxu0
    %3991 = vdwg.mxu0
    %s3992 = scalar_lea.vmem %s4, 608
    %v3993 = vld [vmem:[%s3992] sm:$0xff]
    %v3994 = vld [vmem:[%s3992 + $0x8] sm:$0xff]
    %v3995 = vld [vmem:[%s3992 + $0x10] sm:$0xff]
    %v3996 = vld [vmem:[%s3992 + $0x18] sm:$0xff]
    %v3997 = vld [vmem:[%s5 + $0x13] sm:$0x1]
    %v3998 = vlaneseq
    %v3999 = vshrl.u32 %v3998, 7
    %v4000 = vsub.s32 0, %v3999
    %v4001 = vrot.slane %v3997, %v4000
    %4002 = vmatprep.subr.mxu0 0.0
    %4003 = vmatpush1.msra.mxu0 0.0
    %4004 = vmatprep.subr.mxu0 0.0
    %4005 = vmatpush1.msra.mxu0 0.0
    %4006 = vmatprep.subr.mxu0 0.0
    %4007 = vmatpush1.msra.mxu0 0.0
    %4008 = vmatprep.subr.mxu0 0.0
    %4009 = vmatpush1.msra.mxu0 0.0
    %4010 = vmatprep.subr.mxu0 0.0
    %4011 = vmatpush1.msra.mxu0 0.0
    %4012 = vmatprep.subr.mxu0 0.0
    %4013 = vmatpush1.msra.mxu0 0.0
    %4014 = vmatprep.subr.mxu0 0.0
    %4015 = vmatpush1.msra.mxu0 0.0
    %4016 = vmatprep.subr.mxu0 0.0
    %4017 = vmatpush1.msra.mxu0 0.0
    %4018 = vmatprep.subr.mxu0 0.0
    %4019 = vmatpush1.msra.mxu0 0.0
    %4020 = vmatprep.subr.mxu0 0.0
    %4021 = vmatpush1.msra.mxu0 0.0
    %4022 = vmatprep.subr.mxu0 0.0
    %4023 = vmatpush1.msra.mxu0 0.0
    %4024 = vmatprep.subr.mxu0 0.0
    %4025 = vmatpush1.msra.mxu0 0.0
    %4026 = vmatprep.subr.mxu0 0.0
    %4027 = vmatpush1.msra.mxu0 %v3996
    %4028 = vmatprep.subr.mxu0 0.0
    %4029 = vmatpush1.msra.mxu0 %v3995
    %4030 = vmatprep.subr.mxu0 0.0
    %4031 = vmatpush1.msra.mxu0 %v3994
    %4032 = vmatprep.subr.mxu0 0.0
    %4033 = vmatpush1.msra.mxu0 %v3993
    %4034 = vmatprep.subr.mxu0 0.0
    %4035 = vmatpush2.msra.mxu0 0.0
    %4036 = vmatprep.subr.mxu0 0.0
    %4037 = vmatpush2.msra.mxu0 0.0
    %4038 = vmatprep.subr.mxu0 0.0
    %4039 = vmatpush2.msra.mxu0 0.0
    %4040 = vmatprep.subr.mxu0 0.0
    %4041 = vmatpush2.msra.mxu0 0.0
    %4042 = vmatprep.subr.mxu0 0.0
    %4043 = vmatpush2.msra.mxu0 0.0
    %4044 = vmatprep.subr.mxu0 0.0
    %4045 = vmatpush2.msra.mxu0 0.0
    %4046 = vmatprep.subr.mxu0 0.0
    %4047 = vmatpush2.msra.mxu0 0.0
    %4048 = vmatprep.subr.mxu0 0.0
    %4049 = vmatpush2.msra.mxu0 0.0
    %4050 = vmatprep.subr.mxu0 0.0
    %4051 = vmatpush2.msra.mxu0 0.0
    %4052 = vmatprep.subr.mxu0 0.0
    %4053 = vmatpush2.msra.mxu0 0.0
    %4054 = vmatprep.subr.mxu0 0.0
    %4055 = vmatpush2.msra.mxu0 0.0
    %4056 = vmatprep.subr.mxu0 0.0
    %4057 = vmatpush2.msra.mxu0 0.0
    %4058 = vmatprep.subr.mxu0 0.0
    %4059 = vmatpush2.msra.mxu0 0.0
    %4060 = vmatprep.subr.mxu0 0.0
    %4061 = vmatpush2.msra.mxu0 0.0
    %4062 = vmatprep.subr.mxu0 0.0
    %4063 = vmatpush2.msra.mxu0 0.0
    %4064 = vmatprep.subr.mxu0 0.0
    %4065 = vmatpush2.msra.mxu0 0.0
    %4066 = vmatprep.mubr.f32.mxu0 0.0
    %4067 = vmatmul.mubr.f32.gmra.mxu0 %v2393
    %v4068 = vpop.f32.mrf.mxu0
    %v4069 = vadd.f32 %v4001, %v4068
    %v4070 = vpop.f32.mrf.mxu0
    %4071 = vmatprep.mubr.f32.mxu0 0.0
    %4072 = vmatmul.mubr.f32.gmra.mxu0 %v2396
    %v4073 = vpop.f32.mrf.mxu0
    %v4074 = vadd.f32 %v4001, %v4073
    %v4075 = vpop.f32.mrf.mxu0
    %4076 = vdwg.mxu0
    %s4077 = scalar_lea.vmem %s4, 736
    %v4078 = vld [vmem:[%s4077] sm:$0xff]
    %v4079 = vld [vmem:[%s4077 + $0x8] sm:$0xff]
    %v4080 = vld [vmem:[%s4077 + $0x10] sm:$0xff]
    %v4081 = vld [vmem:[%s4077 + $0x18] sm:$0xff]
    %v4082 = vld [vmem:[%s5 + $0x17] sm:$0x1]
    %v4083 = vlaneseq
    %v4084 = vshrl.u32 %v4083, 7
    %v4085 = vsub.s32 0, %v4084
    %v4086 = vrot.slane %v4082, %v4085
    %4087 = vmatprep.subr.mxu0 0.0
    %4088 = vmatpush1.msra.mxu0 0.0
    %4089 = vmatprep.subr.mxu0 0.0
    %4090 = vmatpush1.msra.mxu0 0.0
    %4091 = vmatprep.subr.mxu0 0.0
    %4092 = vmatpush1.msra.mxu0 0.0
    %4093 = vmatprep.subr.mxu0 0.0
    %4094 = vmatpush1.msra.mxu0 0.0
    %4095 = vmatprep.subr.mxu0 0.0
    %4096 = vmatpush1.msra.mxu0 0.0
    %4097 = vmatprep.subr.mxu0 0.0
    %4098 = vmatpush1.msra.mxu0 0.0
    %4099 = vmatprep.subr.mxu0 0.0
    %4100 = vmatpush1.msra.mxu0 0.0
    %4101 = vmatprep.subr.mxu0 0.0
    %4102 = vmatpush1.msra.mxu0 0.0
    %4103 = vmatprep.subr.mxu0 0.0
    %4104 = vmatpush1.msra.mxu0 0.0
    %4105 = vmatprep.subr.mxu0 0.0
    %4106 = vmatpush1.msra.mxu0 0.0
    %4107 = vmatprep.subr.mxu0 0.0
    %4108 = vmatpush1.msra.mxu0 0.0
    %4109 = vmatprep.subr.mxu0 0.0
    %4110 = vmatpush1.msra.mxu0 0.0
    %4111 = vmatprep.subr.mxu0 0.0
    %4112 = vmatpush1.msra.mxu0 %v4081
    %4113 = vmatprep.subr.mxu0 0.0
    %4114 = vmatpush1.msra.mxu0 %v4080
    %4115 = vmatprep.subr.mxu0 0.0
    %4116 = vmatpush1.msra.mxu0 %v4079
    %4117 = vmatprep.subr.mxu0 0.0
    %4118 = vmatpush1.msra.mxu0 %v4078
    %4119 = vmatprep.subr.mxu0 0.0
    %4120 = vmatpush2.msra.mxu0 0.0
    %4121 = vmatprep.subr.mxu0 0.0
    %4122 = vmatpush2.msra.mxu0 0.0
    %4123 = vmatprep.subr.mxu0 0.0
    %4124 = vmatpush2.msra.mxu0 0.0
    %4125 = vmatprep.subr.mxu0 0.0
    %4126 = vmatpush2.msra.mxu0 0.0
    %4127 = vmatprep.subr.mxu0 0.0
    %4128 = vmatpush2.msra.mxu0 0.0
    %4129 = vmatprep.subr.mxu0 0.0
    %4130 = vmatpush2.msra.mxu0 0.0
    %4131 = vmatprep.subr.mxu0 0.0
    %4132 = vmatpush2.msra.mxu0 0.0
    %4133 = vmatprep.subr.mxu0 0.0
    %4134 = vmatpush2.msra.mxu0 0.0
    %4135 = vmatprep.subr.mxu0 0.0
    %4136 = vmatpush2.msra.mxu0 0.0
    %4137 = vmatprep.subr.mxu0 0.0
    %4138 = vmatpush2.msra.mxu0 0.0
    %4139 = vmatprep.subr.mxu0 0.0
    %4140 = vmatpush2.msra.mxu0 0.0
    %4141 = vmatprep.subr.mxu0 0.0
    %4142 = vmatpush2.msra.mxu0 0.0
    %4143 = vmatprep.subr.mxu0 0.0
    %4144 = vmatpush2.msra.mxu0 0.0
    %4145 = vmatprep.subr.mxu0 0.0
    %4146 = vmatpush2.msra.mxu0 0.0
    %4147 = vmatprep.subr.mxu0 0.0
    %4148 = vmatpush2.msra.mxu0 0.0
    %4149 = vmatprep.subr.mxu0 0.0
    %4150 = vmatpush2.msra.mxu0 0.0
    %4151 = vmatprep.mubr.f32.mxu0 0.0
    %4152 = vmatmul.mubr.f32.gmra.mxu0 %v2484
    %v4153 = vpop.f32.mrf.mxu0
    %v4154 = vadd.f32 %v4086, %v4153
    %v4155 = vpop.f32.mrf.mxu0
    %4156 = vmatprep.mubr.f32.mxu0 0.0
    %4157 = vmatmul.mubr.f32.gmra.mxu0 %v2487
    %v4158 = vpop.f32.mrf.mxu0
    %v4159 = vadd.f32 %v4086, %v4158
    %v4160 = vpop.f32.mrf.mxu0
    %4161 = vdwg.mxu0
    %v4162 = vmul.f32 %v3984, 0.35355338
    %v4163 = vmul.f32 %v3989, 0.35355338
    %v4165 = vsel %vm361, %v4162, 0
    %v4168 = vsel %vm361, %v4163, 0
    %v4171 = vsel %vm361, %v4069, 0
    %v4174 = vsel %vm361, %v4074, 0
    %4176 = vmatprep.subr.mxu0 0.0
    %4177 = vmatpush1.xpose.msra.mxu0 0.0
    %4178 = vmatprep.subr.mxu0 0.0
    %4179 = vmatpush1.xpose.msra.mxu0 0.0
    %4180 = vmatprep.subr.mxu0 0.0
    %4181 = vmatpush1.xpose.msra.mxu0 0.0
    %4182 = vmatprep.subr.mxu0 0.0
    %4183 = vmatpush1.xpose.msra.mxu0 0.0
    %4184 = vmatprep.subr.mxu0 0.0
    %4185 = vmatpush1.xpose.msra.mxu0 0.0
    %4186 = vmatprep.subr.mxu0 0.0
    %4187 = vmatpush1.xpose.msra.mxu0 0.0
    %4188 = vmatprep.subr.mxu0 0.0
    %4189 = vmatpush1.xpose.msra.mxu0 0.0
    %4190 = vmatprep.subr.mxu0 0.0
    %4191 = vmatpush1.xpose.msra.mxu0 0.0
    %4192 = vmatprep.subr.mxu0 0.0
    %4193 = vmatpush1.xpose.msra.mxu0 0.0
    %4194 = vmatprep.subr.mxu0 0.0
    %4195 = vmatpush1.xpose.msra.mxu0 0.0
    %4196 = vmatprep.subr.mxu0 0.0
    %4197 = vmatpush1.xpose.msra.mxu0 0.0
    %4198 = vmatprep.subr.mxu0 0.0
    %4199 = vmatpush1.xpose.msra.mxu0 0.0
    %4200 = vmatprep.subr.mxu0 0.0
    %4201 = vmatpush1.xpose.msra.mxu0 0.0
    %4202 = vmatprep.subr.mxu0 0.0
    %4203 = vmatpush1.xpose.msra.mxu0 0.0
    %4204 = vmatprep.subr.mxu0 0.0
    %4205 = vmatpush1.xpose.msra.mxu0 %v4174
    %4206 = vmatprep.subr.mxu0 0.0
    %4207 = vmatpush1.xpose.msra.mxu0 %v4171
    %4208 = vmatprep.subr.mxu0 0.0
    %4209 = vmatpush2.xpose.msra.mxu0 0.0
    %4210 = vmatprep.subr.mxu0 0.0
    %4211 = vmatpush2.xpose.msra.mxu0 0.0
    %4212 = vmatprep.subr.mxu0 0.0
    %4213 = vmatpush2.xpose.msra.mxu0 0.0
    %4214 = vmatprep.subr.mxu0 0.0
    %4215 = vmatpush2.xpose.msra.mxu0 0.0
    %4216 = vmatprep.subr.mxu0 0.0
    %4217 = vmatpush2.xpose.msra.mxu0 0.0
    %4218 = vmatprep.subr.mxu0 0.0
    %4219 = vmatpush2.xpose.msra.mxu0 0.0
    %4220 = vmatprep.subr.mxu0 0.0
    %4221 = vmatpush2.xpose.msra.mxu0 0.0
    %4222 = vmatprep.subr.mxu0 0.0
    %4223 = vmatpush2.xpose.msra.mxu0 0.0
    %4224 = vmatprep.subr.mxu0 0.0
    %4225 = vmatpush2.xpose.msra.mxu0 0.0
    %4226 = vmatprep.subr.mxu0 0.0
    %4227 = vmatpush2.xpose.msra.mxu0 0.0
    %4228 = vmatprep.subr.mxu0 0.0
    %4229 = vmatpush2.xpose.msra.mxu0 0.0
    %4230 = vmatprep.subr.mxu0 0.0
    %4231 = vmatpush2.xpose.msra.mxu0 0.0
    %4232 = vmatprep.subr.mxu0 0.0
    %4233 = vmatpush2.xpose.msra.mxu0 0.0
    %4234 = vmatprep.subr.mxu0 0.0
    %4235 = vmatpush2.xpose.msra.mxu0 0.0
    %4236 = vmatprep.subr.mxu0 0.0
    %4237 = vmatpush2.xpose.msra.mxu0 0.0
    %4238 = vmatprep.subr.mxu0 0.0
    %4239 = vmatpush2.xpose.msra.mxu0 0.0
    %4240 = vmatprep.mubr.f32.mxu0 0.0
    %4241 = vmatmul.mubr.f32.gmra.mxu0 %v4165
    %v4242 = vpop.f32.mrf.mxu0
    %v4243 = vadd.f32 0.0, %v4242
    %v4244 = vpop.f32.mrf.mxu0
    %4245 = vmatprep.mubr.f32.mxu0 0.0
    %4246 = vmatmul.mubr.f32.gmra.mxu0 %v4168
    %v4247 = vpop.f32.mrf.mxu0
    %v4248 = vadd.f32 0.0, %v4247
    %v4249 = vpop.f32.mrf.mxu0
    %4250 = vdwg.mxu0
    %v4251 = vsel %vm88, %v4243, -1e+30
    %v4252 = vsel %vm89, %v4248, -1e+30
    %v4253 = vsel %vm451, %v4251, -inf
    %4254 = vmax.xlane.f32.xlu0 %v4253
    %v4255 = vpop.xlane.xlu0 %4254
    %v4256 = vsel %vm451, %v4252, -inf
    %4257 = vmax.xlane.f32.xlu0 %v4256
    %v4258 = vpop.xlane.xlu0 %4257
    %v4259 = vsub.f32 %v4251, %v4255
    %v4260 = vsub.f32 %v4252, %v4258
    %v4261 = vmul.f32 %v4259, 1.442695
    %v4262 = vpow.pop %v4261
    %v4263 = vmul.f32 %v4260, 1.442695
    %v4264 = vpow.pop %v4263
    %v4265 = vsel %vm451, %v4262, 0.0
    %4266 = vadd.xlane.f32.xlu0 %v4265
    %v4267 = vpop.xlane.xlu0 %4266
    %v4268 = vsel %vm451, %v4264, 0.0
    %4269 = vadd.xlane.f32.xlu0 %v4268
    %v4270 = vpop.xlane.xlu0 %4269
    %v4271 = vrcp.pop %v4267
    %v4272 = vrcp.pop %v4270
    %v4274 = vsel %vm451, %v4262, 0
    %v4277 = vsel %vm451, %v4264, 0
    %4279 = vmatprep.subr.mxu0 0.0
    %4280 = vmatpush1.msra.mxu0 0.0
    %4281 = vmatprep.subr.mxu0 0.0
    %4282 = vmatpush1.msra.mxu0 0.0
    %4283 = vmatprep.subr.mxu0 0.0
    %4284 = vmatpush1.msra.mxu0 0.0
    %4285 = vmatprep.subr.mxu0 0.0
    %4286 = vmatpush1.msra.mxu0 0.0
    %4287 = vmatprep.subr.mxu0 0.0
    %4288 = vmatpush1.msra.mxu0 0.0
    %4289 = vmatprep.subr.mxu0 0.0
    %4290 = vmatpush1.msra.mxu0 0.0
    %4291 = vmatprep.subr.mxu0 0.0
    %4292 = vmatpush1.msra.mxu0 0.0
    %4293 = vmatprep.subr.mxu0 0.0
    %4294 = vmatpush1.msra.mxu0 0.0
    %4295 = vmatprep.subr.mxu0 0.0
    %4296 = vmatpush1.msra.mxu0 0.0
    %4297 = vmatprep.subr.mxu0 0.0
    %4298 = vmatpush1.msra.mxu0 0.0
    %4299 = vmatprep.subr.mxu0 0.0
    %4300 = vmatpush1.msra.mxu0 0.0
    %4301 = vmatprep.subr.mxu0 0.0
    %4302 = vmatpush1.msra.mxu0 0.0
    %4303 = vmatprep.subr.mxu0 0.0
    %4304 = vmatpush1.msra.mxu0 0.0
    %4305 = vmatprep.subr.mxu0 0.0
    %4306 = vmatpush1.msra.mxu0 0.0
    %4307 = vmatprep.subr.mxu0 0.0
    %4308 = vmatpush1.msra.mxu0 %v4159
    %4309 = vmatprep.subr.mxu0 0.0
    %4310 = vmatpush1.msra.mxu0 %v4154
    %4311 = vmatprep.subr.mxu0 0.0
    %4312 = vmatpush2.msra.mxu0 0.0
    %4313 = vmatprep.subr.mxu0 0.0
    %4314 = vmatpush2.msra.mxu0 0.0
    %4315 = vmatprep.subr.mxu0 0.0
    %4316 = vmatpush2.msra.mxu0 0.0
    %4317 = vmatprep.subr.mxu0 0.0
    %4318 = vmatpush2.msra.mxu0 0.0
    %4319 = vmatprep.subr.mxu0 0.0
    %4320 = vmatpush2.msra.mxu0 0.0
    %4321 = vmatprep.subr.mxu0 0.0
    %4322 = vmatpush2.msra.mxu0 0.0
    %4323 = vmatprep.subr.mxu0 0.0
    %4324 = vmatpush2.msra.mxu0 0.0
    %4325 = vmatprep.subr.mxu0 0.0
    %4326 = vmatpush2.msra.mxu0 0.0
    %4327 = vmatprep.subr.mxu0 0.0
    %4328 = vmatpush2.msra.mxu0 0.0
    %4329 = vmatprep.subr.mxu0 0.0
    %4330 = vmatpush2.msra.mxu0 0.0
    %4331 = vmatprep.subr.mxu0 0.0
    %4332 = vmatpush2.msra.mxu0 0.0
    %4333 = vmatprep.subr.mxu0 0.0
    %4334 = vmatpush2.msra.mxu0 0.0
    %4335 = vmatprep.subr.mxu0 0.0
    %4336 = vmatpush2.msra.mxu0 0.0
    %4337 = vmatprep.subr.mxu0 0.0
    %4338 = vmatpush2.msra.mxu0 0.0
    %4339 = vmatprep.subr.mxu0 0.0
    %4340 = vmatpush2.msra.mxu0 0.0
    %4341 = vmatprep.subr.mxu0 0.0
    %4342 = vmatpush2.msra.mxu0 0.0
    %4343 = vmatprep.mubr.f32.mxu0 0.0
    %4344 = vmatmul.mubr.f32.gmra.mxu0 %v4274
    %v4345 = vpop.f32.mrf.mxu0
    %v4346 = vadd.f32 0.0, %v4345
    %v4347 = vpop.f32.mrf.mxu0
    %4348 = vmatprep.mubr.f32.mxu0 0.0
    %4349 = vmatmul.mubr.f32.gmra.mxu0 %v4277
    %v4350 = vpop.f32.mrf.mxu0
    %v4351 = vadd.f32 0.0, %v4350
    %v4352 = vpop.f32.mrf.mxu0
    %4353 = vdwg.mxu0
    %v4354 = vmul.f32 %v4346, %v4271
    %v4355 = vmul.f32 %v4351, %v4272
    %s4356 = scalar_lea.vmem %s6, 56
    %v4357 = vld [vmem:[%s4356] sm:$0xff]
    %v4359 = vsel %vm361, %v4354, 0
    %v4362 = vsel %vm361, %v4355, 0
    %4364 = vmatprep.subr.mxu0 0.0
    %4365 = vmatpush1.msra.mxu0 0.0
    %4366 = vmatprep.subr.mxu0 0.0
    %4367 = vmatpush1.msra.mxu0 0.0
    %4368 = vmatprep.subr.mxu0 0.0
    %4369 = vmatpush1.msra.mxu0 0.0
    %4370 = vmatprep.subr.mxu0 0.0
    %4371 = vmatpush1.msra.mxu0 0.0
    %4372 = vmatprep.subr.mxu0 0.0
    %4373 = vmatpush1.msra.mxu0 0.0
    %4374 = vmatprep.subr.mxu0 0.0
    %4375 = vmatpush1.msra.mxu0 0.0
    %4376 = vmatprep.subr.mxu0 0.0
    %4377 = vmatpush1.msra.mxu0 0.0
    %4378 = vmatprep.subr.mxu0 0.0
    %4379 = vmatpush1.msra.mxu0 0.0
    %4380 = vmatprep.subr.mxu0 0.0
    %4381 = vmatpush1.msra.mxu0 0.0
    %4382 = vmatprep.subr.mxu0 0.0
    %4383 = vmatpush1.msra.mxu0 0.0
    %4384 = vmatprep.subr.mxu0 0.0
    %4385 = vmatpush1.msra.mxu0 0.0
    %4386 = vmatprep.subr.mxu0 0.0
    %4387 = vmatpush1.msra.mxu0 0.0
    %4388 = vmatprep.subr.mxu0 0.0
    %4389 = vmatpush1.msra.mxu0 0.0
    %4390 = vmatprep.subr.mxu0 0.0
    %4391 = vmatpush1.msra.mxu0 0.0
    %4392 = vmatprep.subr.mxu0 0.0
    %4393 = vmatpush1.msra.mxu0 0.0
    %4394 = vmatprep.subr.mxu0 0.0
    %4395 = vmatpush1.msra.mxu0 %v4357
    %4396 = vmatprep.subr.mxu0 0.0
    %4397 = vmatpush2.msra.mxu0 0.0
    %4398 = vmatprep.subr.mxu0 0.0
    %4399 = vmatpush2.msra.mxu0 0.0
    %4400 = vmatprep.subr.mxu0 0.0
    %4401 = vmatpush2.msra.mxu0 0.0
    %4402 = vmatprep.subr.mxu0 0.0
    %4403 = vmatpush2.msra.mxu0 0.0
    %4404 = vmatprep.subr.mxu0 0.0
    %4405 = vmatpush2.msra.mxu0 0.0
    %4406 = vmatprep.subr.mxu0 0.0
    %4407 = vmatpush2.msra.mxu0 0.0
    %4408 = vmatprep.subr.mxu0 0.0
    %4409 = vmatpush2.msra.mxu0 0.0
    %4410 = vmatprep.subr.mxu0 0.0
    %4411 = vmatpush2.msra.mxu0 0.0
    %4412 = vmatprep.subr.mxu0 0.0
    %4413 = vmatpush2.msra.mxu0 0.0
    %4414 = vmatprep.subr.mxu0 0.0
    %4415 = vmatpush2.msra.mxu0 0.0
    %4416 = vmatprep.subr.mxu0 0.0
    %4417 = vmatpush2.msra.mxu0 0.0
    %4418 = vmatprep.subr.mxu0 0.0
    %4419 = vmatpush2.msra.mxu0 0.0
    %4420 = vmatprep.subr.mxu0 0.0
    %4421 = vmatpush2.msra.mxu0 0.0
    %4422 = vmatprep.subr.mxu0 0.0
    %4423 = vmatpush2.msra.mxu0 0.0
    %4424 = vmatprep.subr.mxu0 0.0
    %4425 = vmatpush2.msra.mxu0 0.0
    %4426 = vmatprep.subr.mxu0 0.0
    %4427 = vmatpush2.msra.mxu0 0.0
    %4428 = vmatprep.mubr.f32.mxu0 0.0
    %4429 = vmatmul.mubr.f32.gmra.mxu0 %v4359
    %v4430 = vpop.f32.mrf.mxu0
    %v4431 = vadd.f32 0.0, %v4430
    %v4432 = vpop.f32.mrf.mxu0
    %4433 = vmatprep.mubr.f32.mxu0 0.0
    %4434 = vmatmul.mubr.f32.gmra.mxu0 %v4362
    %v4435 = vpop.f32.mrf.mxu0
    %v4436 = vadd.f32 0.0, %v4435
    %v4437 = vpop.f32.mrf.mxu0
    %4438 = vdwg.mxu0
    %v4439 = vadd.f32 %v3905, %v4431
    %v4440 = vadd.f32 %v3906, %v4436
    %v4441 = vld [vmem:[%s10 + $0x1] sm:$0x1]
    %v4442 = vlaneseq
    %v4443 = vshrl.u32 %v4442, 7
    %v4444 = vsub.s32 0, %v4443
    %v4445 = vrot.slane %v4441, %v4444
    %v4446 = vadd.f32 %v4439, %v4445
    %v4447 = vadd.f32 %v4440, %v4445
    %v4448 = vadd.f32 %v2285, %v4446
    %v4449 = vadd.f32 %v2286, %v4447
    %v4450 = vld [vmem:[%s10 + $0x5] sm:$0x1]
    %v4451 = vld [vmem:[%s10 + $0x6] sm:$0x1]
    %v4452 = vsel %vm101, %v4448, 0.0
    %4453 = vadd.xlane.f32.xlu0 %v4452
    %v4454 = vpop.xlane.xlu0 %4453
    %v4455 = vsel %vm101, %v4449, 0.0
    %4456 = vadd.xlane.f32.xlu0 %v4455
    %v4457 = vpop.xlane.xlu0 %4456
    %v4458 = vmul.f32 %v4454, %v2254
    %v4459 = vmul.f32 %v4457, %v2254
    %v4460 = vsub.f32 %v4448, %v4458
    %v4461 = vsub.f32 %v4449, %v4459
    %v4462 = vmul.f32 %v4460, %v4460
    %v4463 = vmul.f32 %v4461, %v4461
    %v4464 = vsel %vm101, %v4462, 0.0
    %4465 = vadd.xlane.f32.xlu0 %v4464
    %v4466 = vpop.xlane.xlu0 %4465
    %v4467 = vsel %vm101, %v4463, 0.0
    %4468 = vadd.xlane.f32.xlu0 %v4467
    %v4469 = vpop.xlane.xlu0 %4468
    %v4470 = vmul.f32 %v4466, %v2254
    %v4471 = vmul.f32 %v4469, %v2254
    %v4472 = vadd.f32 %v4470, 1e-05
    %v4473 = vadd.f32 %v4471, 1e-05
    %v4474 = vrsqrt.pop %v4472
    %v4475 = vrsqrt.pop %v4473
    %v4476 = vmul.f32 %v4460, %v4474
    %v4477 = vmul.f32 %v4461, %v4475
    %v4478 = vlaneseq
    %v4479 = vshrl.u32 %v4478, 7
    %v4480 = vsub.s32 0, %v4479
    %v4481 = vrot.slane %v4450, %v4480
    %v4482 = vmul.f32 %v4476, %v4481
    %v4483 = vmul.f32 %v4477, %v4481
    %v4484 = vlaneseq
    %v4485 = vshrl.u32 %v4484, 7
    %v4486 = vsub.s32 0, %v4485
    %v4487 = vrot.slane %v4451, %v4486
    %v4488 = vadd.f32 %v4482, %v4487
    %v4489 = vadd.f32 %v4483, %v4487
    %v4490 = vld [vmem:[%s7] sm:$0xff]
    %v4491 = vld [vmem:[%s7 + $0x8] sm:$0xff]
    %v4492 = vld [vmem:[%s7 + $0x10] sm:$0xff]
    %v4493 = vld [vmem:[%s7 + $0x18] sm:$0xff]
    %v4494 = vld [vmem:[%s8] sm:$0x1]
    %v4496 = vlaneseq
    %v4497 = vshrl.u32 %v4496, 7
    %v4498 = vsub.s32 0, %v4497
    %v4499 = vrot.slane %v4494, %v4498
    %v4502 = vsel %vm101, %v4488, 0
    %v4505 = vsel %vm101, %v4489, 0
    %4507 = vmatprep.subr.mxu0 0.0
    %4508 = vmatpush1.msra.mxu0 0.0
    %4509 = vmatprep.subr.mxu0 0.0
    %4510 = vmatpush1.msra.mxu0 0.0
    %4511 = vmatprep.subr.mxu0 0.0
    %4512 = vmatpush1.msra.mxu0 0.0
    %4513 = vmatprep.subr.mxu0 0.0
    %4514 = vmatpush1.msra.mxu0 0.0
    %4515 = vmatprep.subr.mxu0 0.0
    %4516 = vmatpush1.msra.mxu0 0.0
    %4517 = vmatprep.subr.mxu0 0.0
    %4518 = vmatpush1.msra.mxu0 0.0
    %4519 = vmatprep.subr.mxu0 0.0
    %4520 = vmatpush1.msra.mxu0 0.0
    %4521 = vmatprep.subr.mxu0 0.0
    %4522 = vmatpush1.msra.mxu0 0.0
    %4523 = vmatprep.subr.mxu0 0.0
    %4524 = vmatpush1.msra.mxu0 0.0
    %4525 = vmatprep.subr.mxu0 0.0
    %4526 = vmatpush1.msra.mxu0 0.0
    %4527 = vmatprep.subr.mxu0 0.0
    %4528 = vmatpush1.msra.mxu0 0.0
    %4529 = vmatprep.subr.mxu0 0.0
    %4530 = vmatpush1.msra.mxu0 0.0
    %4531 = vmatprep.subr.mxu0 0.0
    %4532 = vmatpush1.msra.mxu0 %v4493
    %4533 = vmatprep.subr.mxu0 0.0
    %4534 = vmatpush1.msra.mxu0 %v4492
    %4535 = vmatprep.subr.mxu0 0.0
    %4536 = vmatpush1.msra.mxu0 %v4491
    %4537 = vmatprep.subr.mxu0 0.0
    %4538 = vmatpush1.msra.mxu0 %v4490
    %4539 = vmatprep.subr.mxu0 0.0
    %4540 = vmatpush2.msra.mxu0 0.0
    %4541 = vmatprep.subr.mxu0 0.0
    %4542 = vmatpush2.msra.mxu0 0.0
    %4543 = vmatprep.subr.mxu0 0.0
    %4544 = vmatpush2.msra.mxu0 0.0
    %4545 = vmatprep.subr.mxu0 0.0
    %4546 = vmatpush2.msra.mxu0 0.0
    %4547 = vmatprep.subr.mxu0 0.0
    %4548 = vmatpush2.msra.mxu0 0.0
    %4549 = vmatprep.subr.mxu0 0.0
    %4550 = vmatpush2.msra.mxu0 0.0
    %4551 = vmatprep.subr.mxu0 0.0
    %4552 = vmatpush2.msra.mxu0 0.0
    %4553 = vmatprep.subr.mxu0 0.0
    %4554 = vmatpush2.msra.mxu0 0.0
    %4555 = vmatprep.subr.mxu0 0.0
    %4556 = vmatpush2.msra.mxu0 0.0
    %4557 = vmatprep.subr.mxu0 0.0
    %4558 = vmatpush2.msra.mxu0 0.0
    %4559 = vmatprep.subr.mxu0 0.0
    %4560 = vmatpush2.msra.mxu0 0.0
    %4561 = vmatprep.subr.mxu0 0.0
    %4562 = vmatpush2.msra.mxu0 0.0
    %4563 = vmatprep.subr.mxu0 0.0
    %4564 = vmatpush2.msra.mxu0 0.0
    %4565 = vmatprep.subr.mxu0 0.0
    %4566 = vmatpush2.msra.mxu0 0.0
    %4567 = vmatprep.subr.mxu0 0.0
    %4568 = vmatpush2.msra.mxu0 0.0
    %4569 = vmatprep.subr.mxu0 0.0
    %4570 = vmatpush2.msra.mxu0 0.0
    %4571 = vmatprep.mubr.f32.mxu0 0.0
    %4572 = vmatmul.mubr.f32.gmra.mxu0 %v4502
    %v4573 = vpop.f32.mrf.mxu0
    %v4574 = vadd.f32 %v4499, %v4573
    %v4575 = vpop.f32.mrf.mxu0
    %4576 = vmatprep.mubr.f32.mxu0 0.0
    %4577 = vmatmul.mubr.f32.gmra.mxu0 %v4505
    %v4578 = vpop.f32.mrf.mxu0
    %v4579 = vadd.f32 %v4499, %v4578
    %v4580 = vpop.f32.mrf.mxu0
    %4581 = vdwg.mxu0
    %v4582 = vmax.f32 %v4574, 0.0
    %v4583 = vmax.f32 %v4579, 0.0
    %v4584 = vld [vmem:[%s9] sm:$0xff]
    %v4585 = vld [vmem:[%s9 + $0x8] sm:$0xff]
    %v4586 = vld [vmem:[%s9 + $0x10] sm:$0xff]
    %v4587 = vld [vmem:[%s9 + $0x18] sm:$0xff]
    %v4588 = vld [vmem:[%s9 + $0x20] sm:$0xff]
    %v4589 = vld [vmem:[%s9 + $0x28] sm:$0xff]
    %v4590 = vld [vmem:[%s9 + $0x30] sm:$0xff]
    %v4591 = vld [vmem:[%s9 + $0x38] sm:$0xff]
    %v4592 = vld [vmem:[%s10 + $0x2] sm:$0x1]
    %v4593 = vlaneseq
    %v4594 = vshrl.u32 %v4593, 7
    %v4595 = vsub.s32 0, %v4594
    %v4596 = vrot.slane %v4592, %v4595
    %vm4597 = vcmask 523264
    %v4599 = vsel %vm4597, %v4582, 0
    %v4602 = vsel %vm4597, %v4583, 0
    %4604 = vmatprep.subr.mxu0 0.0
    %4605 = vmatpush1.msra.mxu0 0.0
    %4606 = vmatprep.subr.mxu0 0.0
    %4607 = vmatpush1.msra.mxu0 0.0
    %4608 = vmatprep.subr.mxu0 0.0
    %4609 = vmatpush1.msra.mxu0 0.0
    %4610 = vmatprep.subr.mxu0 0.0
    %4611 = vmatpush1.msra.mxu0 0.0
    %4612 = vmatprep.subr.mxu0 0.0
    %4613 = vmatpush1.msra.mxu0 0.0
    %4614 = vmatprep.subr.mxu0 0.0
    %4615 = vmatpush1.msra.mxu0 0.0
    %4616 = vmatprep.subr.mxu0 0.0
    %4617 = vmatpush1.msra.mxu0 0.0
    %4618 = vmatprep.subr.mxu0 0.0
    %4619 = vmatpush1.msra.mxu0 0.0
    %4620 = vmatprep.subr.mxu0 0.0
    %4621 = vmatpush1.msra.mxu0 %v4591
    %4622 = vmatprep.subr.mxu0 0.0
    %4623 = vmatpush1.msra.mxu0 %v4590
    %4624 = vmatprep.subr.mxu0 0.0
    %4625 = vmatpush1.msra.mxu0 %v4589
    %4626 = vmatprep.subr.mxu0 0.0
    %4627 = vmatpush1.msra.mxu0 %v4588
    %4628 = vmatprep.subr.mxu0 0.0
    %4629 = vmatpush1.msra.mxu0 %v4587
    %4630 = vmatprep.subr.mxu0 0.0
    %4631 = vmatpush1.msra.mxu0 %v4586
    %4632 = vmatprep.subr.mxu0 0.0
    %4633 = vmatpush1.msra.mxu0 %v4585
    %4634 = vmatprep.subr.mxu0 0.0
    %4635 = vmatpush1.msra.mxu0 %v4584
    %4636 = vmatprep.subr.mxu0 0.0
    %4637 = vmatpush2.msra.mxu0 0.0
    %4638 = vmatprep.subr.mxu0 0.0
    %4639 = vmatpush2.msra.mxu0 0.0
    %4640 = vmatprep.subr.mxu0 0.0
    %4641 = vmatpush2.msra.mxu0 0.0
    %4642 = vmatprep.subr.mxu0 0.0
    %4643 = vmatpush2.msra.mxu0 0.0
    %4644 = vmatprep.subr.mxu0 0.0
    %4645 = vmatpush2.msra.mxu0 0.0
    %4646 = vmatprep.subr.mxu0 0.0
    %4647 = vmatpush2.msra.mxu0 0.0
    %4648 = vmatprep.subr.mxu0 0.0
    %4649 = vmatpush2.msra.mxu0 0.0
    %4650 = vmatprep.subr.mxu0 0.0
    %4651 = vmatpush2.msra.mxu0 0.0
    %4652 = vmatprep.subr.mxu0 0.0
    %4653 = vmatpush2.msra.mxu0 0.0
    %4654 = vmatprep.subr.mxu0 0.0
    %4655 = vmatpush2.msra.mxu0 0.0
    %4656 = vmatprep.subr.mxu0 0.0
    %4657 = vmatpush2.msra.mxu0 0.0
    %4658 = vmatprep.subr.mxu0 0.0
    %4659 = vmatpush2.msra.mxu0 0.0
    %4660 = vmatprep.subr.mxu0 0.0
    %4661 = vmatpush2.msra.mxu0 0.0
    %4662 = vmatprep.subr.mxu0 0.0
    %4663 = vmatpush2.msra.mxu0 0.0
    %4664 = vmatprep.subr.mxu0 0.0
    %4665 = vmatpush2.msra.mxu0 0.0
    %4666 = vmatprep.subr.mxu0 0.0
    %4667 = vmatpush2.msra.mxu0 0.0
    %4668 = vmatprep.mubr.f32.mxu0 0.0
    %4669 = vmatmul.mubr.f32.gmra.mxu0 %v4599
    %v4670 = vpop.f32.mrf.mxu0
    %v4671 = vadd.f32 %v4596, %v4670
    %v4672 = vpop.f32.mrf.mxu0
    %4673 = vmatprep.mubr.f32.mxu0 0.0
    %4674 = vmatmul.mubr.f32.gmra.mxu0 %v4602
    %v4675 = vpop.f32.mrf.mxu0
    %v4676 = vadd.f32 %v4596, %v4675
    %v4677 = vpop.f32.mrf.mxu0
    %4678 = vdwg.mxu0
    %v4679 = vadd.f32 %v4488, %v4671
    %v4680 = vadd.f32 %v4489, %v4676
    %v4681 = vld [vmem:[%s10 + $0x7] sm:$0x1]
    %v4682 = vld [vmem:[%s10 + $0x8] sm:$0x1]
    %v4683 = vsel %vm101, %v4679, 0.0
    %4684 = vadd.xlane.f32.xlu0 %v4683
    %v4685 = vpop.xlane.xlu0 %4684
    %v4686 = vsel %vm101, %v4680, 0.0
    %4687 = vadd.xlane.f32.xlu0 %v4686
    %v4688 = vpop.xlane.xlu0 %4687
    %v4689 = vmul.f32 %v4685, %v2254
    %v4690 = vmul.f32 %v4688, %v2254
    %v4691 = vsub.f32 %v4679, %v4689
    %v4692 = vsub.f32 %v4680, %v4690
    %v4693 = vmul.f32 %v4691, %v4691
    %v4694 = vmul.f32 %v4692, %v4692
    %v4695 = vsel %vm101, %v4693, 0.0
    %4696 = vadd.xlane.f32.xlu0 %v4695
    %v4697 = vpop.xlane.xlu0 %4696
    %v4698 = vsel %vm101, %v4694, 0.0
    %4699 = vadd.xlane.f32.xlu0 %v4698
    %v4700 = vpop.xlane.xlu0 %4699
    %v4701 = vmul.f32 %v4697, %v2254
    %v4702 = vmul.f32 %v4700, %v2254
    %v4703 = vadd.f32 %v4701, 1e-05
    %v4704 = vadd.f32 %v4702, 1e-05
    %v4705 = vrsqrt.pop %v4703
    %v4706 = vrsqrt.pop %v4704
    %v4707 = vmul.f32 %v4691, %v4705
    %v4708 = vmul.f32 %v4692, %v4706
    %v4709 = vlaneseq
    %v4710 = vshrl.u32 %v4709, 7
    %v4711 = vsub.s32 0, %v4710
    %v4712 = vrot.slane %v4681, %v4711
    %v4713 = vmul.f32 %v4707, %v4712
    %v4714 = vmul.f32 %v4708, %v4712
    %v4715 = vlaneseq
    %v4716 = vshrl.u32 %v4715, 7
    %v4717 = vsub.s32 0, %v4716
    %v4718 = vrot.slane %v4682, %v4717
    %v4719 = vadd.f32 %v4713, %v4718
    %v4720 = vadd.f32 %v4714, %v4718
    %4721 = vst.msk [vmem:[#allocation2] sm:$0xff] %vm101, %v4719
    %4722 = vst.msk [vmem:[#allocation2 + $0x8] sm:$0xff] %vm101, %v4720
    // Predicated region
    $region46: #{transformer_decoder_layer.1} parent=1 // pred_check
      _
    $region47: #{transformer_decoder_layer.1} parent=1 // pred_check_branch
      %4724 = sbr.rel (0) target = $region49
    $region48: #{transformer_decoder_layer.1} parent=1 // pred_region
      %s4726 = ssub.s32 256, 256
      %4727 = vsyncadd [#allocation3], %s4726
      %s4728 = sshll.u32 [#allocation2], 4
      %s4729 = int_to_ptr.vmem [resolvable:$true] %s4728
      %4734 = dma.vmem_to_hbm [thread:$0]  %s4729, 256, %s11, [#allocation3], 128, 128, 8
    $region49: #{transformer_decoder_layer.1} parent=1 // pred_fallthru
      _
    // Predicated region
    $region50: #{transformer_decoder_layer.1} parent=1 // pred_check
      _
    $region51: #{transformer_decoder_layer.1} parent=1 // pred_check_branch
      %4736 = sbr.rel (0) target = $region53
    $region52: #{transformer_decoder_layer.1} parent=1 // pred_region
      %4737 = dma.done [#allocation3], 256
    $region53: #{transformer_decoder_layer.1} parent=1 // pred_fallthru
      _
    %4738 = vsyncpa [#allocation3], 1

</llo_original>
